<compile_context>
chip_gen: v6e
topology: v6e:2x2x1
jax: 0.10.0
libtpu: 0.0.40
codegen_flags: <defaults>
</compile_context>

<pallas_src>
import functools

import jax
import jax.numpy as jnp
from jax.experimental import pallas as pl
from jax.experimental.pallas import tpu as pltpu


# ---------------------------------------------------------------------------
# Kernel: whole encoder stack, one grid step = (batch block, layer, d_ff chunk)
# ---------------------------------------------------------------------------
def _encoder_stack_kernel(
    x_ref, bias_ref,
    wqkv_ref, bqkv_ref, wo_ref, bo_ref,
    ln1g_ref, ln1b_ref, ln2g_ref, ln2b_ref,
    w1_ref, b1_ref, w2_ref, b2_ref,
    o_ref,
    x_sc, qkv_sc, att_sc, xn2_sc, ff_sc,
    *, H: int, d_k: int, S: int, bblk: int, mm_dtype, approx_recip: bool,
):
    layer = pl.program_id(1)
    fchunk = pl.program_id(2)
    n_layers = pl.num_programs(1)
    n_fchunks = pl.num_programs(2)
    D = H * d_k

    def layernorm(v, g, b):
        # single-pass variance: E[x^2] - E[x]^2 (one fewer cross-lane reduce)
        mu = jnp.mean(v, axis=-1, keepdims=True)
        var = jnp.maximum(jnp.mean(v * v, axis=-1, keepdims=True) - mu * mu, 0.0)
        return (v - mu) * jax.lax.rsqrt(var + 1e-5) * g + b

    # Load the residual stream into the VMEM-resident f32 scratch once per
    # batch block; it stays resident for all layers / d_ff chunks.
    @pl.when((layer == 0) & (fchunk == 0))
    def _():
        x_sc[...] = x_ref[...].astype(jnp.float32)

    # ---- sublayer 0: multi-head self-attention + LN2 (only at first ff chunk) ----
    @pl.when(fchunk == 0)
    def _():
        x = x_sc[...]                                        # (R, D) f32
        xn = layernorm(x, ln1g_ref[0], ln1b_ref[0])
        # Fused QKV projection (one MXU call, N=3D); 1/sqrt(d_k) already folded
        # into the Q weights/bias in the wrapper.
        qkv = jnp.dot(xn.astype(mm_dtype), wqkv_ref[0],
                      preferred_element_type=jnp.float32) + bqkv_ref[0]
        qkv_sc[...] = qkv.astype(mm_dtype)

        def attn_body(b, carry=0):
            if isinstance(b, int):
                r = b * S
            else:
                r = pl.multiple_of(b * S, S)
            bias_b = bias_ref[b]                             # (1, S) additive mask bias
            for h in range(H):                               # static: lane slices static
                c = h * d_k
                qh = qkv_sc[pl.ds(r, S), c:c + d_k]
                kh = qkv_sc[pl.ds(r, S), D + c:D + c + d_k]
                vh = qkv_sc[pl.ds(r, S), 2 * D + c:2 * D + c + d_k]
                # contraction folded in: Q @ K^T without an explicit transpose
                s = jax.lax.dot_general(qh, kh, (((1,), (1,)), ((), ())),
                                        preferred_element_type=jnp.float32)
                s = s + bias_b
                s = s - jnp.max(s, axis=-1, keepdims=True)
                p = jnp.exp(s)
                denom = jnp.sum(p, axis=-1, keepdims=True)
                if approx_recip:
                    p = p * pl.reciprocal(denom, approx=True)
                else:
                    p = p / denom
                oh = jnp.dot(p.astype(mm_dtype), vh,
                             preferred_element_type=jnp.float32)
                att_sc[:, c:c + d_k] = oh.astype(mm_dtype)   # concat heads in lanes
            # ONE full-depth output projection (S,D)@(D,D) per batch element.
            proj = jnp.dot(att_sc[...], wo_ref[0],
                           preferred_element_type=jnp.float32)
            x_sc[pl.ds(r, S), :] = x_sc[pl.ds(r, S), :] + proj + bo_ref[0]
            return carry

        if bblk <= 4:
            # tiny batch blocks: static unroll (all offsets static)
            for b in range(bblk):
                attn_body(b)
        else:
            # realistic batch blocks: bound live ranges / code size
            jax.lax.fori_loop(0, bblk, attn_body, 0)

        # LN for the FFN sublayer, shared by every d_ff chunk of this layer.
        xn2_sc[...] = layernorm(x_sc[...], ln2g_ref[0], ln2b_ref[0]).astype(mm_dtype)
        ff_sc[...] = jnp.zeros_like(ff_sc)

    # ---- sublayer 1: position-wise FFN, accumulated over d_ff chunks ----
    h1 = jnp.dot(xn2_sc[...], w1_ref[0],
                 preferred_element_type=jnp.float32) + b1_ref[0]
    h1 = jnp.maximum(h1, 0.0)
    ff_sc[...] += jnp.dot(h1.astype(mm_dtype), w2_ref[0],
                          preferred_element_type=jnp.float32)

    @pl.when(fchunk == n_fchunks - 1)
    def _():
        x_sc[...] = x_sc[...] + ff_sc[...] + b2_ref[0]       # residual (dropout = id)

    # Output block index is constant over the layer / ff axes, so it is DMA'd
    # back to HBM only once per batch block; store it at the very last step.
    @pl.when((fchunk == n_fchunks - 1) & (layer == n_layers - 1))
    def _():
        o_ref[...] = x_sc[...].astype(o_ref.dtype)


# ---------------------------------------------------------------------------
# Wrapper
# ---------------------------------------------------------------------------
def encoder(x, src_mask, layer_params, *, H, matmul_dtype=jnp.float32,
            batch_block=None, ff_block=None):
    """Full Encoder in one pallas_call. x: (B,S,D), src_mask: (B,1,S) {0,1}."""
    B, S, D = x.shape
    assert D % H == 0
    d_k = D // H
    n_layers = len(layer_params)
    d_ff = layer_params[0]["w1"].shape[-1]
    mm_dtype = jnp.dtype(matmul_dtype)
    inv_sqrt_dk = 1.0 / (float(d_k) ** 0.5)

    # ---- parameter packing (per-layer leading axis, streamed per layer) ----
    # Q/K/V fused into one (D,3D) weight; 1/sqrt(d_k) folded into the Q part.
    wqkv = jnp.stack([jnp.concatenate(
        [p["wq"] * inv_sqrt_dk, p["wk"], p["wv"]], axis=-1) for p in layer_params])
    bqkv = jnp.stack([jnp.concatenate(
        [p["bq"] * inv_sqrt_dk, p["bk"], p["bv"]], axis=-1) for p in layer_params])
    wo = jnp.stack([p["wo"] for p in layer_params])
    bo = jnp.stack([p["bo"] for p in layer_params])
    ln1g = jnp.stack([p["ln1_g"] for p in layer_params])
    ln1b = jnp.stack([p["ln1_b"] for p in layer_params])
    ln2g = jnp.stack([p["ln2_g"] for p in layer_params])
    ln2b = jnp.stack([p["ln2_b"] for p in layer_params])
    w1 = jnp.stack([p["w1"] for p in layer_params])
    b1 = jnp.stack([p["b1"] for p in layer_params])
    w2 = jnp.stack([p["w2"] for p in layer_params])
    b2 = jnp.stack([p["b2"] for p in layer_params])
    # Pre-cast only the matmul weights to the MXU dtype (halves DMA + VMEM in
    # bf16 mode); biases / LN params stay f32 for f32 element-wise math.
    wqkv, wo, w1, w2 = (a.astype(mm_dtype) for a in (wqkv, wo, w1, w2))
    bqkv, bo, b1, b2, ln1g, ln1b, ln2g, ln2b = (
        a.astype(jnp.float32) for a in (bqkv, bo, b1, b2, ln1g, ln1b, ln2g, ln2b))

    # ---- batch blocking: whole batch per step on 1-TC chips; /2 only on v7x ----
    if batch_block is None:
        batch_block = B
        try:
            kind = jax.devices()[0].device_kind.lower()
            if "v7" in kind and B >= 2 and B % 2 == 0:
                batch_block = B // 2
        except Exception:
            pass
    if batch_block <= 0 or B % batch_block != 0:
        batch_block = B
    bblk = batch_block
    nb = B // bblk
    R = bblk * S

    # ---- d_ff tiling (streams w1/w2 in chunks for the v7x 64 MiB VMEM budget) ----
    if ff_block is None:
        ff_block = d_ff
        if d_ff > 2048:
            for cand in (2048, 1024, 512, 256, 128):
                if d_ff % cand == 0:
                    ff_block = cand
                    break
    if ff_block <= 0 or d_ff % ff_block != 0:
        ff_block = d_ff
    nf = d_ff // ff_block

    x2 = x.reshape(B * S, D)                       # 2-D row layout: no in-kernel reshapes
    # Additive mask bias precomputed once in the wrapper (finite -1e30: no NaNs,
    # no per-layer rebuild inside the kernel).
    bias = jnp.where(src_mask > 0.5, 0.0, -1e30).astype(jnp.float32)   # (B,1,S)

    def lay(shape, imap=None):
        nd = len(shape)
        if imap is None:
            imap = lambda b, l, f, _nd=nd: (l,) + (0,) * _nd
        return pl.BlockSpec((1,) + shape, imap)

    in_specs = [
        pl.BlockSpec((R, D), lambda b, l, f: (b, 0)),              # x rows
        pl.BlockSpec((bblk, 1, S), lambda b, l, f: (b, 0, 0)),     # additive mask bias
        lay((D, 3 * D)), lay((1, 3 * D)),                          # fused QKV w, b
        lay((D, D)), lay((1, D)),                                  # wo, bo
        lay((1, D)), lay((1, D)),                                  # ln1 gamma, beta
        lay((1, D)), lay((1, D)),                                  # ln2 gamma, beta
        lay((D, ff_block), lambda b, l, f: (l, 0, f)),             # w1 chunk
        lay((1, ff_block), lambda b, l, f: (l, 0, f)),             # b1 chunk
        lay((ff_block, D), lambda b, l, f: (l, f, 0)),             # w2 chunk
        lay((1, D)),                                               # b2
    ]

    # ---- VMEM budget (generation-aware clamp) ----
    wsz = mm_dtype.itemsize
    w_bytes = wsz * (4 * D * D + 2 * D * ff_block) + 4 * (8 * D + ff_block)
    io_bytes = 4 * (4 * R * D + 2 * bblk * S)                      # x in/out (double-buffered) + bias
    scratch_bytes = 4 * 2 * R * D + wsz * (4 * R * D + S * D)
    inter_bytes = 4 * (3 * R * D + R * ff_block + 2 * S * S + 2 * R * D)
    footprint = 2 * w_bytes + io_bytes + scratch_bytes + inter_bytes
    try:
        vmem_cap = int(pltpu.get_tpu_info().vmem_capacity_bytes)
    except Exception:
        vmem_cap = 64 << 20
    vmem_limit = int(min(max(2 * footprint, 8 << 20), int(vmem_cap * 0.85)))

    kernel = functools.partial(
        _encoder_stack_kernel, H=H, d_k=d_k, S=S, bblk=bblk, mm_dtype=mm_dtype,
        approx_recip=(mm_dtype != jnp.dtype(jnp.float32)))

    out2 = pl.pallas_call(
        kernel,
        out_shape=jax.ShapeDtypeStruct((B * S, D), x.dtype),
        grid_spec=pltpu.PrefetchScalarGridSpec(
            num_scalar_prefetch=0,
            grid=(nb, n_layers, nf),
            in_specs=in_specs,
            out_specs=pl.BlockSpec((R, D), lambda b, l, f: (b, 0)),
            scratch_shapes=[
                pltpu.VMEM((R, D), jnp.float32),     # resident residual stream
                pltpu.VMEM((R, 3 * D), mm_dtype),    # fused QKV activations
                pltpu.VMEM((S, D), mm_dtype),        # concatenated head outputs
                pltpu.VMEM((R, D), mm_dtype),        # LN2(x), reused across ff chunks
                pltpu.VMEM((R, D), jnp.float32),     # FFN partial accumulator
            ],
        ),
        compiler_params=pltpu.CompilerParams(
            dimension_semantics=("parallel", "arbitrary", "arbitrary"),
            vmem_limit_bytes=vmem_limit,
        ),
    )(x2, bias, wqkv, bqkv, wo, bo, ln1g, ln1b, ln2g, ln2b, w1, b1, w2, b2)
    return out2.reshape(B, S, D)


# ---------------------------------------------------------------------------
# Deterministic parameter init + pure-JAX reference
# ---------------------------------------------------------------------------
def init_layer_params(key, d_model, d_ff):
    ks = jax.random.split(key, 12)
    s = 0.1

    def lin(kw, kb, din, dout):
        # Stored as (in, out): y = x @ W + b  (PyTorch Linear semantics, pre-transposed)
        return (jax.random.normal(kw, (din, dout), jnp.float32) * s,
                jax.random.normal(kb, (1, dout), jnp.float32) * s)

    wq, bq = lin(ks[0], ks[1], d_model, d_model)
    wk, bk = lin(ks[2], ks[3], d_model, d_model)
    wv, bv = lin(ks[4], ks[5], d_model, d_model)
    wo, bo = lin(ks[6], ks[7], d_model, d_model)
    w1, b1 = lin(ks[8], ks[9], d_model, d_ff)
    w2, b2 = lin(ks[10], ks[11], d_ff, d_model)
    ones = jnp.ones((1, d_model), jnp.float32)
    zeros = jnp.zeros((1, d_model), jnp.float32)
    return dict(wq=wq, bq=bq, wk=wk, bk=bk, wv=wv, bv=bv, wo=wo, bo=bo,
                ln1_g=ones, ln1_b=zeros, ln2_g=ones, ln2_b=zeros,
                w1=w1, b1=b1, w2=w2, b2=b2)


def _reference_encoder(x, src_mask, layer_params, H):
    def ln(v, g, b):
        mu = jnp.mean(v, -1, keepdims=True)
        var = jnp.mean((v - mu) ** 2, -1, keepdims=True)
        return (v - mu) / jnp.sqrt(var + 1e-5) * g + b

    B, S, D = x.shape
    d_k = D // H
    for p in layer_params:
        xn = ln(x, p["ln1_g"][0], p["ln1_b"][0])
        q = xn @ p["wq"] + p["bq"][0]
        k = xn @ p["wk"] + p["bk"][0]
        v = xn @ p["wv"] + p["bv"][0]
        q = q.reshape(B, S, H, d_k).transpose(0, 2, 1, 3)
        k = k.reshape(B, S, H, d_k).transpose(0, 2, 1, 3)
        v = v.reshape(B, S, H, d_k).transpose(0, 2, 1, 3)
        s = jnp.einsum("bhqd,bhkd->bhqk", q, k) / jnp.sqrt(float(d_k))
        m = src_mask[:, None, :, :]  # (B,1,1,S)
        s = jnp.where(m == 0.0, -jnp.inf, s)
        att = jax.nn.softmax(s, -1) @ v
        att = att.transpose(0, 2, 1, 3).reshape(B, S, D)
        x = x + (att @ p["wo"] + p["bo"][0])
        xn = ln(x, p["ln2_g"][0], p["ln2_b"][0])
        ff = jnp.maximum(xn @ p["w1"] + p["b1"][0], 0.0) @ p["w2"] + p["b2"][0]
        x = x + ff
    return x


# ---------------------------------------------------------------------------
if __name__ == "__main__":
    B, S = 2, 8
    d_model, H, d_ff, N = 32, 4, 64, 2

    key = jax.random.PRNGKey(0)
    kx, kp = jax.random.split(key, 2)

    x = jax.random.normal(kx, (B, S, d_model), jnp.float32)

    # src_mask equivalent to (src != pad_idx).unsqueeze(1): mask last 2 tokens of batch 1.
    valid = jnp.ones((B, S), jnp.float32).at[1, -2:].set(0.0)
    src_mask = valid[:, None, :]  # (B, 1, S)

    layer_params = [init_layer_params(k, d_model, d_ff)
                    for k in jax.random.split(kp, N)]

    ref = _reference_encoder(x, src_mask, layer_params, H)

    # f32 matmul path: tight check against the pure-JAX reference.
    out = jax.block_until_ready(encoder(x, src_mask, layer_params, H=H))
    assert out.shape == (B, S, d_model)
    assert jnp.allclose(out, ref, atol=2e-3, rtol=2e-3), "f32 kernel mismatch vs reference"

    # bf16 MXU path (perf mode): same semantics, looser numeric check.
    out_bf16 = jax.block_until_ready(
        encoder(x, src_mask, layer_params, H=H, matmul_dtype=jnp.bfloat16))
    assert out_bf16.shape == (B, S, d_model)
    assert jnp.allclose(out_bf16, ref, atol=1e-1, rtol=1e-1), "bf16 kernel mismatch vs reference"

    print("KERNEL_OK")
</pallas_src>

<mosaic_0001>
module attributes {stable_mosaic.version = 11 : i64} {
  func.func @_encoder_stack_kernel(%arg0: i32, %arg1: i32, %arg2: i32, %arg3: memref<16x32xf32, #tpu.memory_space<vmem>>, %arg4: memref<2x1x8xf32, #tpu.memory_space<vmem>>, %arg5: memref<1x32x96xf32, #tpu.memory_space<vmem>>, %arg6: memref<1x1x96xf32, #tpu.memory_space<vmem>>, %arg7: memref<1x32x32xf32, #tpu.memory_space<vmem>>, %arg8: memref<1x1x32xf32, #tpu.memory_space<vmem>>, %arg9: memref<1x1x32xf32, #tpu.memory_space<vmem>>, %arg10: memref<1x1x32xf32, #tpu.memory_space<vmem>>, %arg11: memref<1x1x32xf32, #tpu.memory_space<vmem>>, %arg12: memref<1x1x32xf32, #tpu.memory_space<vmem>>, %arg13: memref<1x32x64xf32, #tpu.memory_space<vmem>>, %arg14: memref<1x1x64xf32, #tpu.memory_space<vmem>>, %arg15: memref<1x64x32xf32, #tpu.memory_space<vmem>>, %arg16: memref<1x1x32xf32, #tpu.memory_space<vmem>>, %arg17: memref<16x32xf32, #tpu.memory_space<vmem>>, %arg18: memref<16x32xf32, #tpu.memory_space<vmem>>, %arg19: memref<16x96xf32, #tpu.memory_space<vmem>>, %arg20: memref<8x32xf32, #tpu.memory_space<vmem>>, %arg21: memref<16x32xf32, #tpu.memory_space<vmem>>, %arg22: memref<16x32xf32, #tpu.memory_space<vmem>>) attributes {dimension_semantics = [#tpu.dimension_semantics<parallel>, #tpu.dimension_semantics<arbitrary>, #tpu.dimension_semantics<arbitrary>], iteration_bounds = array<i64: 1, 2, 1>, scalar_prefetch = 0 : i64, scratch_operands = 5 : i64, tpu.core_type = #tpu.core_type<tc>, window_params = [{transform_indices = @transform_0, window_bounds = array<i64: 16, 32>}, {transform_indices = @transform_1, window_bounds = array<i64: 2, 1, 8>}, {transform_indices = @transform_2, window_bounds = array<i64: 1, 32, 96>}, {transform_indices = @transform_3, window_bounds = array<i64: 1, 1, 96>}, {transform_indices = @transform_4, window_bounds = array<i64: 1, 32, 32>}, {transform_indices = @transform_5, window_bounds = array<i64: 1, 1, 32>}, {transform_indices = @transform_6, window_bounds = array<i64: 1, 1, 32>}, {transform_indices = @transform_7, window_bounds = array<i64: 1, 1, 32>}, {transform_indices = @transform_8, window_bounds = array<i64: 1, 1, 32>}, {transform_indices = @transform_9, window_bounds = array<i64: 1, 1, 32>}, {transform_indices = @transform_10, window_bounds = array<i64: 1, 32, 64>}, {transform_indices = @transform_11, window_bounds = array<i64: 1, 1, 64>}, {transform_indices = @transform_12, window_bounds = array<i64: 1, 64, 32>}, {transform_indices = @transform_13, window_bounds = array<i64: 1, 1, 32>}, {transform_indices = @transform_14, window_bounds = array<i64: 16, 32>}]} {
    %c0_i32 = arith.constant 0 : i32
    %0 = arith.cmpi eq, %arg1, %c0_i32 : i32
    %c0_i32_0 = arith.constant 0 : i32
    %1 = arith.cmpi eq, %arg2, %c0_i32_0 : i32
    %2 = arith.andi %0, %1 : i1
    %3 = arith.extui %2 : i1 to i32
    %c0_i32_1 = arith.constant 0 : i32
    %4 = arith.cmpi ne, %3, %c0_i32_1 : i32
    scf.if %4 {
      %c0_24 = arith.constant 0 : index
      %c0_25 = arith.constant 0 : index
      %32 = vector.load %arg3[%c0_24, %c0_25] : memref<16x32xf32, #tpu.memory_space<vmem>>, vector<16x32xf32>
      %c0_26 = arith.constant 0 : index
      %c0_27 = arith.constant 0 : index
      %33 = vector.load %arg18[%c0_26, %c0_27] : memref<16x32xf32, #tpu.memory_space<vmem>>, vector<16x32xf32>
      tpu.vector_store %arg18[%c0_26, %c0_27], %32 {strides = array<i32>} : memref<16x32xf32, #tpu.memory_space<vmem>>, vector<16x32xf32>,
    } else {
    }
    %c0_i32_2 = arith.constant 0 : i32
    %5 = arith.cmpi eq, %arg2, %c0_i32_2 : i32
    %6 = arith.extui %5 : i1 to i32
    %c0_i32_3 = arith.constant 0 : i32
    %7 = arith.cmpi ne, %6, %c0_i32_3 : i32
    scf.if %7 {
      %c0_24 = arith.constant 0 : index
      %c0_25 = arith.constant 0 : index
      %32 = vector.load %arg18[%c0_24, %c0_25] : memref<16x32xf32, #tpu.memory_space<vmem>>, vector<16x32xf32>
      %c0_26 = arith.constant 0 : index
      %c0_27 = arith.constant 0 : index
      %c0_28 = arith.constant 0 : index
      %33 = vector.load %arg9[%c0_26, %c0_27, %c0_28] : memref<1x1x32xf32, #tpu.memory_space<vmem>>, vector<1x1x32xf32>
      %34 = vector.shape_cast %33 : vector<1x1x32xf32> to vector<1x32xf32>
      %c0_29 = arith.constant 0 : index
      %c0_30 = arith.constant 0 : index
      %c0_31 = arith.constant 0 : index
      %35 = vector.load %arg10[%c0_29, %c0_30, %c0_31] : memref<1x1x32xf32, #tpu.memory_space<vmem>>, vector<1x1x32xf32>
      %36 = vector.shape_cast %35 : vector<1x1x32xf32> to vector<1x32xf32>
      %cst_32 = arith.constant dense<0.000000e+00> : vector<16xf32>
      %37 = vector.multi_reduction <add>, %32, %cst_32 [1] : vector<16x32xf32> to vector<16xf32>
      %38 = vector.shape_cast %37 : vector<16xf32> to vector<16x1xf32>
      %cst_33 = arith.constant 3.200000e+01 : f32
      %39 = vector.broadcast %cst_33 : f32 to vector<16x1xf32>
      %40 = arith.divf %38, %39 : vector<16x1xf32>
      %41 = arith.mulf %32, %32 : vector<16x32xf32>
      %cst_34 = arith.constant dense<0.000000e+00> : vector<16xf32>
      %42 = vector.multi_reduction <add>, %41, %cst_34 [1] : vector<16x32xf32> to vector<16xf32>
      %43 = vector.shape_cast %42 : vector<16xf32> to vector<16x1xf32>
      %cst_35 = arith.constant 3.200000e+01 : f32
      %44 = vector.broadcast %cst_35 : f32 to vector<16x1xf32>
      %45 = arith.divf %43, %44 : vector<16x1xf32>
      %46 = arith.mulf %40, %40 : vector<16x1xf32>
      %47 = arith.subf %45, %46 : vector<16x1xf32>
      %cst_36 = arith.constant 0.000000e+00 : f32
      %48 = vector.broadcast %cst_36 : f32 to vector<16x1xf32>
      %49 = arith.maximumf %47, %48 : vector<16x1xf32>
      %50 = vector.broadcast %40 : vector<16x1xf32> to vector<16x32xf32>
      %51 = arith.subf %32, %50 : vector<16x32xf32>
      %cst_37 = arith.constant 9.99999974E-6 : f32
      %52 = vector.broadcast %cst_37 : f32 to vector<16x1xf32>
      %53 = arith.addf %49, %52 : vector<16x1xf32>
      %54 = math.rsqrt %53 : vector<16x1xf32>
      %55 = vector.broadcast %54 : vector<16x1xf32> to vector<16x32xf32>
      %56 = arith.mulf %51, %55 : vector<16x32xf32>
      %57 = vector.broadcast %34 : vector<1x32xf32> to vector<16x32xf32>
      %58 = arith.mulf %56, %57 : vector<16x32xf32>
      %59 = vector.broadcast %36 : vector<1x32xf32> to vector<16x32xf32>
      %60 = arith.addf %58, %59 : vector<16x32xf32>
      %c0_38 = arith.constant 0 : index
      %c0_39 = arith.constant 0 : index
      %c0_40 = arith.constant 0 : index
      %61 = vector.load %arg5[%c0_38, %c0_39, %c0_40] : memref<1x32x96xf32, #tpu.memory_space<vmem>>, vector<1x32x96xf32>
      %62 = vector.shape_cast %61 : vector<1x32x96xf32> to vector<32x96xf32>
      %cst_41 = arith.constant dense<0.000000e+00> : vector<16x96xf32>
      %63 = tpu.matmul %60, %62, %cst_41 {dimension_numbers = #tpu.dot_dimension_numbers<[1], [0], [0], [1], [0, 0, 1, 1], [], []>} : vector<16x32xf32>, vector<32x96xf32>, vector<16x96xf32> -> vector<16x96xf32>
      %c0_42 = arith.constant 0 : index
      %c0_43 = arith.constant 0 : index
      %c0_44 = arith.constant 0 : index
      %64 = vector.load %arg6[%c0_42, %c0_43, %c0_44] : memref<1x1x96xf32, #tpu.memory_space<vmem>>, vector<1x1x96xf32>
      %65 = vector.shape_cast %64 : vector<1x1x96xf32> to vector<1x96xf32>
      %66 = vector.broadcast %65 : vector<1x96xf32> to vector<16x96xf32>
      %67 = arith.addf %63, %66 : vector<16x96xf32>
      %c0_45 = arith.constant 0 : index
      %c0_46 = arith.constant 0 : index
      %68 = vector.load %arg19[%c0_45, %c0_46] : memref<16x96xf32, #tpu.memory_space<vmem>>, vector<16x96xf32>
      tpu.vector_store %arg19[%c0_45, %c0_46], %67 {strides = array<i32>} : memref<16x96xf32, #tpu.memory_space<vmem>>, vector<16x96xf32>,
      %c0_47 = arith.constant 0 : index
      %c0_48 = arith.constant 0 : index
      %c0_49 = arith.constant 0 : index
      %69 = vector.load %arg4[%c0_47, %c0_48, %c0_49] : memref<2x1x8xf32, #tpu.memory_space<vmem>>, vector<1x1x8xf32>
      %70 = vector.shape_cast %69 : vector<1x1x8xf32> to vector<1x8xf32>
      %c0_50 = arith.constant 0 : index
      %c0_51 = arith.constant 0 : index
      %71 = vector.load %arg19[%c0_50, %c0_51] : memref<16x96xf32, #tpu.memory_space<vmem>>, vector<8x8xf32>
      %c0_52 = arith.constant 0 : index
      %c32 = arith.constant 32 : index
      %72 = vector.load %arg19[%c0_52, %c32] : memref<16x96xf32, #tpu.memory_space<vmem>>, vector<8x8xf32>
      %c0_53 = arith.constant 0 : index
      %c64 = arith.constant 64 : index
      %73 = vector.load %arg19[%c0_53, %c64] : memref<16x96xf32, #tpu.memory_space<vmem>>, vector<8x8xf32>
      %cst_54 = arith.constant dense<0.000000e+00> : vector<8x8xf32>
      %74 = tpu.matmul %71, %72, %cst_54 {dimension_numbers = #tpu.dot_dimension_numbers<[1], [1], [0], [0], [0, 0, 1, 0], [], []>} : vector<8x8xf32>, vector<8x8xf32>, vector<8x8xf32> -> vector<8x8xf32>
      %75 = vector.broadcast %70 : vector<1x8xf32> to vector<8x8xf32>
      %76 = arith.addf %74, %75 : vector<8x8xf32>
      %cst_55 = arith.constant dense<0xFF800000> : vector<8xf32>
      %77 = vector.multi_reduction <maximumf>, %76, %cst_55 [1] : vector<8x8xf32> to vector<8xf32>
      %78 = vector.shape_cast %77 : vector<8xf32> to vector<8x1xf32>
      %79 = vector.broadcast %78 : vector<8x1xf32> to vector<8x8xf32>
      %80 = arith.subf %76, %79 : vector<8x8xf32>
      %81 = math.exp %80 : vector<8x8xf32>
      %cst_56 = arith.constant dense<0.000000e+00> : vector<8xf32>
      %82 = vector.multi_reduction <add>, %81, %cst_56 [1] : vector<8x8xf32> to vector<8xf32>
      %83 = vector.shape_cast %82 : vector<8xf32> to vector<8x1xf32>
      %84 = vector.broadcast %83 : vector<8x1xf32> to vector<8x8xf32>
      %85 = arith.divf %81, %84 : vector<8x8xf32>
      %cst_57 = arith.constant dense<0.000000e+00> : vector<8x8xf32>
      %86 = tpu.matmul %85, %73, %cst_57 {dimension_numbers = #tpu.dot_dimension_numbers<[1], [0], [0], [1], [0, 0, 1, 1], [], []>} : vector<8x8xf32>, vector<8x8xf32>, vector<8x8xf32> -> vector<8x8xf32>
      %c0_58 = arith.constant 0 : index
      %c0_59 = arith.constant 0 : index
      %87 = vector.load %arg20[%c0_58, %c0_59] : memref<8x32xf32, #tpu.memory_space<vmem>>, vector<8x8xf32>
      tpu.vector_store %arg20[%c0_58, %c0_59], %86 {strides = array<i32>} : memref<8x32xf32, #tpu.memory_space<vmem>>, vector<8x8xf32>,
      %c0_60 = arith.constant 0 : index
      %c8 = arith.constant 8 : index
      %88 = vector.load %arg19[%c0_60, %c8] : memref<16x96xf32, #tpu.memory_space<vmem>>, vector<8x8xf32>
      %c0_61 = arith.constant 0 : index
      %c40 = arith.constant 40 : index
      %89 = vector.load %arg19[%c0_61, %c40] : memref<16x96xf32, #tpu.memory_space<vmem>>, vector<8x8xf32>
      %c0_62 = arith.constant 0 : index
      %c72 = arith.constant 72 : index
      %90 = vector.load %arg19[%c0_62, %c72] : memref<16x96xf32, #tpu.memory_space<vmem>>, vector<8x8xf32>
      %cst_63 = arith.constant dense<0.000000e+00> : vector<8x8xf32>
      %91 = tpu.matmul %88, %89, %cst_63 {dimension_numbers = #tpu.dot_dimension_numbers<[1], [1], [0], [0], [0, 0, 1, 0], [], []>} : vector<8x8xf32>, vector<8x8xf32>, vector<8x8xf32> -> vector<8x8xf32>
      %92 = vector.broadcast %70 : vector<1x8xf32> to vector<8x8xf32>
      %93 = arith.addf %91, %92 : vector<8x8xf32>
      %cst_64 = arith.constant dense<0xFF800000> : vector<8xf32>
      %94 = vector.multi_reduction <maximumf>, %93, %cst_64 [1] : vector<8x8xf32> to vector<8xf32>
      %95 = vector.shape_cast %94 : vector<8xf32> to vector<8x1xf32>
      %96 = vector.broadcast %95 : vector<8x1xf32> to vector<8x8xf32>
      %97 = arith.subf %93, %96 : vector<8x8xf32>
      %98 = math.exp %97 : vector<8x8xf32>
      %cst_65 = arith.constant dense<0.000000e+00> : vector<8xf32>
      %99 = vector.multi_reduction <add>, %98, %cst_65 [1] : vector<8x8xf32> to vector<8xf32>
      %100 = vector.shape_cast %99 : vector<8xf32> to vector<8x1xf32>
      %101 = vector.broadcast %100 : vector<8x1xf32> to vector<8x8xf32>
      %102 = arith.divf %98, %101 : vector<8x8xf32>
      %cst_66 = arith.constant dense<0.000000e+00> : vector<8x8xf32>
      %103 = tpu.matmul %102, %90, %cst_66 {dimension_numbers = #tpu.dot_dimension_numbers<[1], [0], [0], [1], [0, 0, 1, 1], [], []>} : vector<8x8xf32>, vector<8x8xf32>, vector<8x8xf32> -> vector<8x8xf32>
      %c0_67 = arith.constant 0 : index
      %c8_68 = arith.constant 8 : index
      %104 = vector.load %arg20[%c0_67, %c8_68] : memref<8x32xf32, #tpu.memory_space<vmem>>, vector<8x8xf32>
      tpu.vector_store %arg20[%c0_67, %c8_68], %103 {strides = array<i32>} : memref<8x32xf32, #tpu.memory_space<vmem>>, vector<8x8xf32>,
      %c0_69 = arith.constant 0 : index
      %c16 = arith.constant 16 : index
      %105 = vector.load %arg19[%c0_69, %c16] : memref<16x96xf32, #tpu.memory_space<vmem>>, vector<8x8xf32>
      %c0_70 = arith.constant 0 : index
      %c48 = arith.constant 48 : index
      %106 = vector.load %arg19[%c0_70, %c48] : memref<16x96xf32, #tpu.memory_space<vmem>>, vector<8x8xf32>
      %c0_71 = arith.constant 0 : index
      %c80 = arith.constant 80 : index
      %107 = vector.load %arg19[%c0_71, %c80] : memref<16x96xf32, #tpu.memory_space<vmem>>, vector<8x8xf32>
      %cst_72 = arith.constant dense<0.000000e+00> : vector<8x8xf32>
      %108 = tpu.matmul %105, %106, %cst_72 {dimension_numbers = #tpu.dot_dimension_numbers<[1], [1], [0], [0], [0, 0, 1, 0], [], []>} : vector<8x8xf32>, vector<8x8xf32>, vector<8x8xf32> -> vector<8x8xf32>
      %109 = vector.broadcast %70 : vector<1x8xf32> to vector<8x8xf32>
      %110 = arith.addf %108, %109 : vector<8x8xf32>
      %cst_73 = arith.constant dense<0xFF800000> : vector<8xf32>
      %111 = vector.multi_reduction <maximumf>, %110, %cst_73 [1] : vector<8x8xf32> to vector<8xf32>
      %112 = vector.shape_cast %111 : vector<8xf32> to vector<8x1xf32>
      %113 = vector.broadcast %112 : vector<8x1xf32> to vector<8x8xf32>
      %114 = arith.subf %110, %113 : vector<8x8xf32>
      %115 = math.exp %114 : vector<8x8xf32>
      %cst_74 = arith.constant dense<0.000000e+00> : vector<8xf32>
      %116 = vector.multi_reduction <add>, %115, %cst_74 [1] : vector<8x8xf32> to vector<8xf32>
      %117 = vector.shape_cast %116 : vector<8xf32> to vector<8x1xf32>
      %118 = vector.broadcast %117 : vector<8x1xf32> to vector<8x8xf32>
      %119 = arith.divf %115, %118 : vector<8x8xf32>
      %cst_75 = arith.constant dense<0.000000e+00> : vector<8x8xf32>
      %120 = tpu.matmul %119, %107, %cst_75 {dimension_numbers = #tpu.dot_dimension_numbers<[1], [0], [0], [1], [0, 0, 1, 1], [], []>} : vector<8x8xf32>, vector<8x8xf32>, vector<8x8xf32> -> vector<8x8xf32>
      %c0_76 = arith.constant 0 : index
      %c16_77 = arith.constant 16 : index
      %121 = vector.load %arg20[%c0_76, %c16_77] : memref<8x32xf32, #tpu.memory_space<vmem>>, vector<8x8xf32>
      tpu.vector_store %arg20[%c0_76, %c16_77], %120 {strides = array<i32>} : memref<8x32xf32, #tpu.memory_space<vmem>>, vector<8x8xf32>,
      %c0_78 = arith.constant 0 : index
      %c24 = arith.constant 24 : index
      %122 = vector.load %arg19[%c0_78, %c24] : memref<16x96xf32, #tpu.memory_space<vmem>>, vector<8x8xf32>
      %c0_79 = arith.constant 0 : index
      %c56 = arith.constant 56 : index
      %123 = vector.load %arg19[%c0_79, %c56] : memref<16x96xf32, #tpu.memory_space<vmem>>, vector<8x8xf32>
      %c0_80 = arith.constant 0 : index
      %c88 = arith.constant 88 : index
      %124 = vector.load %arg19[%c0_80, %c88] : memref<16x96xf32, #tpu.memory_space<vmem>>, vector<8x8xf32>
      %cst_81 = arith.constant dense<0.000000e+00> : vector<8x8xf32>
      %125 = tpu.matmul %122, %123, %cst_81 {dimension_numbers = #tpu.dot_dimension_numbers<[1], [1], [0], [0], [0, 0, 1, 0], [], []>} : vector<8x8xf32>, vector<8x8xf32>, vector<8x8xf32> -> vector<8x8xf32>
      %126 = vector.broadcast %70 : vector<1x8xf32> to vector<8x8xf32>
      %127 = arith.addf %125, %126 : vector<8x8xf32>
      %cst_82 = arith.constant dense<0xFF800000> : vector<8xf32>
      %128 = vector.multi_reduction <maximumf>, %127, %cst_82 [1] : vector<8x8xf32> to vector<8xf32>
      %129 = vector.shape_cast %128 : vector<8xf32> to vector<8x1xf32>
      %130 = vector.broadcast %129 : vector<8x1xf32> to vector<8x8xf32>
      %131 = arith.subf %127, %130 : vector<8x8xf32>
      %132 = math.exp %131 : vector<8x8xf32>
      %cst_83 = arith.constant dense<0.000000e+00> : vector<8xf32>
      %133 = vector.multi_reduction <add>, %132, %cst_83 [1] : vector<8x8xf32> to vector<8xf32>
      %134 = vector.shape_cast %133 : vector<8xf32> to vector<8x1xf32>
      %135 = vector.broadcast %134 : vector<8x1xf32> to vector<8x8xf32>
      %136 = arith.divf %132, %135 : vector<8x8xf32>
      %cst_84 = arith.constant dense<0.000000e+00> : vector<8x8xf32>
      %137 = tpu.matmul %136, %124, %cst_84 {dimension_numbers = #tpu.dot_dimension_numbers<[1], [0], [0], [1], [0, 0, 1, 1], [], []>} : vector<8x8xf32>, vector<8x8xf32>, vector<8x8xf32> -> vector<8x8xf32>
      %c0_85 = arith.constant 0 : index
      %c24_86 = arith.constant 24 : index
      %138 = vector.load %arg20[%c0_85, %c24_86] : memref<8x32xf32, #tpu.memory_space<vmem>>, vector<8x8xf32>
      tpu.vector_store %arg20[%c0_85, %c24_86], %137 {strides = array<i32>} : memref<8x32xf32, #tpu.memory_space<vmem>>, vector<8x8xf32>,
      %c0_87 = arith.constant 0 : index
      %c0_88 = arith.constant 0 : index
      %139 = vector.load %arg20[%c0_87, %c0_88] : memref<8x32xf32, #tpu.memory_space<vmem>>, vector<8x32xf32>
      %c0_89 = arith.constant 0 : index
      %c0_90 = arith.constant 0 : index
      %c0_91 = arith.constant 0 : index
      %140 = vector.load %arg7[%c0_89, %c0_90, %c0_91] : memref<1x32x32xf32, #tpu.memory_space<vmem>>, vector<1x32x32xf32>
      %141 = vector.shape_cast %140 : vector<1x32x32xf32> to vector<32x32xf32>
      %cst_92 = arith.constant dense<0.000000e+00> : vector<8x32xf32>
      %142 = tpu.matmul %139, %141, %cst_92 {dimension_numbers = #tpu.dot_dimension_numbers<[1], [0], [0], [1], [0, 0, 1, 1], [], []>} : vector<8x32xf32>, vector<32x32xf32>, vector<8x32xf32> -> vector<8x32xf32>
      %c0_93 = arith.constant 0 : index
      %c0_94 = arith.constant 0 : index
      %143 = vector.load %arg18[%c0_93, %c0_94] : memref<16x32xf32, #tpu.memory_space<vmem>>, vector<8x32xf32>
      %144 = arith.addf %143, %142 : vector<8x32xf32>
      %c0_95 = arith.constant 0 : index
      %c0_96 = arith.constant 0 : index
      %c0_97 = arith.constant 0 : index
      %145 = vector.load %arg8[%c0_95, %c0_96, %c0_97] : memref<1x1x32xf32, #tpu.memory_space<vmem>>, vector<1x1x32xf32>
      %146 = vector.shape_cast %145 : vector<1x1x32xf32> to vector<1x32xf32>
      %147 = vector.broadcast %146 : vector<1x32xf32> to vector<8x32xf32>
      %148 = arith.addf %144, %147 : vector<8x32xf32>
      %c0_98 = arith.constant 0 : index
      %c0_99 = arith.constant 0 : index
      %149 = vector.load %arg18[%c0_98, %c0_99] : memref<16x32xf32, #tpu.memory_space<vmem>>, vector<8x32xf32>
      tpu.vector_store %arg18[%c0_98, %c0_99], %148 {strides = array<i32>} : memref<16x32xf32, #tpu.memory_space<vmem>>, vector<8x32xf32>,
      %c1 = arith.constant 1 : index
      %c0_100 = arith.constant 0 : index
      %c0_101 = arith.constant 0 : index
      %150 = vector.load %arg4[%c1, %c0_100, %c0_101] : memref<2x1x8xf32, #tpu.memory_space<vmem>>, vector<1x1x8xf32>
      %151 = vector.shape_cast %150 : vector<1x1x8xf32> to vector<1x8xf32>
      %c8_102 = arith.constant 8 : index
      %c0_103 = arith.constant 0 : index
      %152 = vector.load %arg19[%c8_102, %c0_103] : memref<16x96xf32, #tpu.memory_space<vmem>>, vector<8x8xf32>
      %c8_104 = arith.constant 8 : index
      %c32_105 = arith.constant 32 : index
      %153 = vector.load %arg19[%c8_104, %c32_105] : memref<16x96xf32, #tpu.memory_space<vmem>>, vector<8x8xf32>
      %c8_106 = arith.constant 8 : index
      %c64_107 = arith.constant 64 : index
      %154 = vector.load %arg19[%c8_106, %c64_107] : memref<16x96xf32, #tpu.memory_space<vmem>>, vector<8x8xf32>
      %cst_108 = arith.constant dense<0.000000e+00> : vector<8x8xf32>
      %155 = tpu.matmul %152, %153, %cst_108 {dimension_numbers = #tpu.dot_dimension_numbers<[1], [1], [0], [0], [0, 0, 1, 0], [], []>} : vector<8x8xf32>, vector<8x8xf32>, vector<8x8xf32> -> vector<8x8xf32>
      %156 = vector.broadcast %151 : vector<1x8xf32> to vector<8x8xf32>
      %157 = arith.addf %155, %156 : vector<8x8xf32>
      %cst_109 = arith.constant dense<0xFF800000> : vector<8xf32>
      %158 = vector.multi_reduction <maximumf>, %157, %cst_109 [1] : vector<8x8xf32> to vector<8xf32>
      %159 = vector.shape_cast %158 : vector<8xf32> to vector<8x1xf32>
      %160 = vector.broadcast %159 : vector<8x1xf32> to vector<8x8xf32>
      %161 = arith.subf %157, %160 : vector<8x8xf32>
      %162 = math.exp %161 : vector<8x8xf32>
      %cst_110 = arith.constant dense<0.000000e+00> : vector<8xf32>
      %163 = vector.multi_reduction <add>, %162, %cst_110 [1] : vector<8x8xf32> to vector<8xf32>
      %164 = vector.shape_cast %163 : vector<8xf32> to vector<8x1xf32>
      %165 = vector.broadcast %164 : vector<8x1xf32> to vector<8x8xf32>
      %166 = arith.divf %162, %165 : vector<8x8xf32>
      %cst_111 = arith.constant dense<0.000000e+00> : vector<8x8xf32>
      %167 = tpu.matmul %166, %154, %cst_111 {dimension_numbers = #tpu.dot_dimension_numbers<[1], [0], [0], [1], [0, 0, 1, 1], [], []>} : vector<8x8xf32>, vector<8x8xf32>, vector<8x8xf32> -> vector<8x8xf32>
      %c0_112 = arith.constant 0 : index
      %c0_113 = arith.constant 0 : index
      %168 = vector.load %arg20[%c0_112, %c0_113] : memref<8x32xf32, #tpu.memory_space<vmem>>, vector<8x8xf32>
      tpu.vector_store %arg20[%c0_112, %c0_113], %167 {strides = array<i32>} : memref<8x32xf32, #tpu.memory_space<vmem>>, vector<8x8xf32>,
      %c8_114 = arith.constant 8 : index
      %c8_115 = arith.constant 8 : index
      %169 = vector.load %arg19[%c8_114, %c8_115] : memref<16x96xf32, #tpu.memory_space<vmem>>, vector<8x8xf32>
      %c8_116 = arith.constant 8 : index
      %c40_117 = arith.constant 40 : index
      %170 = vector.load %arg19[%c8_116, %c40_117] : memref<16x96xf32, #tpu.memory_space<vmem>>, vector<8x8xf32>
      %c8_118 = arith.constant 8 : index
      %c72_119 = arith.constant 72 : index
      %171 = vector.load %arg19[%c8_118, %c72_119] : memref<16x96xf32, #tpu.memory_space<vmem>>, vector<8x8xf32>
      %cst_120 = arith.constant dense<0.000000e+00> : vector<8x8xf32>
      %172 = tpu.matmul %169, %170, %cst_120 {dimension_numbers = #tpu.dot_dimension_numbers<[1], [1], [0], [0], [0, 0, 1, 0], [], []>} : vector<8x8xf32>, vector<8x8xf32>, vector<8x8xf32> -> vector<8x8xf32>
      %173 = vector.broadcast %151 : vector<1x8xf32> to vector<8x8xf32>
      %174 = arith.addf %172, %173 : vector<8x8xf32>
      %cst_121 = arith.constant dense<0xFF800000> : vector<8xf32>
      %175 = vector.multi_reduction <maximumf>, %174, %cst_121 [1] : vector<8x8xf32> to vector<8xf32>
      %176 = vector.shape_cast %175 : vector<8xf32> to vector<8x1xf32>
      %177 = vector.broadcast %176 : vector<8x1xf32> to vector<8x8xf32>
      %178 = arith.subf %174, %177 : vector<8x8xf32>
      %179 = math.exp %178 : vector<8x8xf32>
      %cst_122 = arith.constant dense<0.000000e+00> : vector<8xf32>
      %180 = vector.multi_reduction <add>, %179, %cst_122 [1] : vector<8x8xf32> to vector<8xf32>
      %181 = vector.shape_cast %180 : vector<8xf32> to vector<8x1xf32>
      %182 = vector.broadcast %181 : vector<8x1xf32> to vector<8x8xf32>
      %183 = arith.divf %179, %182 : vector<8x8xf32>
      %cst_123 = arith.constant dense<0.000000e+00> : vector<8x8xf32>
      %184 = tpu.matmul %183, %171, %cst_123 {dimension_numbers = #tpu.dot_dimension_numbers<[1], [0], [0], [1], [0, 0, 1, 1], [], []>} : vector<8x8xf32>, vector<8x8xf32>, vector<8x8xf32> -> vector<8x8xf32>
      %c0_124 = arith.constant 0 : index
      %c8_125 = arith.constant 8 : index
      %185 = vector.load %arg20[%c0_124, %c8_125] : memref<8x32xf32, #tpu.memory_space<vmem>>, vector<8x8xf32>
      tpu.vector_store %arg20[%c0_124, %c8_125], %184 {strides = array<i32>} : memref<8x32xf32, #tpu.memory_space<vmem>>, vector<8x8xf32>,
      %c8_126 = arith.constant 8 : index
      %c16_127 = arith.constant 16 : index
      %186 = vector.load %arg19[%c8_126, %c16_127] : memref<16x96xf32, #tpu.memory_space<vmem>>, vector<8x8xf32>
      %c8_128 = arith.constant 8 : index
      %c48_129 = arith.constant 48 : index
      %187 = vector.load %arg19[%c8_128, %c48_129] : memref<16x96xf32, #tpu.memory_space<vmem>>, vector<8x8xf32>
      %c8_130 = arith.constant 8 : index
      %c80_131 = arith.constant 80 : index
      %188 = vector.load %arg19[%c8_130, %c80_131] : memref<16x96xf32, #tpu.memory_space<vmem>>, vector<8x8xf32>
      %cst_132 = arith.constant dense<0.000000e+00> : vector<8x8xf32>
      %189 = tpu.matmul %186, %187, %cst_132 {dimension_numbers = #tpu.dot_dimension_numbers<[1], [1], [0], [0], [0, 0, 1, 0], [], []>} : vector<8x8xf32>, vector<8x8xf32>, vector<8x8xf32> -> vector<8x8xf32>
      %190 = vector.broadcast %151 : vector<1x8xf32> to vector<8x8xf32>
      %191 = arith.addf %189, %190 : vector<8x8xf32>
      %cst_133 = arith.constant dense<0xFF800000> : vector<8xf32>
      %192 = vector.multi_reduction <maximumf>, %191, %cst_133 [1] : vector<8x8xf32> to vector<8xf32>
      %193 = vector.shape_cast %192 : vector<8xf32> to vector<8x1xf32>
      %194 = vector.broadcast %193 : vector<8x1xf32> to vector<8x8xf32>
      %195 = arith.subf %191, %194 : vector<8x8xf32>
      %196 = math.exp %195 : vector<8x8xf32>
      %cst_134 = arith.constant dense<0.000000e+00> : vector<8xf32>
      %197 = vector.multi_reduction <add>, %196, %cst_134 [1] : vector<8x8xf32> to vector<8xf32>
      %198 = vector.shape_cast %197 : vector<8xf32> to vector<8x1xf32>
      %199 = vector.broadcast %198 : vector<8x1xf32> to vector<8x8xf32>
      %200 = arith.divf %196, %199 : vector<8x8xf32>
      %cst_135 = arith.constant dense<0.000000e+00> : vector<8x8xf32>
      %201 = tpu.matmul %200, %188, %cst_135 {dimension_numbers = #tpu.dot_dimension_numbers<[1], [0], [0], [1], [0, 0, 1, 1], [], []>} : vector<8x8xf32>, vector<8x8xf32>, vector<8x8xf32> -> vector<8x8xf32>
      %c0_136 = arith.constant 0 : index
      %c16_137 = arith.constant 16 : index
      %202 = vector.load %arg20[%c0_136, %c16_137] : memref<8x32xf32, #tpu.memory_space<vmem>>, vector<8x8xf32>
      tpu.vector_store %arg20[%c0_136, %c16_137], %201 {strides = array<i32>} : memref<8x32xf32, #tpu.memory_space<vmem>>, vector<8x8xf32>,
      %c8_138 = arith.constant 8 : index
      %c24_139 = arith.constant 24 : index
      %203 = vector.load %arg19[%c8_138, %c24_139] : memref<16x96xf32, #tpu.memory_space<vmem>>, vector<8x8xf32>
      %c8_140 = arith.constant 8 : index
      %c56_141 = arith.constant 56 : index
      %204 = vector.load %arg19[%c8_140, %c56_141] : memref<16x96xf32, #tpu.memory_space<vmem>>, vector<8x8xf32>
      %c8_142 = arith.constant 8 : index
      %c88_143 = arith.constant 88 : index
      %205 = vector.load %arg19[%c8_142, %c88_143] : memref<16x96xf32, #tpu.memory_space<vmem>>, vector<8x8xf32>
      %cst_144 = arith.constant dense<0.000000e+00> : vector<8x8xf32>
      %206 = tpu.matmul %203, %204, %cst_144 {dimension_numbers = #tpu.dot_dimension_numbers<[1], [1], [0], [0], [0, 0, 1, 0], [], []>} : vector<8x8xf32>, vector<8x8xf32>, vector<8x8xf32> -> vector<8x8xf32>
      %207 = vector.broadcast %151 : vector<1x8xf32> to vector<8x8xf32>
      %208 = arith.addf %206, %207 : vector<8x8xf32>
      %cst_145 = arith.constant dense<0xFF800000> : vector<8xf32>
      %209 = vector.multi_reduction <maximumf>, %208, %cst_145 [1] : vector<8x8xf32> to vector<8xf32>
      %210 = vector.shape_cast %209 : vector<8xf32> to vector<8x1xf32>
      %211 = vector.broadcast %210 : vector<8x1xf32> to vector<8x8xf32>
      %212 = arith.subf %208, %211 : vector<8x8xf32>
      %213 = math.exp %212 : vector<8x8xf32>
      %cst_146 = arith.constant dense<0.000000e+00> : vector<8xf32>
      %214 = vector.multi_reduction <add>, %213, %cst_146 [1] : vector<8x8xf32> to vector<8xf32>
      %215 = vector.shape_cast %214 : vector<8xf32> to vector<8x1xf32>
      %216 = vector.broadcast %215 : vector<8x1xf32> to vector<8x8xf32>
      %217 = arith.divf %213, %216 : vector<8x8xf32>
      %cst_147 = arith.constant dense<0.000000e+00> : vector<8x8xf32>
      %218 = tpu.matmul %217, %205, %cst_147 {dimension_numbers = #tpu.dot_dimension_numbers<[1], [0], [0], [1], [0, 0, 1, 1], [], []>} : vector<8x8xf32>, vector<8x8xf32>, vector<8x8xf32> -> vector<8x8xf32>
      %c0_148 = arith.constant 0 : index
      %c24_149 = arith.constant 24 : index
      %219 = vector.load %arg20[%c0_148, %c24_149] : memref<8x32xf32, #tpu.memory_space<vmem>>, vector<8x8xf32>
      tpu.vector_store %arg20[%c0_148, %c24_149], %218 {strides = array<i32>} : memref<8x32xf32, #tpu.memory_space<vmem>>, vector<8x8xf32>,
      %c0_150 = arith.constant 0 : index
      %c0_151 = arith.constant 0 : index
      %220 = vector.load %arg20[%c0_150, %c0_151] : memref<8x32xf32, #tpu.memory_space<vmem>>, vector<8x32xf32>
      %c0_152 = arith.constant 0 : index
      %c0_153 = arith.constant 0 : index
      %c0_154 = arith.constant 0 : index
      %221 = vector.load %arg7[%c0_152, %c0_153, %c0_154] : memref<1x32x32xf32, #tpu.memory_space<vmem>>, vector<1x32x32xf32>
      %222 = vector.shape_cast %221 : vector<1x32x32xf32> to vector<32x32xf32>
      %cst_155 = arith.constant dense<0.000000e+00> : vector<8x32xf32>
      %223 = tpu.matmul %220, %222, %cst_155 {dimension_numbers = #tpu.dot_dimension_numbers<[1], [0], [0], [1], [0, 0, 1, 1], [], []>} : vector<8x32xf32>, vector<32x32xf32>, vector<8x32xf32> -> vector<8x32xf32>
      %c8_156 = arith.constant 8 : index
      %c0_157 = arith.constant 0 : index
      %224 = vector.load %arg18[%c8_156, %c0_157] : memref<16x32xf32, #tpu.memory_space<vmem>>, vector<8x32xf32>
      %225 = arith.addf %224, %223 : vector<8x32xf32>
      %c0_158 = arith.constant 0 : index
      %c0_159 = arith.constant 0 : index
      %c0_160 = arith.constant 0 : index
      %226 = vector.load %arg8[%c0_158, %c0_159, %c0_160] : memref<1x1x32xf32, #tpu.memory_space<vmem>>, vector<1x1x32xf32>
      %227 = vector.shape_cast %226 : vector<1x1x32xf32> to vector<1x32xf32>
      %228 = vector.broadcast %227 : vector<1x32xf32> to vector<8x32xf32>
      %229 = arith.addf %225, %228 : vector<8x32xf32>
      %c8_161 = arith.constant 8 : index
      %c0_162 = arith.constant 0 : index
      %230 = vector.load %arg18[%c8_161, %c0_162] : memref<16x32xf32, #tpu.memory_space<vmem>>, vector<8x32xf32>
      tpu.vector_store %arg18[%c8_161, %c0_162], %229 {strides = array<i32>} : memref<16x32xf32, #tpu.memory_space<vmem>>, vector<8x32xf32>,
      %c0_163 = arith.constant 0 : index
      %c0_164 = arith.constant 0 : index
      %231 = vector.load %arg18[%c0_163, %c0_164] : memref<16x32xf32, #tpu.memory_space<vmem>>, vector<16x32xf32>
      %c0_165 = arith.constant 0 : index
      %c0_166 = arith.constant 0 : index
      %c0_167 = arith.constant 0 : index
      %232 = vector.load %arg11[%c0_165, %c0_166, %c0_167] : memref<1x1x32xf32, #tpu.memory_space<vmem>>, vector<1x1x32xf32>
      %233 = vector.shape_cast %232 : vector<1x1x32xf32> to vector<1x32xf32>
      %c0_168 = arith.constant 0 : index
      %c0_169 = arith.constant 0 : index
      %c0_170 = arith.constant 0 : index
      %234 = vector.load %arg12[%c0_168, %c0_169, %c0_170] : memref<1x1x32xf32, #tpu.memory_space<vmem>>, vector<1x1x32xf32>
      %235 = vector.shape_cast %234 : vector<1x1x32xf32> to vector<1x32xf32>
      %cst_171 = arith.constant dense<0.000000e+00> : vector<16xf32>
      %236 = vector.multi_reduction <add>, %231, %cst_171 [1] : vector<16x32xf32> to vector<16xf32>
      %237 = vector.shape_cast %236 : vector<16xf32> to vector<16x1xf32>
      %cst_172 = arith.constant 3.200000e+01 : f32
      %238 = vector.broadcast %cst_172 : f32 to vector<16x1xf32>
      %239 = arith.divf %237, %238 : vector<16x1xf32>
      %240 = arith.mulf %231, %231 : vector<16x32xf32>
      %cst_173 = arith.constant dense<0.000000e+00> : vector<16xf32>
      %241 = vector.multi_reduction <add>, %240, %cst_173 [1] : vector<16x32xf32> to vector<16xf32>
      %242 = vector.shape_cast %241 : vector<16xf32> to vector<16x1xf32>
      %cst_174 = arith.constant 3.200000e+01 : f32
      %243 = vector.broadcast %cst_174 : f32 to vector<16x1xf32>
      %244 = arith.divf %242, %243 : vector<16x1xf32>
      %245 = arith.mulf %239, %239 : vector<16x1xf32>
      %246 = arith.subf %244, %245 : vector<16x1xf32>
      %cst_175 = arith.constant 0.000000e+00 : f32
      %247 = vector.broadcast %cst_175 : f32 to vector<16x1xf32>
      %248 = arith.maximumf %246, %247 : vector<16x1xf32>
      %249 = vector.broadcast %239 : vector<16x1xf32> to vector<16x32xf32>
      %250 = arith.subf %231, %249 : vector<16x32xf32>
      %cst_176 = arith.constant 9.99999974E-6 : f32
      %251 = vector.broadcast %cst_176 : f32 to vector<16x1xf32>
      %252 = arith.addf %248, %251 : vector<16x1xf32>
      %253 = math.rsqrt %252 : vector<16x1xf32>
      %254 = vector.broadcast %253 : vector<16x1xf32> to vector<16x32xf32>
      %255 = arith.mulf %250, %254 : vector<16x32xf32>
      %256 = vector.broadcast %233 : vector<1x32xf32> to vector<16x32xf32>
      %257 = arith.mulf %255, %256 : vector<16x32xf32>
      %258 = vector.broadcast %235 : vector<1x32xf32> to vector<16x32xf32>
      %259 = arith.addf %257, %258 : vector<16x32xf32>
      %c0_177 = arith.constant 0 : index
      %c0_178 = arith.constant 0 : index
      %260 = vector.load %arg21[%c0_177, %c0_178] : memref<16x32xf32, #tpu.memory_space<vmem>>, vector<16x32xf32>
      tpu.vector_store %arg21[%c0_177, %c0_178], %259 {strides = array<i32>} : memref<16x32xf32, #tpu.memory_space<vmem>>, vector<16x32xf32>,
      %cst_179 = arith.constant 0.000000e+00 : f32
      %261 = vector.broadcast %cst_179 : f32 to vector<16x32xf32>
      %c0_180 = arith.constant 0 : index
      %c0_181 = arith.constant 0 : index
      %262 = vector.load %arg22[%c0_180, %c0_181] : memref<16x32xf32, #tpu.memory_space<vmem>>, vector<16x32xf32>
      tpu.vector_store %arg22[%c0_180, %c0_181], %261 {strides = array<i32>} : memref<16x32xf32, #tpu.memory_space<vmem>>, vector<16x32xf32>,
    } else {
    }
    %c0 = arith.constant 0 : index
    %c0_4 = arith.constant 0 : index
    %8 = vector.load %arg21[%c0, %c0_4] : memref<16x32xf32, #tpu.memory_space<vmem>>, vector<16x32xf32>
    %c0_5 = arith.constant 0 : index
    %c0_6 = arith.constant 0 : index
    %c0_7 = arith.constant 0 : index
    %9 = vector.load %arg13[%c0_5, %c0_6, %c0_7] : memref<1x32x64xf32, #tpu.memory_space<vmem>>, vector<1x32x64xf32>
    %10 = vector.shape_cast %9 : vector<1x32x64xf32> to vector<32x64xf32>
    %cst = arith.constant dense<0.000000e+00> : vector<16x64xf32>
    %11 = tpu.matmul %8, %10, %cst {dimension_numbers = #tpu.dot_dimension_numbers<[1], [0], [0], [1], [0, 0, 1, 1], [], []>} : vector<16x32xf32>, vector<32x64xf32>, vector<16x64xf32> -> vector<16x64xf32>
    %c0_8 = arith.constant 0 : index
    %c0_9 = arith.constant 0 : index
    %c0_10 = arith.constant 0 : index
    %12 = vector.load %arg14[%c0_8, %c0_9, %c0_10] : memref<1x1x64xf32, #tpu.memory_space<vmem>>, vector<1x1x64xf32>
    %13 = vector.shape_cast %12 : vector<1x1x64xf32> to vector<1x64xf32>
    %14 = vector.broadcast %13 : vector<1x64xf32> to vector<16x64xf32>
    %15 = arith.addf %11, %14 : vector<16x64xf32>
    %cst_11 = arith.constant 0.000000e+00 : f32
    %16 = vector.broadcast %cst_11 : f32 to vector<16x64xf32>
    %17 = arith.maximumf %15, %16 : vector<16x64xf32>
    %c0_12 = arith.constant 0 : index
    %c0_13 = arith.constant 0 : index
    %18 = vector.load %arg22[%c0_12, %c0_13] : memref<16x32xf32, #tpu.memory_space<vmem>>, vector<16x32xf32>
    %c0_14 = arith.constant 0 : index
    %c0_15 = arith.constant 0 : index
    %c0_16 = arith.constant 0 : index
    %19 = vector.load %arg15[%c0_14, %c0_15, %c0_16] : memref<1x64x32xf32, #tpu.memory_space<vmem>>, vector<1x64x32xf32>
    %20 = vector.shape_cast %19 : vector<1x64x32xf32> to vector<64x32xf32>
    %cst_17 = arith.constant dense<0.000000e+00> : vector<16x32xf32>
    %21 = tpu.matmul %17, %20, %cst_17 {dimension_numbers = #tpu.dot_dimension_numbers<[1], [0], [0], [1], [0, 0, 1, 1], [], []>} : vector<16x64xf32>, vector<64x32xf32>, vector<16x32xf32> -> vector<16x32xf32>
    %22 = arith.addf %18, %21 : vector<16x32xf32>
    %c0_18 = arith.constant 0 : index
    %c0_19 = arith.constant 0 : index
    %23 = vector.load %arg22[%c0_18, %c0_19] : memref<16x32xf32, #tpu.memory_space<vmem>>, vector<16x32xf32>
    tpu.vector_store %arg22[%c0_18, %c0_19], %22 {strides = array<i32>} : memref<16x32xf32, #tpu.memory_space<vmem>>, vector<16x32xf32>,
    %c0_i32_20 = arith.constant 0 : i32
    %24 = arith.cmpi eq, %arg2, %c0_i32_20 : i32
    %25 = arith.extui %24 : i1 to i32
    %c0_i32_21 = arith.constant 0 : i32
    %26 = arith.cmpi ne, %25, %c0_i32_21 : i32
    scf.if %26 {
      %c0_24 = arith.constant 0 : index
      %c0_25 = arith.constant 0 : index
      %32 = vector.load %arg18[%c0_24, %c0_25] : memref<16x32xf32, #tpu.memory_space<vmem>>, vector<16x32xf32>
      %c0_26 = arith.constant 0 : index
      %c0_27 = arith.constant 0 : index
      %33 = vector.load %arg22[%c0_26, %c0_27] : memref<16x32xf32, #tpu.memory_space<vmem>>, vector<16x32xf32>
      %34 = arith.addf %32, %33 : vector<16x32xf32>
      %c0_28 = arith.constant 0 : index
      %c0_29 = arith.constant 0 : index
      %c0_30 = arith.constant 0 : index
      %35 = vector.load %arg16[%c0_28, %c0_29, %c0_30] : memref<1x1x32xf32, #tpu.memory_space<vmem>>, vector<1x1x32xf32>
      %36 = vector.shape_cast %35 : vector<1x1x32xf32> to vector<1x32xf32>
      %37 = vector.broadcast %36 : vector<1x32xf32> to vector<16x32xf32>
      %38 = arith.addf %34, %37 : vector<16x32xf32>
      %c0_31 = arith.constant 0 : index
      %c0_32 = arith.constant 0 : index
      %39 = vector.load %arg18[%c0_31, %c0_32] : memref<16x32xf32, #tpu.memory_space<vmem>>, vector<16x32xf32>
      tpu.vector_store %arg18[%c0_31, %c0_32], %38 {strides = array<i32>} : memref<16x32xf32, #tpu.memory_space<vmem>>, vector<16x32xf32>,
    } else {
    }
    %c0_i32_22 = arith.constant 0 : i32
    %27 = arith.cmpi eq, %arg2, %c0_i32_22 : i32
    %c1_i32 = arith.constant 1 : i32
    %28 = arith.cmpi eq, %arg1, %c1_i32 : i32
    %29 = arith.andi %27, %28 : i1
    %30 = arith.extui %29 : i1 to i32
    %c0_i32_23 = arith.constant 0 : i32
    %31 = arith.cmpi ne, %30, %c0_i32_23 : i32
    scf.if %31 {
      %c0_24 = arith.constant 0 : index
      %c0_25 = arith.constant 0 : index
      %32 = vector.load %arg18[%c0_24, %c0_25] : memref<16x32xf32, #tpu.memory_space<vmem>>, vector<16x32xf32>
      %c0_26 = arith.constant 0 : index
      %c0_27 = arith.constant 0 : index
      %33 = vector.load %arg17[%c0_26, %c0_27] : memref<16x32xf32, #tpu.memory_space<vmem>>, vector<16x32xf32>
      tpu.vector_store %arg17[%c0_26, %c0_27], %32 {strides = array<i32>} : memref<16x32xf32, #tpu.memory_space<vmem>>, vector<16x32xf32>,
    } else {
    }
    return
  }
  func.func @transform_0(%arg0: i32, %arg1: i32, %arg2: i32) -> (i32, i32) {
    %c0_i32 = arith.constant 0 : i32
    %c0_i32_0 = arith.constant 0 : i32
    return %arg0, %c0_i32 : i32, i32
  }
  func.func @transform_1(%arg0: i32, %arg1: i32, %arg2: i32) -> (i32, i32, i32) {
    %c0_i32 = arith.constant 0 : i32
    %c0_i32_0 = arith.constant 0 : i32
    %c0_i32_1 = arith.constant 0 : i32
    return %arg0, %c0_i32, %c0_i32_0 : i32, i32, i32
  }
  func.func @transform_2(%arg0: i32, %arg1: i32, %arg2: i32) -> (i32, i32, i32) {
    %c0_i32 = arith.constant 0 : i32
    %c0_i32_0 = arith.constant 0 : i32
    %c0_i32_1 = arith.constant 0 : i32
    return %arg1, %c0_i32, %c0_i32_0 : i32, i32, i32
  }
  func.func @transform_3(%arg0: i32, %arg1: i32, %arg2: i32) -> (i32, i32, i32) {
    %c0_i32 = arith.constant 0 : i32
    %c0_i32_0 = arith.constant 0 : i32
    %c0_i32_1 = arith.constant 0 : i32
    return %arg1, %c0_i32, %c0_i32_0 : i32, i32, i32
  }
  func.func @transform_4(%arg0: i32, %arg1: i32, %arg2: i32) -> (i32, i32, i32) {
    %c0_i32 = arith.constant 0 : i32
    %c0_i32_0 = arith.constant 0 : i32
    %c0_i32_1 = arith.constant 0 : i32
    return %arg1, %c0_i32, %c0_i32_0 : i32, i32, i32
  }
  func.func @transform_5(%arg0: i32, %arg1: i32, %arg2: i32) -> (i32, i32, i32) {
    %c0_i32 = arith.constant 0 : i32
    %c0_i32_0 = arith.constant 0 : i32
    %c0_i32_1 = arith.constant 0 : i32
    return %arg1, %c0_i32, %c0_i32_0 : i32, i32, i32
  }
  func.func @transform_6(%arg0: i32, %arg1: i32, %arg2: i32) -> (i32, i32, i32) {
    %c0_i32 = arith.constant 0 : i32
    %c0_i32_0 = arith.constant 0 : i32
    %c0_i32_1 = arith.constant 0 : i32
    return %arg1, %c0_i32, %c0_i32_0 : i32, i32, i32
  }
  func.func @transform_7(%arg0: i32, %arg1: i32, %arg2: i32) -> (i32, i32, i32) {
    %c0_i32 = arith.constant 0 : i32
    %c0_i32_0 = arith.constant 0 : i32
    %c0_i32_1 = arith.constant 0 : i32
    return %arg1, %c0_i32, %c0_i32_0 : i32, i32, i32
  }
  func.func @transform_8(%arg0: i32, %arg1: i32, %arg2: i32) -> (i32, i32, i32) {
    %c0_i32 = arith.constant 0 : i32
    %c0_i32_0 = arith.constant 0 : i32
    %c0_i32_1 = arith.constant 0 : i32
    return %arg1, %c0_i32, %c0_i32_0 : i32, i32, i32
  }
  func.func @transform_9(%arg0: i32, %arg1: i32, %arg2: i32) -> (i32, i32, i32) {
    %c0_i32 = arith.constant 0 : i32
    %c0_i32_0 = arith.constant 0 : i32
    %c0_i32_1 = arith.constant 0 : i32
    return %arg1, %c0_i32, %c0_i32_0 : i32, i32, i32
  }
  func.func @transform_10(%arg0: i32, %arg1: i32, %arg2: i32) -> (i32, i32, i32) {
    %c0_i32 = arith.constant 0 : i32
    %c0_i32_0 = arith.constant 0 : i32
    return %arg1, %c0_i32, %arg2 : i32, i32, i32
  }
  func.func @transform_11(%arg0: i32, %arg1: i32, %arg2: i32) -> (i32, i32, i32) {
    %c0_i32 = arith.constant 0 : i32
    %c0_i32_0 = arith.constant 0 : i32
    return %arg1, %c0_i32, %arg2 : i32, i32, i32
  }
  func.func @transform_12(%arg0: i32, %arg1: i32, %arg2: i32) -> (i32, i32, i32) {
    %c0_i32 = arith.constant 0 : i32
    %c0_i32_0 = arith.constant 0 : i32
    return %arg1, %arg2, %c0_i32 : i32, i32, i32
  }
  func.func @transform_13(%arg0: i32, %arg1: i32, %arg2: i32) -> (i32, i32, i32) {
    %c0_i32 = arith.constant 0 : i32
    %c0_i32_0 = arith.constant 0 : i32
    %c0_i32_1 = arith.constant 0 : i32
    return %arg1, %c0_i32, %c0_i32_0 : i32, i32, i32
  }
  func.func @transform_14(%arg0: i32, %arg1: i32, %arg2: i32) -> (i32, i32) {
    %c0_i32 = arith.constant 0 : i32
    %c0_i32_0 = arith.constant 0 : i32
    return %arg0, %c0_i32 : i32, i32
  }
}

</mosaic_0001>

<llo_original>
// kernel: tpu_custom_call.1
$region0: #{tpu_custom_call.1}
  #allocation0 [shape = 'u32[]', space=smem, size = 0x4, offset = 0x4, fixed_abs, tag = 'smem constant byte address 0x4 - core index']
  #allocation1 [shape = 'u32[144,128]{1,0:T(1,128)}', space=vmem, size = 0x12000, scoped, tag = 'internal scratch']
  #allocation2 [shape = 'f32[16,32]{1,0:T(8,128)}', space=vmem, size = 0x2000, scoped, tag = 'scratch operand']
  #allocation3 [shape = 'f32[16,96]{1,0:T(8,128)}', space=vmem, size = 0x2000, scoped, tag = 'scratch operand']
  #allocation4 [shape = 'f32[8,32]{1,0:T(8,128)}', space=vmem, size = 0x1000, scoped, tag = 'scratch operand']
  #allocation5 [shape = 'f32[16,32]{1,0:T(8,128)}', space=vmem, size = 0x2000, scoped, tag = 'scratch operand']
  #allocation6 [shape = 'f32[16,32]{1,0:T(8,128)}', space=vmem, size = 0x2000, scoped, tag = 'scratch operand']
  %s0 = inlined_call_operand.hbm [shape: f32[16,32], index: 0, kind: input, shape index: {}]
  %s1 = inlined_call_operand.hbm [shape: f32[2,1,8], index: 1, kind: input, shape index: {}]
  %s2 = inlined_call_operand.vmem [shape: f32[2,32,96], index: 2, kind: input, shape index: {}]
  %s3 = inlined_call_operand.vmem [shape: f32[2,1,96], index: 3, kind: input, shape index: {}]
  %s4 = inlined_call_operand.vmem [shape: f32[2,32,32], index: 4, kind: input, shape index: {}]
  %s5 = inlined_call_operand.vmem [shape: f32[2,1,32], index: 5, kind: input, shape index: {}]
  %s6 = inlined_call_operand.vmem [shape: f32[2,1,32], index: 6, kind: input, shape index: {}]
  %s7 = inlined_call_operand.vmem [shape: f32[2,1,32], index: 7, kind: input, shape index: {}]
  %s8 = inlined_call_operand.vmem [shape: f32[2,1,32], index: 8, kind: input, shape index: {}]
  %s9 = inlined_call_operand.vmem [shape: f32[2,1,32], index: 9, kind: input, shape index: {}]
  %s10 = inlined_call_operand.vmem [shape: f32[2,32,64], index: 10, kind: input, shape index: {}]
  %s11 = inlined_call_operand.vmem [shape: f32[2,1,64], index: 11, kind: input, shape index: {}]
  %s12 = inlined_call_operand.vmem [shape: f32[2,64,32], index: 12, kind: input, shape index: {}]
  %s13 = inlined_call_operand.vmem [shape: f32[2,1,32], index: 13, kind: input, shape index: {}]
  %s14 = inlined_call_operand.hbm [shape: f32[16,32], index: 14, kind: output, shape index: {}]
  %s15 = sld [smem:[#allocation0]]
  $region113: #{tpu_custom_call.1} parent=0
    _
  %s17 = ssub.s32 1, %s15
  %s18 = scalar_select 0, %s17, %s15
  $region1: #{tpu_custom_call.1} parent=0
    #allocation7 [shape = 'u8[8192]{0}', space=vmem, size = 0x2000, scoped, tag = 'input window, operand 0, single buffered']
    #allocation8 [shape = 's32[2]{0}', space=sflag, size = 0x8, scoped, tag = 'scoped memory for tpu_custom_call.1']
    #allocation9 [shape = 's32[2]{0}', space=sflag, size = 0x8, scoped, tag = 'scoped memory for tpu_custom_call.1']
    #allocation10 [shape = 'u8[1024]{0}', space=vmem, size = 0x400, scoped, tag = 'input window, operand 1, single buffered']
    #allocation11 [shape = 's32[1]{0}', space=sflag, size = 0x4, scoped, tag = 'scoped memory for tpu_custom_call.1']
    #allocation12 [shape = 'u8[8192]{0}', space=vmem, size = 0x2000, scoped, tag = 'output window, operand 0, single buffered']
    %19 = vsyncpa [#allocation8], 0
    %20 = vsyncpa [#allocation11], 0
    %21 = vsyncpa [#allocation9], 0
    loop: start=0, step=1, limit=4
    $region2: #{tpu_custom_call.1} parent=1 // loop_pre_header
      _
    $region3: #{tpu_custom_call.1} parent=1 // loop_header
      %s23 = sphi 0, %s27
      %p24 = scmp.ge.s32.totalorder %s23, 4
      %s30 = sphi 0, %s49
      %s31 = sphi 0, %s45
      %s32 = sphi 0, %s41
      %s33 = sphi 0, %s30
      %s34 = sphi 0, %s31
      %s35 = sphi 0, %s32
      %s36 = sphi 0, %s33
      %s37 = sphi 0, %s34
      %s38 = sphi 0, %s35
      %s52 = sphi 0, %s54
      %s55 = sphi 0, %s52
      %s56 = sphi 0, %s55
      %s72 = sphi 0, %s56
      %s78 = sphi 0, %s80
      %s81 = sphi 0, %s78
      %s82 = sphi 0, %s81
      %s98 = sphi 0, %s82
      %s104 = sphi 0, %s106
      %s107 = sphi 0, %s104
      %s108 = sphi 0, %s107
      %s124 = sphi 0, %s108
      %s130 = sphi 0, %s132
      %s133 = sphi 0, %s130
      %s134 = sphi 0, %s133
      %s150 = sphi 0, %s134
      %s156 = sphi 0, %s158
      %s159 = sphi 0, %s156
      %s160 = sphi 0, %s159
      %s176 = sphi 0, %s160
      %s182 = sphi 0, %s184
      %s185 = sphi 0, %s182
      %s186 = sphi 0, %s185
      %s202 = sphi 0, %s186
      %s208 = sphi 0, %s210
      %s211 = sphi 0, %s208
      %s212 = sphi 0, %s211
      %s228 = sphi 0, %s212
      %s234 = sphi 0, %s236
      %s237 = sphi 0, %s234
      %s238 = sphi 0, %s237
      %s254 = sphi 0, %s238
      %s260 = sphi 0, %s262
      %s263 = sphi 0, %s260
      %s264 = sphi 0, %s263
      %s280 = sphi 0, %s264
      %s286 = sphi 0, %s288
      %s289 = sphi 0, %s286
      %s290 = sphi 0, %s289
      %s306 = sphi 0, %s290
      %s314 = sphi 0, %s316
      %s317 = sphi 0, %s314
      %s318 = sphi 0, %s317
      %s334 = sphi 0, %s318
      %s342 = sphi 0, %s344
      %s345 = sphi 0, %s342
      %s346 = sphi 0, %s345
      %s362 = sphi 0, %s346
      %s370 = sphi 0, %s372
      %s373 = sphi 0, %s370
      %s374 = sphi 0, %s373
      %s390 = sphi 0, %s374
      %s396 = sphi 0, %s398
      %s399 = sphi 0, %s396
      %s400 = sphi 0, %s399
      %s416 = sphi 0, %s400
      %s422 = sphi 0, %s424
      %s425 = sphi 0, %s422
      %s426 = sphi 0, %s425
      %s442 = sphi 0, %s426
    $region4: #{tpu_custom_call.1} parent=1 // loop_header_branch
      %26 = sbr.rel (%p24) target = $region8
    $region5: #{tpu_custom_call.1} parent=1 // loop_body
      %s28 = ssub.s32 %s23, 1
      %s29 = ssub.s32 %s23, 2
      %s39 = sadd.s32 1, %s32
      %p40 = scmp.ge.s32.totalorder %s39, 1
      %s41 = scalar_select %p40, 0, %s39
      %s42 = sadd.s32 1, %s31
      %s43 = scalar_select %p40, %s42, %s31
      %p44 = scmp.ge.s32.totalorder %s43, 2
      %s45 = scalar_select %p44, 0, %s43
      %s46 = sadd.s32 1, %s30
      %s47 = scalar_select %p44, %s46, %s30
      %p48 = scmp.ge.s32.totalorder %s47, 1
      %s49 = scalar_select %p48, 0, %s47
      %s50 = ssub.s32 %s30, %s49
      %p51 = scmp.eq.s32.totalorder %s50, 0
      %s53 = sadd.s32 %s52, 1
      %s54 = scalar_select %p51, %s52, %s53
      %p57 = pneg %p51
      %p58 = scmp.eq.s32.totalorder %s23, 1
      %p59 = por %p57, %p58
      %p60 = scmp.ne.s32.totalorder %s52, %s55
      %p61 = scmp.eq.s32.totalorder %s23, 0
      %p62 = por %p60, %p61
      %p63 = scmp.ne.s32.totalorder %s52, %s55
      %p64 = scmp.eq.s32.totalorder %s28, 1
      %p65 = por %p63, %p64
      %p66 = scmp.ne.s32.totalorder %s55, %s56
      %p67 = scmp.eq.s32.totalorder %s28, 0
      %p68 = por %p66, %p67
      %p69 = scmp.ne.s32.totalorder %s55, %s56
      %p70 = scmp.eq.s32.totalorder %s29, 1
      %p71 = por %p69, %p70
      %p73 = scmp.ne.s32.totalorder %s56, %s72
      %p74 = scmp.eq.s32.totalorder %s29, 0
      %p75 = por %p73, %p74
      %s76 = ssub.s32 %s30, %s49
      %p77 = scmp.eq.s32.totalorder %s76, 0
      %s79 = sadd.s32 %s78, 1
      %s80 = scalar_select %p77, %s78, %s79
      %p83 = pneg %p77
      %p84 = scmp.eq.s32.totalorder %s23, 1
      %p85 = por %p83, %p84
      %p86 = scmp.ne.s32.totalorder %s78, %s81
      %p87 = scmp.eq.s32.totalorder %s23, 0
      %p88 = por %p86, %p87
      %p89 = scmp.ne.s32.totalorder %s78, %s81
      %p90 = scmp.eq.s32.totalorder %s28, 1
      %p91 = por %p89, %p90
      %p92 = scmp.ne.s32.totalorder %s81, %s82
      %p93 = scmp.eq.s32.totalorder %s28, 0
      %p94 = por %p92, %p93
      %p95 = scmp.ne.s32.totalorder %s81, %s82
      %p96 = scmp.eq.s32.totalorder %s29, 1
      %p97 = por %p95, %p96
      %p99 = scmp.ne.s32.totalorder %s82, %s98
      %p100 = scmp.eq.s32.totalorder %s29, 0
      %p101 = por %p99, %p100
      %s102 = ssub.s32 %s31, %s45
      %p103 = scmp.eq.s32.totalorder %s102, 0
      %s105 = sadd.s32 %s104, 1
      %s106 = scalar_select %p103, %s104, %s105
      %p109 = pneg %p103
      %p110 = scmp.eq.s32.totalorder %s23, 1
      %p111 = por %p109, %p110
      %p112 = scmp.ne.s32.totalorder %s104, %s107
      %p113 = scmp.eq.s32.totalorder %s23, 0
      %p114 = por %p112, %p113
      %p115 = scmp.ne.s32.totalorder %s104, %s107
      %p116 = scmp.eq.s32.totalorder %s28, 1
      %p117 = por %p115, %p116
      %p118 = scmp.ne.s32.totalorder %s107, %s108
      %p119 = scmp.eq.s32.totalorder %s28, 0
      %p120 = por %p118, %p119
      %p121 = scmp.ne.s32.totalorder %s107, %s108
      %p122 = scmp.eq.s32.totalorder %s29, 1
      %p123 = por %p121, %p122
      %p125 = scmp.ne.s32.totalorder %s108, %s124
      %p126 = scmp.eq.s32.totalorder %s29, 0
      %p127 = por %p125, %p126
      %s128 = ssub.s32 %s31, %s45
      %p129 = scmp.eq.s32.totalorder %s128, 0
      %s131 = sadd.s32 %s130, 1
      %s132 = scalar_select %p129, %s130, %s131
      %p135 = pneg %p129
      %p136 = scmp.eq.s32.totalorder %s23, 1
      %p137 = por %p135, %p136
      %p138 = scmp.ne.s32.totalorder %s130, %s133
      %p139 = scmp.eq.s32.totalorder %s23, 0
      %p140 = por %p138, %p139
      %p141 = scmp.ne.s32.totalorder %s130, %s133
      %p142 = scmp.eq.s32.totalorder %s28, 1
      %p143 = por %p141, %p142
      %p144 = scmp.ne.s32.totalorder %s133, %s134
      %p145 = scmp.eq.s32.totalorder %s28, 0
      %p146 = por %p144, %p145
      %p147 = scmp.ne.s32.totalorder %s133, %s134
      %p148 = scmp.eq.s32.totalorder %s29, 1
      %p149 = por %p147, %p148
      %p151 = scmp.ne.s32.totalorder %s134, %s150
      %p152 = scmp.eq.s32.totalorder %s29, 0
      %p153 = por %p151, %p152
      %s154 = ssub.s32 %s31, %s45
      %p155 = scmp.eq.s32.totalorder %s154, 0
      %s157 = sadd.s32 %s156, 1
      %s158 = scalar_select %p155, %s156, %s157
      %p161 = pneg %p155
      %p162 = scmp.eq.s32.totalorder %s23, 1
      %p163 = por %p161, %p162
      %p164 = scmp.ne.s32.totalorder %s156, %s159
      %p165 = scmp.eq.s32.totalorder %s23, 0
      %p166 = por %p164, %p165
      %p167 = scmp.ne.s32.totalorder %s156, %s159
      %p168 = scmp.eq.s32.totalorder %s28, 1
      %p169 = por %p167, %p168
      %p170 = scmp.ne.s32.totalorder %s159, %s160
      %p171 = scmp.eq.s32.totalorder %s28, 0
      %p172 = por %p170, %p171
      %p173 = scmp.ne.s32.totalorder %s159, %s160
      %p174 = scmp.eq.s32.totalorder %s29, 1
      %p175 = por %p173, %p174
      %p177 = scmp.ne.s32.totalorder %s160, %s176
      %p178 = scmp.eq.s32.totalorder %s29, 0
      %p179 = por %p177, %p178
      %s180 = ssub.s32 %s31, %s45
      %p181 = scmp.eq.s32.totalorder %s180, 0
      %s183 = sadd.s32 %s182, 1
      %s184 = scalar_select %p181, %s182, %s183
      %p187 = pneg %p181
      %p188 = scmp.eq.s32.totalorder %s23, 1
      %p189 = por %p187, %p188
      %p190 = scmp.ne.s32.totalorder %s182, %s185
      %p191 = scmp.eq.s32.totalorder %s23, 0
      %p192 = por %p190, %p191
      %p193 = scmp.ne.s32.totalorder %s182, %s185
      %p194 = scmp.eq.s32.totalorder %s28, 1
      %p195 = por %p193, %p194
      %p196 = scmp.ne.s32.totalorder %s185, %s186
      %p197 = scmp.eq.s32.totalorder %s28, 0
      %p198 = por %p196, %p197
      %p199 = scmp.ne.s32.totalorder %s185, %s186
      %p200 = scmp.eq.s32.totalorder %s29, 1
      %p201 = por %p199, %p200
      %p203 = scmp.ne.s32.totalorder %s186, %s202
      %p204 = scmp.eq.s32.totalorder %s29, 0
      %p205 = por %p203, %p204
      %s206 = ssub.s32 %s31, %s45
      %p207 = scmp.eq.s32.totalorder %s206, 0
      %s209 = sadd.s32 %s208, 1
      %s210 = scalar_select %p207, %s208, %s209
      %p213 = pneg %p207
      %p214 = scmp.eq.s32.totalorder %s23, 1
      %p215 = por %p213, %p214
      %p216 = scmp.ne.s32.totalorder %s208, %s211
      %p217 = scmp.eq.s32.totalorder %s23, 0
      %p218 = por %p216, %p217
      %p219 = scmp.ne.s32.totalorder %s208, %s211
      %p220 = scmp.eq.s32.totalorder %s28, 1
      %p221 = por %p219, %p220
      %p222 = scmp.ne.s32.totalorder %s211, %s212
      %p223 = scmp.eq.s32.totalorder %s28, 0
      %p224 = por %p222, %p223
      %p225 = scmp.ne.s32.totalorder %s211, %s212
      %p226 = scmp.eq.s32.totalorder %s29, 1
      %p227 = por %p225, %p226
      %p229 = scmp.ne.s32.totalorder %s212, %s228
      %p230 = scmp.eq.s32.totalorder %s29, 0
      %p231 = por %p229, %p230
      %s232 = ssub.s32 %s31, %s45
      %p233 = scmp.eq.s32.totalorder %s232, 0
      %s235 = sadd.s32 %s234, 1
      %s236 = scalar_select %p233, %s234, %s235
      %p239 = pneg %p233
      %p240 = scmp.eq.s32.totalorder %s23, 1
      %p241 = por %p239, %p240
      %p242 = scmp.ne.s32.totalorder %s234, %s237
      %p243 = scmp.eq.s32.totalorder %s23, 0
      %p244 = por %p242, %p243
      %p245 = scmp.ne.s32.totalorder %s234, %s237
      %p246 = scmp.eq.s32.totalorder %s28, 1
      %p247 = por %p245, %p246
      %p248 = scmp.ne.s32.totalorder %s237, %s238
      %p249 = scmp.eq.s32.totalorder %s28, 0
      %p250 = por %p248, %p249
      %p251 = scmp.ne.s32.totalorder %s237, %s238
      %p252 = scmp.eq.s32.totalorder %s29, 1
      %p253 = por %p251, %p252
      %p255 = scmp.ne.s32.totalorder %s238, %s254
      %p256 = scmp.eq.s32.totalorder %s29, 0
      %p257 = por %p255, %p256
      %s258 = ssub.s32 %s31, %s45
      %p259 = scmp.eq.s32.totalorder %s258, 0
      %s261 = sadd.s32 %s260, 1
      %s262 = scalar_select %p259, %s260, %s261
      %p265 = pneg %p259
      %p266 = scmp.eq.s32.totalorder %s23, 1
      %p267 = por %p265, %p266
      %p268 = scmp.ne.s32.totalorder %s260, %s263
      %p269 = scmp.eq.s32.totalorder %s23, 0
      %p270 = por %p268, %p269
      %p271 = scmp.ne.s32.totalorder %s260, %s263
      %p272 = scmp.eq.s32.totalorder %s28, 1
      %p273 = por %p271, %p272
      %p274 = scmp.ne.s32.totalorder %s263, %s264
      %p275 = scmp.eq.s32.totalorder %s28, 0
      %p276 = por %p274, %p275
      %p277 = scmp.ne.s32.totalorder %s263, %s264
      %p278 = scmp.eq.s32.totalorder %s29, 1
      %p279 = por %p277, %p278
      %p281 = scmp.ne.s32.totalorder %s264, %s280
      %p282 = scmp.eq.s32.totalorder %s29, 0
      %p283 = por %p281, %p282
      %s284 = ssub.s32 %s31, %s45
      %p285 = scmp.eq.s32.totalorder %s284, 0
      %s287 = sadd.s32 %s286, 1
      %s288 = scalar_select %p285, %s286, %s287
      %p291 = pneg %p285
      %p292 = scmp.eq.s32.totalorder %s23, 1
      %p293 = por %p291, %p292
      %p294 = scmp.ne.s32.totalorder %s286, %s289
      %p295 = scmp.eq.s32.totalorder %s23, 0
      %p296 = por %p294, %p295
      %p297 = scmp.ne.s32.totalorder %s286, %s289
      %p298 = scmp.eq.s32.totalorder %s28, 1
      %p299 = por %p297, %p298
      %p300 = scmp.ne.s32.totalorder %s289, %s290
      %p301 = scmp.eq.s32.totalorder %s28, 0
      %p302 = por %p300, %p301
      %p303 = scmp.ne.s32.totalorder %s289, %s290
      %p304 = scmp.eq.s32.totalorder %s29, 1
      %p305 = por %p303, %p304
      %p307 = scmp.ne.s32.totalorder %s290, %s306
      %p308 = scmp.eq.s32.totalorder %s29, 0
      %p309 = por %p307, %p308
      %s310 = ssub.s32 %s31, %s45
      %s311 = ssub.s32 %s32, %s41
      %s312 = sor.u32 %s310, %s311
      %p313 = scmp.eq.s32.totalorder %s312, 0
      %s315 = sadd.s32 %s314, 1
      %s316 = scalar_select %p313, %s314, %s315
      %p319 = pneg %p313
      %p320 = scmp.eq.s32.totalorder %s23, 1
      %p321 = por %p319, %p320
      %p322 = scmp.ne.s32.totalorder %s314, %s317
      %p323 = scmp.eq.s32.totalorder %s23, 0
      %p324 = por %p322, %p323
      %p325 = scmp.ne.s32.totalorder %s314, %s317
      %p326 = scmp.eq.s32.totalorder %s28, 1
      %p327 = por %p325, %p326
      %p328 = scmp.ne.s32.totalorder %s317, %s318
      %p329 = scmp.eq.s32.totalorder %s28, 0
      %p330 = por %p328, %p329
      %p331 = scmp.ne.s32.totalorder %s317, %s318
      %p332 = scmp.eq.s32.totalorder %s29, 1
      %p333 = por %p331, %p332
      %p335 = scmp.ne.s32.totalorder %s318, %s334
      %p336 = scmp.eq.s32.totalorder %s29, 0
      %p337 = por %p335, %p336
      %s338 = ssub.s32 %s31, %s45
      %s339 = ssub.s32 %s32, %s41
      %s340 = sor.u32 %s338, %s339
      %p341 = scmp.eq.s32.totalorder %s340, 0
      %s343 = sadd.s32 %s342, 1
      %s344 = scalar_select %p341, %s342, %s343
      %p347 = pneg %p341
      %p348 = scmp.eq.s32.totalorder %s23, 1
      %p349 = por %p347, %p348
      %p350 = scmp.ne.s32.totalorder %s342, %s345
      %p351 = scmp.eq.s32.totalorder %s23, 0
      %p352 = por %p350, %p351
      %p353 = scmp.ne.s32.totalorder %s342, %s345
      %p354 = scmp.eq.s32.totalorder %s28, 1
      %p355 = por %p353, %p354
      %p356 = scmp.ne.s32.totalorder %s345, %s346
      %p357 = scmp.eq.s32.totalorder %s28, 0
      %p358 = por %p356, %p357
      %p359 = scmp.ne.s32.totalorder %s345, %s346
      %p360 = scmp.eq.s32.totalorder %s29, 1
      %p361 = por %p359, %p360
      %p363 = scmp.ne.s32.totalorder %s346, %s362
      %p364 = scmp.eq.s32.totalorder %s29, 0
      %p365 = por %p363, %p364
      %s366 = ssub.s32 %s31, %s45
      %s367 = ssub.s32 %s32, %s41
      %s368 = sor.u32 %s366, %s367
      %p369 = scmp.eq.s32.totalorder %s368, 0
      %s371 = sadd.s32 %s370, 1
      %s372 = scalar_select %p369, %s370, %s371
      %p375 = pneg %p369
      %p376 = scmp.eq.s32.totalorder %s23, 1
      %p377 = por %p375, %p376
      %p378 = scmp.ne.s32.totalorder %s370, %s373
      %p379 = scmp.eq.s32.totalorder %s23, 0
      %p380 = por %p378, %p379
      %p381 = scmp.ne.s32.totalorder %s370, %s373
      %p382 = scmp.eq.s32.totalorder %s28, 1
      %p383 = por %p381, %p382
      %p384 = scmp.ne.s32.totalorder %s373, %s374
      %p385 = scmp.eq.s32.totalorder %s28, 0
      %p386 = por %p384, %p385
      %p387 = scmp.ne.s32.totalorder %s373, %s374
      %p388 = scmp.eq.s32.totalorder %s29, 1
      %p389 = por %p387, %p388
      %p391 = scmp.ne.s32.totalorder %s374, %s390
      %p392 = scmp.eq.s32.totalorder %s29, 0
      %p393 = por %p391, %p392
      %s394 = ssub.s32 %s31, %s45
      %p395 = scmp.eq.s32.totalorder %s394, 0
      %s397 = sadd.s32 %s396, 1
      %s398 = scalar_select %p395, %s396, %s397
      %p401 = pneg %p395
      %p402 = scmp.eq.s32.totalorder %s23, 1
      %p403 = por %p401, %p402
      %p404 = scmp.ne.s32.totalorder %s396, %s399
      %p405 = scmp.eq.s32.totalorder %s23, 0
      %p406 = por %p404, %p405
      %p407 = scmp.ne.s32.totalorder %s396, %s399
      %p408 = scmp.eq.s32.totalorder %s28, 1
      %p409 = por %p407, %p408
      %p410 = scmp.ne.s32.totalorder %s399, %s400
      %p411 = scmp.eq.s32.totalorder %s28, 0
      %p412 = por %p410, %p411
      %p413 = scmp.ne.s32.totalorder %s399, %s400
      %p414 = scmp.eq.s32.totalorder %s29, 1
      %p415 = por %p413, %p414
      %p417 = scmp.ne.s32.totalorder %s400, %s416
      %p418 = scmp.eq.s32.totalorder %s29, 0
      %p419 = por %p417, %p418
      %s420 = ssub.s32 %s30, %s49
      %p421 = scmp.eq.s32.totalorder %s420, 0
      %s423 = sadd.s32 %s422, 1
      %s424 = scalar_select %p421, %s422, %s423
      %p427 = pneg %p421
      %p428 = scmp.eq.s32.totalorder %s23, 1
      %p429 = por %p427, %p428
      %p430 = scmp.ne.s32.totalorder %s422, %s425
      %p431 = scmp.eq.s32.totalorder %s23, 0
      %p432 = por %p430, %p431
      %p433 = scmp.ne.s32.totalorder %s422, %s425
      %p434 = scmp.eq.s32.totalorder %s28, 1
      %p435 = por %p433, %p434
      %p436 = scmp.ne.s32.totalorder %s425, %s426
      %p437 = scmp.eq.s32.totalorder %s28, 0
      %p438 = por %p436, %p437
      %p439 = scmp.ne.s32.totalorder %s425, %s426
      %p440 = scmp.eq.s32.totalorder %s29, 1
      %p441 = por %p439, %p440
      %p443 = scmp.ne.s32.totalorder %s426, %s442
      %p444 = scmp.eq.s32.totalorder %s29, 0
      %p445 = por %p443, %p444
      %p446 = scmp.le.s32.totalorder 1, %s23
      %p447 = scmp.lt.s32.totalorder %s23, 3
      %p448 = pnand %p446, %p447
      %p449 = pneg %p448
      // Predicated region
      $region9: #{tpu_custom_call.1} parent=5 // pred_check
        _
      $region10: #{tpu_custom_call.1} parent=5 // pred_check_branch
        %451 = sbr.rel (%p448) target = $region12
      $region11: #{tpu_custom_call.1} parent=5 // pred_region
        %s452 = ssub.s32 %s23, 1
        // Predicated region
        $region13: #{tpu_custom_call.1} parent=11 // pred_check
          %p453 = pneg %p68
        $region14: #{tpu_custom_call.1} parent=11 // pred_check_branch
          %455 = sbr.rel (%p453) target = $region16
        $region15: #{tpu_custom_call.1} parent=11 // pred_region
          %s456 = smul.u32 2, %s33
          %s458 = ssub.s32 256, 256
          %459 = vsyncadd [#allocation8], %s458
          %s460 = smul.addr %s456, 128
          %s461 = scalar_lea.hbm %s0, %s460
          %s462 = sshll.u32 [#allocation7], 4
          %s463 = int_to_ptr.vmem [resolvable:$true] %s462
          %468 = dma.hbm_to_vmem [thread:$0]  %s461, 256, %s463, [#allocation8], 128, 128, 8
        $region16: #{tpu_custom_call.1} parent=11 // pred_fallthru
          _
        // Predicated region
        $region17: #{tpu_custom_call.1} parent=11 // pred_check
          %p469 = pneg %p94
        $region18: #{tpu_custom_call.1} parent=11 // pred_check_branch
          %471 = sbr.rel (%p469) target = $region20
        $region19: #{tpu_custom_call.1} parent=11 // pred_region
          %s472 = smul.u32 2, %s33
          %s474 = ssub.s32 32, 32
          %475 = vsyncadd [#allocation11], %s474
          %s476 = smul.addr %s472, 16
          %s477 = scalar_lea.hbm %s1, %s476
          %s478 = sshll.u32 [#allocation10], 4
          %s479 = int_to_ptr.vmem [resolvable:$true] %s478
          %484 = dma.hbm_to_vmem [thread:$0]  %s477, 32, %s479, [#allocation11], 16, 16, 1
        $region20: #{tpu_custom_call.1} parent=11 // pred_fallthru
          _
      $region12: #{tpu_custom_call.1} parent=5 // pred_fallthru
        _
      %p485 = scmp.lt.s32.totalorder %s23, 2
      // Predicated region
      $region21: #{tpu_custom_call.1} parent=5 // pred_check
        %p486 = pneg %p485
      $region22: #{tpu_custom_call.1} parent=5 // pred_check_branch
        %488 = sbr.rel (%p486) target = $region24
      $region23: #{tpu_custom_call.1} parent=5 // pred_region
        // Predicated region
        $region25: #{tpu_custom_call.1} parent=23 // pred_check
          %p489 = pneg %p114
        $region26: #{tpu_custom_call.1} parent=23 // pred_check_branch
          %491 = sbr.rel (%p489) target = $region28
        $region27: #{tpu_custom_call.1} parent=23 // pred_region
          %p492 = scmp.lt.s32.totalorder %s31, 1
          %s493 = scalar_select %p492, %s31, 1
          %s494 = smul.addr %s493, 4
          %s495 = smul.addr %s494, 8
          %s496 = scalar_lea.vmem %s2, %s495
        $region28: #{tpu_custom_call.1} parent=23 // pred_fallthru
          _
        // Predicated region
        $region29: #{tpu_custom_call.1} parent=23 // pred_check
          %p497 = pneg %p140
        $region30: #{tpu_custom_call.1} parent=23 // pred_check_branch
          %499 = sbr.rel (%p497) target = $region32
        $region31: #{tpu_custom_call.1} parent=23 // pred_region
          %p500 = scmp.lt.s32.totalorder %s31, 1
          %s501 = scalar_select %p500, %s31, 1
          %s502 = scalar_lea.vmem %s3, %s501
        $region32: #{tpu_custom_call.1} parent=23 // pred_fallthru
          _
        // Predicated region
        $region33: #{tpu_custom_call.1} parent=23 // pred_check
          %p503 = pneg %p166
        $region34: #{tpu_custom_call.1} parent=23 // pred_check_branch
          %505 = sbr.rel (%p503) target = $region36
        $region35: #{tpu_custom_call.1} parent=23 // pred_region
          %p506 = scmp.lt.s32.totalorder %s31, 1
          %s507 = scalar_select %p506, %s31, 1
          %s508 = smul.addr %s507, 4
          %s509 = smul.addr %s508, 8
          %s510 = scalar_lea.vmem %s4, %s509
        $region36: #{tpu_custom_call.1} parent=23 // pred_fallthru
          _
        // Predicated region
        $region37: #{tpu_custom_call.1} parent=23 // pred_check
          %p511 = pneg %p192
        $region38: #{tpu_custom_call.1} parent=23 // pred_check_branch
          %513 = sbr.rel (%p511) target = $region40
        $region39: #{tpu_custom_call.1} parent=23 // pred_region
          %p514 = scmp.lt.s32.totalorder %s31, 1
          %s515 = scalar_select %p514, %s31, 1
          %s516 = scalar_lea.vmem %s5, %s515
        $region40: #{tpu_custom_call.1} parent=23 // pred_fallthru
          _
        // Predicated region
        $region41: #{tpu_custom_call.1} parent=23 // pred_check
          %p517 = pneg %p218
        $region42: #{tpu_custom_call.1} parent=23 // pred_check_branch
          %519 = sbr.rel (%p517) target = $region44
        $region43: #{tpu_custom_call.1} parent=23 // pred_region
          %p520 = scmp.lt.s32.totalorder %s31, 1
          %s521 = scalar_select %p520, %s31, 1
          %s522 = scalar_lea.vmem %s6, %s521
        $region44: #{tpu_custom_call.1} parent=23 // pred_fallthru
          _
        // Predicated region
        $region45: #{tpu_custom_call.1} parent=23 // pred_check
          %p523 = pneg %p244
        $region46: #{tpu_custom_call.1} parent=23 // pred_check_branch
          %525 = sbr.rel (%p523) target = $region48
        $region47: #{tpu_custom_call.1} parent=23 // pred_region
          %p526 = scmp.lt.s32.totalorder %s31, 1
          %s527 = scalar_select %p526, %s31, 1
          %s528 = scalar_lea.vmem %s7, %s527
        $region48: #{tpu_custom_call.1} parent=23 // pred_fallthru
          _
        // Predicated region
        $region49: #{tpu_custom_call.1} parent=23 // pred_check
          %p529 = pneg %p270
        $region50: #{tpu_custom_call.1} parent=23 // pred_check_branch
          %531 = sbr.rel (%p529) target = $region52
        $region51: #{tpu_custom_call.1} parent=23 // pred_region
          %p532 = scmp.lt.s32.totalorder %s31, 1
          %s533 = scalar_select %p532, %s31, 1
          %s534 = scalar_lea.vmem %s8, %s533
        $region52: #{tpu_custom_call.1} parent=23 // pred_fallthru
          _
        // Predicated region
        $region53: #{tpu_custom_call.1} parent=23 // pred_check
          %p535 = pneg %p296
        $region54: #{tpu_custom_call.1} parent=23 // pred_check_branch
          %537 = sbr.rel (%p535) target = $region56
        $region55: #{tpu_custom_call.1} parent=23 // pred_region
          %p538 = scmp.lt.s32.totalorder %s31, 1
          %s539 = scalar_select %p538, %s31, 1
          %s540 = scalar_lea.vmem %s9, %s539
        $region56: #{tpu_custom_call.1} parent=23 // pred_fallthru
          _
        // Predicated region
        $region57: #{tpu_custom_call.1} parent=23 // pred_check
          %p541 = pneg %p324
        $region58: #{tpu_custom_call.1} parent=23 // pred_check_branch
          %543 = sbr.rel (%p541) target = $region60
        $region59: #{tpu_custom_call.1} parent=23 // pred_region
          %p544 = scmp.lt.s32.totalorder %s31, 1
          %s545 = scalar_select %p544, %s31, 1
          %p546 = scmp.lt.s32.totalorder %s32, 0
          %s547 = scalar_select %p546, %s32, 0
          %s548 = smul.addr %s545, 4
          %s549 = sadd.s32 %s547, %s548
          %s550 = smul.addr %s549, 8
          %s551 = scalar_lea.vmem %s10, %s550
        $region60: #{tpu_custom_call.1} parent=23 // pred_fallthru
          _
        // Predicated region
        $region61: #{tpu_custom_call.1} parent=23 // pred_check
          %p552 = pneg %p352
        $region62: #{tpu_custom_call.1} parent=23 // pred_check_branch
          %554 = sbr.rel (%p552) target = $region64
        $region63: #{tpu_custom_call.1} parent=23 // pred_region
          %p555 = scmp.lt.s32.totalorder %s31, 1
          %s556 = scalar_select %p555, %s31, 1
          %p557 = scmp.lt.s32.totalorder %s32, 0
          %s558 = scalar_select %p557, %s32, 0
          %s559 = sadd.s32 %s558, %s556
          %s560 = scalar_lea.vmem %s11, %s559
        $region64: #{tpu_custom_call.1} parent=23 // pred_fallthru
          _
        // Predicated region
        $region65: #{tpu_custom_call.1} parent=23 // pred_check
          %p561 = pneg %p380
        $region66: #{tpu_custom_call.1} parent=23 // pred_check_branch
          %563 = sbr.rel (%p561) target = $region68
        $region67: #{tpu_custom_call.1} parent=23 // pred_region
          %s564 = smul.u32 8, %s32
          %p565 = scmp.lt.s32.totalorder %s31, 1
          %s566 = scalar_select %p565, %s31, 1
          %p567 = scmp.lt.s32.totalorder %s564, 7
          %s568 = scalar_select %p567, %s564, 7
          %s569 = smul.addr %s566, 8
          %s570 = sadd.s32 %s568, %s569
          %s571 = smul.addr %s570, 8
          %s572 = scalar_lea.vmem %s12, %s571
          %s573 = smul.u32 8, %s32
        $region68: #{tpu_custom_call.1} parent=23 // pred_fallthru
          _
        // Predicated region
        $region69: #{tpu_custom_call.1} parent=23 // pred_check
          %p574 = pneg %p406
        $region70: #{tpu_custom_call.1} parent=23 // pred_check_branch
          %576 = sbr.rel (%p574) target = $region72
        $region71: #{tpu_custom_call.1} parent=23 // pred_region
          %p577 = scmp.lt.s32.totalorder %s31, 1
          %s578 = scalar_select %p577, %s31, 1
          %s579 = scalar_lea.vmem %s13, %s578
        $region72: #{tpu_custom_call.1} parent=23 // pred_fallthru
          _
      $region24: #{tpu_custom_call.1} parent=5 // pred_fallthru
        _
      %p580 = scmp.le.s32.totalorder 1, %s23
      %p581 = scmp.lt.s32.totalorder %s23, 3
      %p582 = pnand %p580, %p581
      %p583 = pneg %p582
      // Predicated region
      $region73: #{tpu_custom_call.1} parent=5 // pred_check
        _
      $region74: #{tpu_custom_call.1} parent=5 // pred_check_branch
        %585 = sbr.rel (%p582) target = $region76
      $region75: #{tpu_custom_call.1} parent=5 // pred_region
        %s586 = ssub.s32 %s23, 1
        // Predicated region
        $region77: #{tpu_custom_call.1} parent=75 // pred_check
          %p587 = pneg %p68
        $region78: #{tpu_custom_call.1} parent=75 // pred_check_branch
          %589 = sbr.rel (%p587) target = $region80
        $region79: #{tpu_custom_call.1} parent=75 // pred_region
          %590 = dma.done [#allocation8], 256
        $region80: #{tpu_custom_call.1} parent=75 // pred_fallthru
          _
        // Predicated region
        $region81: #{tpu_custom_call.1} parent=75 // pred_check
          %p591 = pneg %p94
        $region82: #{tpu_custom_call.1} parent=75 // pred_check_branch
          %593 = sbr.rel (%p591) target = $region84
        $region83: #{tpu_custom_call.1} parent=75 // pred_region
          %594 = dma.done [#allocation11], 32
        $region84: #{tpu_custom_call.1} parent=75 // pred_fallthru
          _
        %p595 = pneg %p68
        %p596 = pneg %p65
        %p597 = pneg %p94
        %p598 = pneg %p91
        %p599 = scmp.lt.s32.totalorder %s34, 1
        %s600 = scalar_select %p599, %s34, 1
        %s601 = smul.addr %s600, 4
        %s602 = smul.addr %s601, 8
        %s603 = scalar_lea.vmem %s2, %s602
        %p604 = pneg %p120
        %p605 = pneg %p117
        %p606 = scmp.lt.s32.totalorder %s34, 1
        %s607 = scalar_select %p606, %s34, 1
        %s608 = scalar_lea.vmem %s3, %s607
        %p609 = pneg %p146
        %p610 = pneg %p143
        %p611 = scmp.lt.s32.totalorder %s34, 1
        %s612 = scalar_select %p611, %s34, 1
        %s613 = smul.addr %s612, 4
        %s614 = smul.addr %s613, 8
        %s615 = scalar_lea.vmem %s4, %s614
        %p616 = pneg %p172
        %p617 = pneg %p169
        %p618 = scmp.lt.s32.totalorder %s34, 1
        %s619 = scalar_select %p618, %s34, 1
        %s620 = scalar_lea.vmem %s5, %s619
        %p621 = pneg %p198
        %p622 = pneg %p195
        %p623 = scmp.lt.s32.totalorder %s34, 1
        %s624 = scalar_select %p623, %s34, 1
        %s625 = scalar_lea.vmem %s6, %s624
        %p626 = pneg %p224
        %p627 = pneg %p221
        %p628 = scmp.lt.s32.totalorder %s34, 1
        %s629 = scalar_select %p628, %s34, 1
        %s630 = scalar_lea.vmem %s7, %s629
        %p631 = pneg %p250
        %p632 = pneg %p247
        %p633 = scmp.lt.s32.totalorder %s34, 1
        %s634 = scalar_select %p633, %s34, 1
        %s635 = scalar_lea.vmem %s8, %s634
        %p636 = pneg %p276
        %p637 = pneg %p273
        %p638 = scmp.lt.s32.totalorder %s34, 1
        %s639 = scalar_select %p638, %s34, 1
        %s640 = scalar_lea.vmem %s9, %s639
        %p641 = pneg %p302
        %p642 = pneg %p299
        %p643 = scmp.lt.s32.totalorder %s34, 1
        %s644 = scalar_select %p643, %s34, 1
        %p645 = scmp.lt.s32.totalorder %s35, 0
        %s646 = scalar_select %p645, %s35, 0
        %s647 = smul.addr %s644, 4
        %s648 = sadd.s32 %s646, %s647
        %s649 = smul.addr %s648, 8
        %s650 = scalar_lea.vmem %s10, %s649
        %p651 = pneg %p330
        %p652 = pneg %p327
        %p653 = scmp.lt.s32.totalorder %s34, 1
        %s654 = scalar_select %p653, %s34, 1
        %p655 = scmp.lt.s32.totalorder %s35, 0
        %s656 = scalar_select %p655, %s35, 0
        %s657 = sadd.s32 %s656, %s654
        %s658 = scalar_lea.vmem %s11, %s657
        %p659 = pneg %p358
        %p660 = pneg %p355
        %s661 = smul.u32 8, %s35
        %p662 = scmp.lt.s32.totalorder %s34, 1
        %s663 = scalar_select %p662, %s34, 1
        %p664 = scmp.lt.s32.totalorder %s661, 7
        %s665 = scalar_select %p664, %s661, 7
        %s666 = smul.addr %s663, 8
        %s667 = sadd.s32 %s665, %s666
        %s668 = smul.addr %s667, 8
        %s669 = scalar_lea.vmem %s12, %s668
        %p670 = pneg %p386
        %p671 = pneg %p383
        %p672 = scmp.lt.s32.totalorder %s34, 1
        %s673 = scalar_select %p672, %s34, 1
        %s674 = scalar_lea.vmem %s13, %s673
        %p675 = pneg %p412
        %p676 = pneg %p409
        %p677 = pneg %p438
        %p678 = pneg %p435
        %s679 = smul.u32 2, %s33
        %s680 = smul.u32 2, %s33
        %p681 = scmp.lt.s32.totalorder %s34, 1
        %s682 = scalar_select %p681, %s34, 1
        %s683 = smul.addr %s682, 4
        %s684 = smul.addr %s683, 8
        %s685 = scalar_lea.vmem %s2, %s684
        %p686 = scmp.lt.s32.totalorder %s34, 1
        %s687 = scalar_select %p686, %s34, 1
        %s688 = scalar_lea.vmem %s3, %s687
        %p689 = scmp.lt.s32.totalorder %s34, 1
        %s690 = scalar_select %p689, %s34, 1
        %s691 = smul.addr %s690, 4
        %s692 = smul.addr %s691, 8
        %s693 = scalar_lea.vmem %s4, %s692
        %p694 = scmp.lt.s32.totalorder %s34, 1
        %s695 = scalar_select %p694, %s34, 1
        %s696 = scalar_lea.vmem %s5, %s695
        %p697 = scmp.lt.s32.totalorder %s34, 1
        %s698 = scalar_select %p697, %s34, 1
        %s699 = scalar_lea.vmem %s6, %s698
        %p700 = scmp.lt.s32.totalorder %s34, 1
        %s701 = scalar_select %p700, %s34, 1
        %s702 = scalar_lea.vmem %s7, %s701
        %p703 = scmp.lt.s32.totalorder %s34, 1
        %s704 = scalar_select %p703, %s34, 1
        %s705 = scalar_lea.vmem %s8, %s704
        %p706 = scmp.lt.s32.totalorder %s34, 1
        %s707 = scalar_select %p706, %s34, 1
        %s708 = scalar_lea.vmem %s9, %s707
        %p709 = scmp.lt.s32.totalorder %s34, 1
        %s710 = scalar_select %p709, %s34, 1
        %p711 = scmp.lt.s32.totalorder %s35, 0
        %s712 = scalar_select %p711, %s35, 0
        %s713 = smul.addr %s710, 4
        %s714 = sadd.s32 %s712, %s713
        %s715 = smul.addr %s714, 8
        %s716 = scalar_lea.vmem %s10, %s715
        %p717 = scmp.lt.s32.totalorder %s34, 1
        %s718 = scalar_select %p717, %s34, 1
        %p719 = scmp.lt.s32.totalorder %s35, 0
        %s720 = scalar_select %p719, %s35, 0
        %s721 = sadd.s32 %s720, %s718
        %s722 = scalar_lea.vmem %s11, %s721
        %s723 = smul.u32 8, %s35
        %p724 = scmp.lt.s32.totalorder %s34, 1
        %s725 = scalar_select %p724, %s34, 1
        %p726 = scmp.lt.s32.totalorder %s723, 7
        %s727 = scalar_select %p726, %s723, 7
        %s728 = smul.addr %s725, 8
        %s729 = sadd.s32 %s727, %s728
        %s730 = smul.addr %s729, 8
        %s731 = scalar_lea.vmem %s12, %s730
        %s732 = smul.u32 8, %s35
        %p733 = scmp.lt.s32.totalorder %s34, 1
        %s734 = scalar_select %p733, %s34, 1
        %s735 = scalar_lea.vmem %s13, %s734
        %s736 = smul.u32 2, %s33
        %p737 = scmp.eq.s32.totalorder %s34, 0
        %p738 = scmp.eq.s32.totalorder %s35, 0
        %p739 = pnand %p737, %p738
        %p740 = pneg %p739
        // Predicated region
        $region85: #{tpu_custom_call.1} parent=75 // pred_check
          _
        $region86: #{tpu_custom_call.1} parent=75 // pred_check_branch
          %742 = sbr.rel (%p739) target = $region88
        $region87: #{tpu_custom_call.1} parent=75 // pred_region
          %v743 = vld [vmem:[#allocation7] sm:$0xff]
          %v744 = vld [vmem:[#allocation7 + $0x8] sm:$0xff]
          %vm745 = vcmask 261120
          %746 = vst.msk [vmem:[#allocation2] sm:$0xff] %vm745, %v743
          %747 = vst.msk [vmem:[#allocation2 + $0x8] sm:$0xff] %vm745, %v744
        $region88: #{tpu_custom_call.1} parent=75 // pred_fallthru
          _
        // Predicated region
        $region89: #{tpu_custom_call.1} parent=75 // pred_check
          %p748 = pneg %p738
        $region90: #{tpu_custom_call.1} parent=75 // pred_check_branch
          %750 = sbr.rel (%p748) target = $region92
        $region91: #{tpu_custom_call.1} parent=75 // pred_region
          %v751 = vld [vmem:[#allocation2] sm:$0xff]
          %v752 = vld [vmem:[#allocation2 + $0x8] sm:$0xff]
          %v753 = vld [vmem:[%s699] sm:$0x1]
          %v754 = vld [vmem:[%s702] sm:$0x1]
          %vm755 = vcmask 261120
          %v756 = vsel %vm755, %v751, 0.0
          %757 = vadd.xlane.f32.xlu0 %v756
          %v758 = vpop.xlane.xlu0 %757
          %v759 = vsel %vm755, %v752, 0.0
          %760 = vadd.xlane.f32.xlu0 %v759
          %v761 = vpop.xlane.xlu0 %760
          %v762 = vrcp.pop 32.0
          %v763 = vmul.f32 %v758, %v762
          %v764 = vmul.f32 %v761, %v762
          %v765 = vmul.f32 %v751, %v751
          %v766 = vmul.f32 %v752, %v752
          %v767 = vsel %vm755, %v765, 0.0
          %768 = vadd.xlane.f32.xlu0 %v767
          %v769 = vpop.xlane.xlu0 %768
          %v770 = vsel %vm755, %v766, 0.0
          %771 = vadd.xlane.f32.xlu0 %v770
          %v772 = vpop.xlane.xlu0 %771
          %v773 = vmul.f32 %v769, %v762
          %v774 = vmul.f32 %v772, %v762
          %v775 = vmul.f32 %v763, %v763
          %v776 = vmul.f32 %v764, %v764
          %v777 = vsub.f32 %v773, %v775
          %v778 = vsub.f32 %v774, %v776
          %v779 = vmax.f32 %v777, 0.0
          %v780 = vmax.f32 %v778, 0.0
          %v781 = vsub.f32 %v751, %v763
          %v782 = vsub.f32 %v752, %v764
          %v783 = vadd.f32 %v779, 1e-05
          %v784 = vadd.f32 %v780, 1e-05
          %v785 = vrsqrt.pop %v783
          %v786 = vrsqrt.pop %v784
          %v787 = vmul.f32 %v781, %v785
          %v788 = vmul.f32 %v782, %v786
          %v790 = vlaneseq
          %v791 = vshrl.u32 %v790, 7
          %v792 = vsub.s32 0, %v791
          %v793 = vrot.slane %v753, %v792
          %v795 = vmul.f32 %v787, %v793
          %v796 = vmul.f32 %v788, %v793
          %v798 = vlaneseq
          %v799 = vshrl.u32 %v798, 7
          %v800 = vsub.s32 0, %v799
          %v801 = vrot.slane %v754, %v800
          %v803 = vadd.f32 %v795, %v801
          %v804 = vadd.f32 %v796, %v801
          %v805 = vld [vmem:[%s685] sm:$0xff]
          %v806 = vld [vmem:[%s685 + $0x8] sm:$0xff]
          %v807 = vld [vmem:[%s685 + $0x10] sm:$0xff]
          %v808 = vld [vmem:[%s685 + $0x18] sm:$0xff]
          %v809 = vld [vmem:[%s688] sm:$0x1]
          %v811 = vlaneseq
          %v812 = vshrl.u32 %v811, 7
          %v813 = vsub.s32 0, %v812
          %v814 = vrot.slane %v809, %v813
          %v817 = vsel %vm755, %v803, 0
          %v820 = vsel %vm755, %v804, 0
          %822 = vmatprep.subr.mxu0 0.0
          %823 = vmatpush1.msra.mxu0 0.0
          %824 = vmatprep.subr.mxu0 0.0
          %825 = vmatpush1.msra.mxu0 0.0
          %826 = vmatprep.subr.mxu0 0.0
          %827 = vmatpush1.msra.mxu0 0.0
          %828 = vmatprep.subr.mxu0 0.0
          %829 = vmatpush1.msra.mxu0 0.0
          %830 = vmatprep.subr.mxu0 0.0
          %831 = vmatpush1.msra.mxu0 0.0
          %832 = vmatprep.subr.mxu0 0.0
          %833 = vmatpush1.msra.mxu0 0.0
          %834 = vmatprep.subr.mxu0 0.0
          %835 = vmatpush1.msra.mxu0 0.0
          %836 = vmatprep.subr.mxu0 0.0
          %837 = vmatpush1.msra.mxu0 0.0
          %838 = vmatprep.subr.mxu0 0.0
          %839 = vmatpush1.msra.mxu0 0.0
          %840 = vmatprep.subr.mxu0 0.0
          %841 = vmatpush1.msra.mxu0 0.0
          %842 = vmatprep.subr.mxu0 0.0
          %843 = vmatpush1.msra.mxu0 0.0
          %844 = vmatprep.subr.mxu0 0.0
          %845 = vmatpush1.msra.mxu0 0.0
          %846 = vmatprep.subr.mxu0 0.0
          %847 = vmatpush1.msra.mxu0 %v808
          %848 = vmatprep.subr.mxu0 0.0
          %849 = vmatpush1.msra.mxu0 %v807
          %850 = vmatprep.subr.mxu0 0.0
          %851 = vmatpush1.msra.mxu0 %v806
          %852 = vmatprep.subr.mxu0 0.0
          %853 = vmatpush1.msra.mxu0 %v805
          %854 = vmatprep.subr.mxu0 0.0
          %855 = vmatpush2.msra.mxu0 0.0
          %856 = vmatprep.subr.mxu0 0.0
          %857 = vmatpush2.msra.mxu0 0.0
          %858 = vmatprep.subr.mxu0 0.0
          %859 = vmatpush2.msra.mxu0 0.0
          %860 = vmatprep.subr.mxu0 0.0
          %861 = vmatpush2.msra.mxu0 0.0
          %862 = vmatprep.subr.mxu0 0.0
          %863 = vmatpush2.msra.mxu0 0.0
          %864 = vmatprep.subr.mxu0 0.0
          %865 = vmatpush2.msra.mxu0 0.0
          %866 = vmatprep.subr.mxu0 0.0
          %867 = vmatpush2.msra.mxu0 0.0
          %868 = vmatprep.subr.mxu0 0.0
          %869 = vmatpush2.msra.mxu0 0.0
          %870 = vmatprep.subr.mxu0 0.0
          %871 = vmatpush2.msra.mxu0 0.0
          %872 = vmatprep.subr.mxu0 0.0
          %873 = vmatpush2.msra.mxu0 0.0
          %874 = vmatprep.subr.mxu0 0.0
          %875 = vmatpush2.msra.mxu0 0.0
          %876 = vmatprep.subr.mxu0 0.0
          %877 = vmatpush2.msra.mxu0 0.0
          %878 = vmatprep.subr.mxu0 0.0
          %879 = vmatpush2.msra.mxu0 0.0
          %880 = vmatprep.subr.mxu0 0.0
          %881 = vmatpush2.msra.mxu0 0.0
          %882 = vmatprep.subr.mxu0 0.0
          %883 = vmatpush2.msra.mxu0 0.0
          %884 = vmatprep.subr.mxu0 0.0
          %885 = vmatpush2.msra.mxu0 0.0
          %886 = vmatprep.mubr.f32.mxu0 0.0
          %887 = vmatmul.mubr.f32.gmra.mxu0 %v817
          %v888 = vpop.f32.mrf.mxu0
          %v889 = vadd.f32 %v814, %v888
          %v890 = vpop.f32.mrf.mxu0
          %891 = vmatprep.mubr.f32.mxu0 0.0
          %892 = vmatmul.mubr.f32.gmra.mxu0 %v820
          %v893 = vpop.f32.mrf.mxu0
          %v894 = vadd.f32 %v814, %v893
          %v895 = vpop.f32.mrf.mxu0
          %896 = vdwg.mxu0
          %vm897 = vcmask 785408
          %898 = vst.msk [vmem:[#allocation3] sm:$0xff] %vm897, %v889
          %899 = vst.msk [vmem:[#allocation3 + $0x8] sm:$0xff] %vm897, %v894
          %v900 = vld [vmem:[#allocation10] sm:$0x1]
          %v901 = vld [vmem:[#allocation3] sm:$0xff]
          %v903 = vlaneseq
          %v904 = vshrl.u32 %v903, 7
          %v905 = vsub.s32 0, %v904
          %v906 = vrot.slane %v900, %v905
          %909 = vrot.lane.b32.xlu0 %v901, 96
          %v910 = vpop.permute.xlu0 %909
          %vm911 = vcmask 64512
          %v912 = vsel %vm911, %v901, 0
          %v914 = vsel %vm911, %v910, 0
          %916 = vmatprep.subr.mxu0 0.0
          %917 = vmatpush1.xpose.msra.mxu0 0.0
          %918 = vmatprep.subr.mxu0 0.0
          %919 = vmatpush1.xpose.msra.mxu0 0.0
          %920 = vmatprep.subr.mxu0 0.0
          %921 = vmatpush1.xpose.msra.mxu0 0.0
          %922 = vmatprep.subr.mxu0 0.0
          %923 = vmatpush1.xpose.msra.mxu0 0.0
          %924 = vmatprep.subr.mxu0 0.0
          %925 = vmatpush1.xpose.msra.mxu0 0.0
          %926 = vmatprep.subr.mxu0 0.0
          %927 = vmatpush1.xpose.msra.mxu0 0.0
          %928 = vmatprep.subr.mxu0 0.0
          %929 = vmatpush1.xpose.msra.mxu0 0.0
          %930 = vmatprep.subr.mxu0 0.0
          %931 = vmatpush1.xpose.msra.mxu0 0.0
          %932 = vmatprep.subr.mxu0 0.0
          %933 = vmatpush1.xpose.msra.mxu0 0.0
          %934 = vmatprep.subr.mxu0 0.0
          %935 = vmatpush1.xpose.msra.mxu0 0.0
          %936 = vmatprep.subr.mxu0 0.0
          %937 = vmatpush1.xpose.msra.mxu0 0.0
          %938 = vmatprep.subr.mxu0 0.0
          %939 = vmatpush1.xpose.msra.mxu0 0.0
          %940 = vmatprep.subr.mxu0 0.0
          %941 = vmatpush1.xpose.msra.mxu0 0.0
          %942 = vmatprep.subr.mxu0 0.0
          %943 = vmatpush1.xpose.msra.mxu0 0.0
          %944 = vmatprep.subr.mxu0 0.0
          %945 = vmatpush1.xpose.msra.mxu0 0.0
          %946 = vmatprep.subr.mxu0 0.0
          %947 = vmatpush1.xpose.msra.mxu0 %v914
          %948 = vmatprep.subr.mxu0 0.0
          %949 = vmatpush2.xpose.msra.mxu0 0.0
          %950 = vmatprep.subr.mxu0 0.0
          %951 = vmatpush2.xpose.msra.mxu0 0.0
          %952 = vmatprep.subr.mxu0 0.0
          %953 = vmatpush2.xpose.msra.mxu0 0.0
          %954 = vmatprep.subr.mxu0 0.0
          %955 = vmatpush2.xpose.msra.mxu0 0.0
          %956 = vmatprep.subr.mxu0 0.0
          %957 = vmatpush2.xpose.msra.mxu0 0.0
          %958 = vmatprep.subr.mxu0 0.0
          %959 = vmatpush2.xpose.msra.mxu0 0.0
          %960 = vmatprep.subr.mxu0 0.0
          %961 = vmatpush2.xpose.msra.mxu0 0.0
          %962 = vmatprep.subr.mxu0 0.0
          %963 = vmatpush2.xpose.msra.mxu0 0.0
          %964 = vmatprep.subr.mxu0 0.0
          %965 = vmatpush2.xpose.msra.mxu0 0.0
          %966 = vmatprep.subr.mxu0 0.0
          %967 = vmatpush2.xpose.msra.mxu0 0.0
          %968 = vmatprep.subr.mxu0 0.0
          %969 = vmatpush2.xpose.msra.mxu0 0.0
          %970 = vmatprep.subr.mxu0 0.0
          %971 = vmatpush2.xpose.msra.mxu0 0.0
          %972 = vmatprep.subr.mxu0 0.0
          %973 = vmatpush2.xpose.msra.mxu0 0.0
          %974 = vmatprep.subr.mxu0 0.0
          %975 = vmatpush2.xpose.msra.mxu0 0.0
          %976 = vmatprep.subr.mxu0 0.0
          %977 = vmatpush2.xpose.msra.mxu0 0.0
          %978 = vmatprep.subr.mxu0 0.0
          %979 = vmatpush2.xpose.msra.mxu0 0.0
          %980 = vmatprep.mubr.f32.mxu0 0.0
          %981 = vmatmul.mubr.f32.gmra.mxu0 %v912
          %v982 = vpop.f32.mrf.mxu0
          %v983 = vadd.f32 %v906, %v982
          %v984 = vpop.f32.mrf.mxu0
          %985 = vdwg.mxu0
          %v986 = vsel %vm911, %v983, -inf
          %987 = vmax.xlane.f32.xlu0 %v986
          %v988 = vpop.xlane.xlu0 %987
          %v989 = vsub.f32 %v983, %v988
          %v990 = vmul.f32 %v989, 1.442695
          %v991 = vpow.pop %v990
          %v992 = vsel %vm911, %v991, 0.0
          %993 = vadd.xlane.f32.xlu0 %v992
          %v994 = vpop.xlane.xlu0 %993
          %v995 = vrcp.pop %v994
          %v996 = vmul.f32 %v991, %v995
          %997 = vrot.lane.b32.xlu0 %v901, 64
          %v998 = vpop.permute.xlu0 %997
          %v1001 = vsel %vm911, %v996, 0
          %1003 = vmatprep.subr.mxu0 0.0
          %1004 = vmatpush1.msra.mxu0 0.0
          %1005 = vmatprep.subr.mxu0 0.0
          %1006 = vmatpush1.msra.mxu0 0.0
          %1007 = vmatprep.subr.mxu0 0.0
          %1008 = vmatpush1.msra.mxu0 0.0
          %1009 = vmatprep.subr.mxu0 0.0
          %1010 = vmatpush1.msra.mxu0 0.0
          %1011 = vmatprep.subr.mxu0 0.0
          %1012 = vmatpush1.msra.mxu0 0.0
          %1013 = vmatprep.subr.mxu0 0.0
          %1014 = vmatpush1.msra.mxu0 0.0
          %1015 = vmatprep.subr.mxu0 0.0
          %1016 = vmatpush1.msra.mxu0 0.0
          %1017 = vmatprep.subr.mxu0 0.0
          %1018 = vmatpush1.msra.mxu0 0.0
          %1019 = vmatprep.subr.mxu0 0.0
          %1020 = vmatpush1.msra.mxu0 0.0
          %1021 = vmatprep.subr.mxu0 0.0
          %1022 = vmatpush1.msra.mxu0 0.0
          %1023 = vmatprep.subr.mxu0 0.0
          %1024 = vmatpush1.msra.mxu0 0.0
          %1025 = vmatprep.subr.mxu0 0.0
          %1026 = vmatpush1.msra.mxu0 0.0
          %1027 = vmatprep.subr.mxu0 0.0
          %1028 = vmatpush1.msra.mxu0 0.0
          %1029 = vmatprep.subr.mxu0 0.0
          %1030 = vmatpush1.msra.mxu0 0.0
          %1031 = vmatprep.subr.mxu0 0.0
          %1032 = vmatpush1.msra.mxu0 0.0
          %1033 = vmatprep.subr.mxu0 0.0
          %1034 = vmatpush1.msra.mxu0 %v998
          %1035 = vmatprep.subr.mxu0 0.0
          %1036 = vmatpush2.msra.mxu0 0.0
          %1037 = vmatprep.subr.mxu0 0.0
          %1038 = vmatpush2.msra.mxu0 0.0
          %1039 = vmatprep.subr.mxu0 0.0
          %1040 = vmatpush2.msra.mxu0 0.0
          %1041 = vmatprep.subr.mxu0 0.0
          %1042 = vmatpush2.msra.mxu0 0.0
          %1043 = vmatprep.subr.mxu0 0.0
          %1044 = vmatpush2.msra.mxu0 0.0
          %1045 = vmatprep.subr.mxu0 0.0
          %1046 = vmatpush2.msra.mxu0 0.0
          %1047 = vmatprep.subr.mxu0 0.0
          %1048 = vmatpush2.msra.mxu0 0.0
          %1049 = vmatprep.subr.mxu0 0.0
          %1050 = vmatpush2.msra.mxu0 0.0
          %1051 = vmatprep.subr.mxu0 0.0
          %1052 = vmatpush2.msra.mxu0 0.0
          %1053 = vmatprep.subr.mxu0 0.0
          %1054 = vmatpush2.msra.mxu0 0.0
          %1055 = vmatprep.subr.mxu0 0.0
          %1056 = vmatpush2.msra.mxu0 0.0
          %1057 = vmatprep.subr.mxu0 0.0
          %1058 = vmatpush2.msra.mxu0 0.0
          %1059 = vmatprep.subr.mxu0 0.0
          %1060 = vmatpush2.msra.mxu0 0.0
          %1061 = vmatprep.subr.mxu0 0.0
          %1062 = vmatpush2.msra.mxu0 0.0
          %1063 = vmatprep.subr.mxu0 0.0
          %1064 = vmatpush2.msra.mxu0 0.0
          %1065 = vmatprep.subr.mxu0 0.0
          %1066 = vmatpush2.msra.mxu0 0.0
          %1067 = vmatprep.mubr.f32.mxu0 0.0
          %1068 = vmatmul.mubr.f32.gmra.mxu0 %v1001
          %v1069 = vpop.f32.mrf.mxu0
          %v1070 = vadd.f32 0.0, %v1069
          %v1071 = vpop.f32.mrf.mxu0
          %1072 = vdwg.mxu0
          %1073 = vst.msk [vmem:[#allocation4] sm:$0xff] %vm911, %v1070
          %v1074 = vld [vmem:[#allocation3] sm:$0xff]
          %1076 = vrot.lane.b32.xlu0 %v1074, 120
          %v1077 = vpop.permute.xlu0 %1076
          %1078 = vrot.lane.b32.xlu0 %v1074, 88
          %v1079 = vpop.permute.xlu0 %1078
          %v1080 = vsel %vm911, %v1077, 0
          %v1082 = vsel %vm911, %v1079, 0
          %1084 = vmatprep.subr.mxu0 0.0
          %1085 = vmatpush1.xpose.msra.mxu0 0.0
          %1086 = vmatprep.subr.mxu0 0.0
          %1087 = vmatpush1.xpose.msra.mxu0 0.0
          %1088 = vmatprep.subr.mxu0 0.0
          %1089 = vmatpush1.xpose.msra.mxu0 0.0
          %1090 = vmatprep.subr.mxu0 0.0
          %1091 = vmatpush1.xpose.msra.mxu0 0.0
          %1092 = vmatprep.subr.mxu0 0.0
          %1093 = vmatpush1.xpose.msra.mxu0 0.0
          %1094 = vmatprep.subr.mxu0 0.0
          %1095 = vmatpush1.xpose.msra.mxu0 0.0
          %1096 = vmatprep.subr.mxu0 0.0
          %1097 = vmatpush1.xpose.msra.mxu0 0.0
          %1098 = vmatprep.subr.mxu0 0.0
          %1099 = vmatpush1.xpose.msra.mxu0 0.0
          %1100 = vmatprep.subr.mxu0 0.0
          %1101 = vmatpush1.xpose.msra.mxu0 0.0
          %1102 = vmatprep.subr.mxu0 0.0
          %1103 = vmatpush1.xpose.msra.mxu0 0.0
          %1104 = vmatprep.subr.mxu0 0.0
          %1105 = vmatpush1.xpose.msra.mxu0 0.0
          %1106 = vmatprep.subr.mxu0 0.0
          %1107 = vmatpush1.xpose.msra.mxu0 0.0
          %1108 = vmatprep.subr.mxu0 0.0
          %1109 = vmatpush1.xpose.msra.mxu0 0.0
          %1110 = vmatprep.subr.mxu0 0.0
          %1111 = vmatpush1.xpose.msra.mxu0 0.0
          %1112 = vmatprep.subr.mxu0 0.0
          %1113 = vmatpush1.xpose.msra.mxu0 0.0
          %1114 = vmatprep.subr.mxu0 0.0
          %1115 = vmatpush1.xpose.msra.mxu0 %v1082
          %1116 = vmatprep.subr.mxu0 0.0
          %1117 = vmatpush2.xpose.msra.mxu0 0.0
          %1118 = vmatprep.subr.mxu0 0.0
          %1119 = vmatpush2.xpose.msra.mxu0 0.0
          %1120 = vmatprep.subr.mxu0 0.0
          %1121 = vmatpush2.xpose.msra.mxu0 0.0
          %1122 = vmatprep.subr.mxu0 0.0
          %1123 = vmatpush2.xpose.msra.mxu0 0.0
          %1124 = vmatprep.subr.mxu0 0.0
          %1125 = vmatpush2.xpose.msra.mxu0 0.0
          %1126 = vmatprep.subr.mxu0 0.0
          %1127 = vmatpush2.xpose.msra.mxu0 0.0
          %1128 = vmatprep.subr.mxu0 0.0
          %1129 = vmatpush2.xpose.msra.mxu0 0.0
          %1130 = vmatprep.subr.mxu0 0.0
          %1131 = vmatpush2.xpose.msra.mxu0 0.0
          %1132 = vmatprep.subr.mxu0 0.0
          %1133 = vmatpush2.xpose.msra.mxu0 0.0
          %1134 = vmatprep.subr.mxu0 0.0
          %1135 = vmatpush2.xpose.msra.mxu0 0.0
          %1136 = vmatprep.subr.mxu0 0.0
          %1137 = vmatpush2.xpose.msra.mxu0 0.0
          %1138 = vmatprep.subr.mxu0 0.0
          %1139 = vmatpush2.xpose.msra.mxu0 0.0
          %1140 = vmatprep.subr.mxu0 0.0
          %1141 = vmatpush2.xpose.msra.mxu0 0.0
          %1142 = vmatprep.subr.mxu0 0.0
          %1143 = vmatpush2.xpose.msra.mxu0 0.0
          %1144 = vmatprep.subr.mxu0 0.0
          %1145 = vmatpush2.xpose.msra.mxu0 0.0
          %1146 = vmatprep.subr.mxu0 0.0
          %1147 = vmatpush2.xpose.msra.mxu0 0.0
          %1148 = vmatprep.mubr.f32.mxu0 0.0
          %1149 = vmatmul.mubr.f32.gmra.mxu0 %v1080
          %v1150 = vpop.f32.mrf.mxu0
          %v1151 = vadd.f32 %v906, %v1150
          %v1152 = vpop.f32.mrf.mxu0
          %1153 = vdwg.mxu0
          %v1154 = vsel %vm911, %v1151, -inf
          %1155 = vmax.xlane.f32.xlu0 %v1154
          %v1156 = vpop.xlane.xlu0 %1155
          %v1157 = vsub.f32 %v1151, %v1156
          %v1158 = vmul.f32 %v1157, 1.442695
          %v1159 = vpow.pop %v1158
          %v1160 = vsel %vm911, %v1159, 0.0
          %1161 = vadd.xlane.f32.xlu0 %v1160
          %v1162 = vpop.xlane.xlu0 %1161
          %v1163 = vrcp.pop %v1162
          %v1164 = vmul.f32 %v1159, %v1163
          %1165 = vrot.lane.b32.xlu0 %v1074, 56
          %v1166 = vpop.permute.xlu0 %1165
          %v1169 = vsel %vm911, %v1164, 0
          %1171 = vmatprep.subr.mxu0 0.0
          %1172 = vmatpush1.msra.mxu0 0.0
          %1173 = vmatprep.subr.mxu0 0.0
          %1174 = vmatpush1.msra.mxu0 0.0
          %1175 = vmatprep.subr.mxu0 0.0
          %1176 = vmatpush1.msra.mxu0 0.0
          %1177 = vmatprep.subr.mxu0 0.0
          %1178 = vmatpush1.msra.mxu0 0.0
          %1179 = vmatprep.subr.mxu0 0.0
          %1180 = vmatpush1.msra.mxu0 0.0
          %1181 = vmatprep.subr.mxu0 0.0
          %1182 = vmatpush1.msra.mxu0 0.0
          %1183 = vmatprep.subr.mxu0 0.0
          %1184 = vmatpush1.msra.mxu0 0.0
          %1185 = vmatprep.subr.mxu0 0.0
          %1186 = vmatpush1.msra.mxu0 0.0
          %1187 = vmatprep.subr.mxu0 0.0
          %1188 = vmatpush1.msra.mxu0 0.0
          %1189 = vmatprep.subr.mxu0 0.0
          %1190 = vmatpush1.msra.mxu0 0.0
          %1191 = vmatprep.subr.mxu0 0.0
          %1192 = vmatpush1.msra.mxu0 0.0
          %1193 = vmatprep.subr.mxu0 0.0
          %1194 = vmatpush1.msra.mxu0 0.0
          %1195 = vmatprep.subr.mxu0 0.0
          %1196 = vmatpush1.msra.mxu0 0.0
          %1197 = vmatprep.subr.mxu0 0.0
          %1198 = vmatpush1.msra.mxu0 0.0
          %1199 = vmatprep.subr.mxu0 0.0
          %1200 = vmatpush1.msra.mxu0 0.0
          %1201 = vmatprep.subr.mxu0 0.0
          %1202 = vmatpush1.msra.mxu0 %v1166
          %1203 = vmatprep.subr.mxu0 0.0
          %1204 = vmatpush2.msra.mxu0 0.0
          %1205 = vmatprep.subr.mxu0 0.0
          %1206 = vmatpush2.msra.mxu0 0.0
          %1207 = vmatprep.subr.mxu0 0.0
          %1208 = vmatpush2.msra.mxu0 0.0
          %1209 = vmatprep.subr.mxu0 0.0
          %1210 = vmatpush2.msra.mxu0 0.0
          %1211 = vmatprep.subr.mxu0 0.0
          %1212 = vmatpush2.msra.mxu0 0.0
          %1213 = vmatprep.subr.mxu0 0.0
          %1214 = vmatpush2.msra.mxu0 0.0
          %1215 = vmatprep.subr.mxu0 0.0
          %1216 = vmatpush2.msra.mxu0 0.0
          %1217 = vmatprep.subr.mxu0 0.0
          %1218 = vmatpush2.msra.mxu0 0.0
          %1219 = vmatprep.subr.mxu0 0.0
          %1220 = vmatpush2.msra.mxu0 0.0
          %1221 = vmatprep.subr.mxu0 0.0
          %1222 = vmatpush2.msra.mxu0 0.0
          %1223 = vmatprep.subr.mxu0 0.0
          %1224 = vmatpush2.msra.mxu0 0.0
          %1225 = vmatprep.subr.mxu0 0.0
          %1226 = vmatpush2.msra.mxu0 0.0
          %1227 = vmatprep.subr.mxu0 0.0
          %1228 = vmatpush2.msra.mxu0 0.0
          %1229 = vmatprep.subr.mxu0 0.0
          %1230 = vmatpush2.msra.mxu0 0.0
          %1231 = vmatprep.subr.mxu0 0.0
          %1232 = vmatpush2.msra.mxu0 0.0
          %1233 = vmatprep.subr.mxu0 0.0
          %1234 = vmatpush2.msra.mxu0 0.0
          %1235 = vmatprep.mubr.f32.mxu0 0.0
          %1236 = vmatmul.mubr.f32.gmra.mxu0 %v1169
          %v1237 = vpop.f32.mrf.mxu0
          %v1238 = vadd.f32 0.0, %v1237
          %v1239 = vpop.f32.mrf.mxu0
          %1240 = vdwg.mxu0
          %1242 = vrot.lane.b32.xlu0 %v1238, 8
          %v1243 = vpop.permute.xlu0 %1242
          %vm1245 = vcmask 130112
          %1246 = vst.msk [vmem:[#allocation4] sm:$0xff] %vm1245, %v1243
          %v1247 = vld [vmem:[#allocation3] sm:$0xff]
          %1249 = vrot.lane.b32.xlu0 %v1247, 112
          %v1250 = vpop.permute.xlu0 %1249
          %1251 = vrot.lane.b32.xlu0 %v1247, 80
          %v1252 = vpop.permute.xlu0 %1251
          %v1253 = vsel %vm911, %v1250, 0
          %v1255 = vsel %vm911, %v1252, 0
          %1257 = vmatprep.subr.mxu0 0.0
          %1258 = vmatpush1.xpose.msra.mxu0 0.0
          %1259 = vmatprep.subr.mxu0 0.0
          %1260 = vmatpush1.xpose.msra.mxu0 0.0
          %1261 = vmatprep.subr.mxu0 0.0
          %1262 = vmatpush1.xpose.msra.mxu0 0.0
          %1263 = vmatprep.subr.mxu0 0.0
          %1264 = vmatpush1.xpose.msra.mxu0 0.0
          %1265 = vmatprep.subr.mxu0 0.0
          %1266 = vmatpush1.xpose.msra.mxu0 0.0
          %1267 = vmatprep.subr.mxu0 0.0
          %1268 = vmatpush1.xpose.msra.mxu0 0.0
          %1269 = vmatprep.subr.mxu0 0.0
          %1270 = vmatpush1.xpose.msra.mxu0 0.0
          %1271 = vmatprep.subr.mxu0 0.0
          %1272 = vmatpush1.xpose.msra.mxu0 0.0
          %1273 = vmatprep.subr.mxu0 0.0
          %1274 = vmatpush1.xpose.msra.mxu0 0.0
          %1275 = vmatprep.subr.mxu0 0.0
          %1276 = vmatpush1.xpose.msra.mxu0 0.0
          %1277 = vmatprep.subr.mxu0 0.0
          %1278 = vmatpush1.xpose.msra.mxu0 0.0
          %1279 = vmatprep.subr.mxu0 0.0
          %1280 = vmatpush1.xpose.msra.mxu0 0.0
          %1281 = vmatprep.subr.mxu0 0.0
          %1282 = vmatpush1.xpose.msra.mxu0 0.0
          %1283 = vmatprep.subr.mxu0 0.0
          %1284 = vmatpush1.xpose.msra.mxu0 0.0
          %1285 = vmatprep.subr.mxu0 0.0
          %1286 = vmatpush1.xpose.msra.mxu0 0.0
          %1287 = vmatprep.subr.mxu0 0.0
          %1288 = vmatpush1.xpose.msra.mxu0 %v1255
          %1289 = vmatprep.subr.mxu0 0.0
          %1290 = vmatpush2.xpose.msra.mxu0 0.0
          %1291 = vmatprep.subr.mxu0 0.0
          %1292 = vmatpush2.xpose.msra.mxu0 0.0
          %1293 = vmatprep.subr.mxu0 0.0
          %1294 = vmatpush2.xpose.msra.mxu0 0.0
          %1295 = vmatprep.subr.mxu0 0.0
          %1296 = vmatpush2.xpose.msra.mxu0 0.0
          %1297 = vmatprep.subr.mxu0 0.0
          %1298 = vmatpush2.xpose.msra.mxu0 0.0
          %1299 = vmatprep.subr.mxu0 0.0
          %1300 = vmatpush2.xpose.msra.mxu0 0.0
          %1301 = vmatprep.subr.mxu0 0.0
          %1302 = vmatpush2.xpose.msra.mxu0 0.0
          %1303 = vmatprep.subr.mxu0 0.0
          %1304 = vmatpush2.xpose.msra.mxu0 0.0
          %1305 = vmatprep.subr.mxu0 0.0
          %1306 = vmatpush2.xpose.msra.mxu0 0.0
          %1307 = vmatprep.subr.mxu0 0.0
          %1308 = vmatpush2.xpose.msra.mxu0 0.0
          %1309 = vmatprep.subr.mxu0 0.0
          %1310 = vmatpush2.xpose.msra.mxu0 0.0
          %1311 = vmatprep.subr.mxu0 0.0
          %1312 = vmatpush2.xpose.msra.mxu0 0.0
          %1313 = vmatprep.subr.mxu0 0.0
          %1314 = vmatpush2.xpose.msra.mxu0 0.0
          %1315 = vmatprep.subr.mxu0 0.0
          %1316 = vmatpush2.xpose.msra.mxu0 0.0
          %1317 = vmatprep.subr.mxu0 0.0
          %1318 = vmatpush2.xpose.msra.mxu0 0.0
          %1319 = vmatprep.subr.mxu0 0.0
          %1320 = vmatpush2.xpose.msra.mxu0 0.0
          %1321 = vmatprep.mubr.f32.mxu0 0.0
          %1322 = vmatmul.mubr.f32.gmra.mxu0 %v1253
          %v1323 = vpop.f32.mrf.mxu0
          %v1324 = vadd.f32 %v906, %v1323
          %v1325 = vpop.f32.mrf.mxu0
          %1326 = vdwg.mxu0
          %v1327 = vsel %vm911, %v1324, -inf
          %1328 = vmax.xlane.f32.xlu0 %v1327
          %v1329 = vpop.xlane.xlu0 %1328
          %v1330 = vsub.f32 %v1324, %v1329
          %v1331 = vmul.f32 %v1330, 1.442695
          %v1332 = vpow.pop %v1331
          %v1333 = vsel %vm911, %v1332, 0.0
          %1334 = vadd.xlane.f32.xlu0 %v1333
          %v1335 = vpop.xlane.xlu0 %1334
          %v1336 = vrcp.pop %v1335
          %v1337 = vmul.f32 %v1332, %v1336
          %1338 = vrot.lane.b32.xlu0 %v1247, 48
          %v1339 = vpop.permute.xlu0 %1338
          %v1342 = vsel %vm911, %v1337, 0
          %1344 = vmatprep.subr.mxu0 0.0
          %1345 = vmatpush1.msra.mxu0 0.0
          %1346 = vmatprep.subr.mxu0 0.0
          %1347 = vmatpush1.msra.mxu0 0.0
          %1348 = vmatprep.subr.mxu0 0.0
          %1349 = vmatpush1.msra.mxu0 0.0
          %1350 = vmatprep.subr.mxu0 0.0
          %1351 = vmatpush1.msra.mxu0 0.0
          %1352 = vmatprep.subr.mxu0 0.0
          %1353 = vmatpush1.msra.mxu0 0.0
          %1354 = vmatprep.subr.mxu0 0.0
          %1355 = vmatpush1.msra.mxu0 0.0
          %1356 = vmatprep.subr.mxu0 0.0
          %1357 = vmatpush1.msra.mxu0 0.0
          %1358 = vmatprep.subr.mxu0 0.0
          %1359 = vmatpush1.msra.mxu0 0.0
          %1360 = vmatprep.subr.mxu0 0.0
          %1361 = vmatpush1.msra.mxu0 0.0
          %1362 = vmatprep.subr.mxu0 0.0
          %1363 = vmatpush1.msra.mxu0 0.0
          %1364 = vmatprep.subr.mxu0 0.0
          %1365 = vmatpush1.msra.mxu0 0.0
          %1366 = vmatprep.subr.mxu0 0.0
          %1367 = vmatpush1.msra.mxu0 0.0
          %1368 = vmatprep.subr.mxu0 0.0
          %1369 = vmatpush1.msra.mxu0 0.0
          %1370 = vmatprep.subr.mxu0 0.0
          %1371 = vmatpush1.msra.mxu0 0.0
          %1372 = vmatprep.subr.mxu0 0.0
          %1373 = vmatpush1.msra.mxu0 0.0
          %1374 = vmatprep.subr.mxu0 0.0
          %1375 = vmatpush1.msra.mxu0 %v1339
          %1376 = vmatprep.subr.mxu0 0.0
          %1377 = vmatpush2.msra.mxu0 0.0
          %1378 = vmatprep.subr.mxu0 0.0
          %1379 = vmatpush2.msra.mxu0 0.0
          %1380 = vmatprep.subr.mxu0 0.0
          %1381 = vmatpush2.msra.mxu0 0.0
          %1382 = vmatprep.subr.mxu0 0.0
          %1383 = vmatpush2.msra.mxu0 0.0
          %1384 = vmatprep.subr.mxu0 0.0
          %1385 = vmatpush2.msra.mxu0 0.0
          %1386 = vmatprep.subr.mxu0 0.0
          %1387 = vmatpush2.msra.mxu0 0.0
          %1388 = vmatprep.subr.mxu0 0.0
          %1389 = vmatpush2.msra.mxu0 0.0
          %1390 = vmatprep.subr.mxu0 0.0
          %1391 = vmatpush2.msra.mxu0 0.0
          %1392 = vmatprep.subr.mxu0 0.0
          %1393 = vmatpush2.msra.mxu0 0.0
          %1394 = vmatprep.subr.mxu0 0.0
          %1395 = vmatpush2.msra.mxu0 0.0
          %1396 = vmatprep.subr.mxu0 0.0
          %1397 = vmatpush2.msra.mxu0 0.0
          %1398 = vmatprep.subr.mxu0 0.0
          %1399 = vmatpush2.msra.mxu0 0.0
          %1400 = vmatprep.subr.mxu0 0.0
          %1401 = vmatpush2.msra.mxu0 0.0
          %1402 = vmatprep.subr.mxu0 0.0
          %1403 = vmatpush2.msra.mxu0 0.0
          %1404 = vmatprep.subr.mxu0 0.0
          %1405 = vmatpush2.msra.mxu0 0.0
          %1406 = vmatprep.subr.mxu0 0.0
          %1407 = vmatpush2.msra.mxu0 0.0
          %1408 = vmatprep.mubr.f32.mxu0 0.0
          %1409 = vmatmul.mubr.f32.gmra.mxu0 %v1342
          %v1410 = vpop.f32.mrf.mxu0
          %v1411 = vadd.f32 0.0, %v1410
          %v1412 = vpop.f32.mrf.mxu0
          %1413 = vdwg.mxu0
          %1415 = vrot.lane.b32.xlu0 %v1411, 16
          %v1416 = vpop.permute.xlu0 %1415
          %vm1418 = vcmask 195712
          %1419 = vst.msk [vmem:[#allocation4] sm:$0xff] %vm1418, %v1416
          %v1420 = vld [vmem:[#allocation3] sm:$0xff]
          %1422 = vrot.lane.b32.xlu0 %v1420, 104
          %v1423 = vpop.permute.xlu0 %1422
          %1424 = vrot.lane.b32.xlu0 %v1420, 72
          %v1425 = vpop.permute.xlu0 %1424
          %v1426 = vsel %vm911, %v1423, 0
          %v1428 = vsel %vm911, %v1425, 0
          %1430 = vmatprep.subr.mxu0 0.0
          %1431 = vmatpush1.xpose.msra.mxu0 0.0
          %1432 = vmatprep.subr.mxu0 0.0
          %1433 = vmatpush1.xpose.msra.mxu0 0.0
          %1434 = vmatprep.subr.mxu0 0.0
          %1435 = vmatpush1.xpose.msra.mxu0 0.0
          %1436 = vmatprep.subr.mxu0 0.0
          %1437 = vmatpush1.xpose.msra.mxu0 0.0
          %1438 = vmatprep.subr.mxu0 0.0
          %1439 = vmatpush1.xpose.msra.mxu0 0.0
          %1440 = vmatprep.subr.mxu0 0.0
          %1441 = vmatpush1.xpose.msra.mxu0 0.0
          %1442 = vmatprep.subr.mxu0 0.0
          %1443 = vmatpush1.xpose.msra.mxu0 0.0
          %1444 = vmatprep.subr.mxu0 0.0
          %1445 = vmatpush1.xpose.msra.mxu0 0.0
          %1446 = vmatprep.subr.mxu0 0.0
          %1447 = vmatpush1.xpose.msra.mxu0 0.0
          %1448 = vmatprep.subr.mxu0 0.0
          %1449 = vmatpush1.xpose.msra.mxu0 0.0
          %1450 = vmatprep.subr.mxu0 0.0
          %1451 = vmatpush1.xpose.msra.mxu0 0.0
          %1452 = vmatprep.subr.mxu0 0.0
          %1453 = vmatpush1.xpose.msra.mxu0 0.0
          %1454 = vmatprep.subr.mxu0 0.0
          %1455 = vmatpush1.xpose.msra.mxu0 0.0
          %1456 = vmatprep.subr.mxu0 0.0
          %1457 = vmatpush1.xpose.msra.mxu0 0.0
          %1458 = vmatprep.subr.mxu0 0.0
          %1459 = vmatpush1.xpose.msra.mxu0 0.0
          %1460 = vmatprep.subr.mxu0 0.0
          %1461 = vmatpush1.xpose.msra.mxu0 %v1428
          %1462 = vmatprep.subr.mxu0 0.0
          %1463 = vmatpush2.xpose.msra.mxu0 0.0
          %1464 = vmatprep.subr.mxu0 0.0
          %1465 = vmatpush2.xpose.msra.mxu0 0.0
          %1466 = vmatprep.subr.mxu0 0.0
          %1467 = vmatpush2.xpose.msra.mxu0 0.0
          %1468 = vmatprep.subr.mxu0 0.0
          %1469 = vmatpush2.xpose.msra.mxu0 0.0
          %1470 = vmatprep.subr.mxu0 0.0
          %1471 = vmatpush2.xpose.msra.mxu0 0.0
          %1472 = vmatprep.subr.mxu0 0.0
          %1473 = vmatpush2.xpose.msra.mxu0 0.0
          %1474 = vmatprep.subr.mxu0 0.0
          %1475 = vmatpush2.xpose.msra.mxu0 0.0
          %1476 = vmatprep.subr.mxu0 0.0
          %1477 = vmatpush2.xpose.msra.mxu0 0.0
          %1478 = vmatprep.subr.mxu0 0.0
          %1479 = vmatpush2.xpose.msra.mxu0 0.0
          %1480 = vmatprep.subr.mxu0 0.0
          %1481 = vmatpush2.xpose.msra.mxu0 0.0
          %1482 = vmatprep.subr.mxu0 0.0
          %1483 = vmatpush2.xpose.msra.mxu0 0.0
          %1484 = vmatprep.subr.mxu0 0.0
          %1485 = vmatpush2.xpose.msra.mxu0 0.0
          %1486 = vmatprep.subr.mxu0 0.0
          %1487 = vmatpush2.xpose.msra.mxu0 0.0
          %1488 = vmatprep.subr.mxu0 0.0
          %1489 = vmatpush2.xpose.msra.mxu0 0.0
          %1490 = vmatprep.subr.mxu0 0.0
          %1491 = vmatpush2.xpose.msra.mxu0 0.0
          %1492 = vmatprep.subr.mxu0 0.0
          %1493 = vmatpush2.xpose.msra.mxu0 0.0
          %1494 = vmatprep.mubr.f32.mxu0 0.0
          %1495 = vmatmul.mubr.f32.gmra.mxu0 %v1426
          %v1496 = vpop.f32.mrf.mxu0
          %v1497 = vadd.f32 %v906, %v1496
          %v1498 = vpop.f32.mrf.mxu0
          %1499 = vdwg.mxu0
          %v1500 = vsel %vm911, %v1497, -inf
          %1501 = vmax.xlane.f32.xlu0 %v1500
          %v1502 = vpop.xlane.xlu0 %1501
          %v1503 = vsub.f32 %v1497, %v1502
          %v1504 = vmul.f32 %v1503, 1.442695
          %v1505 = vpow.pop %v1504
          %v1506 = vsel %vm911, %v1505, 0.0
          %1507 = vadd.xlane.f32.xlu0 %v1506
          %v1508 = vpop.xlane.xlu0 %1507
          %v1509 = vrcp.pop %v1508
          %v1510 = vmul.f32 %v1505, %v1509
          %1511 = vrot.lane.b32.xlu0 %v1420, 40
          %v1512 = vpop.permute.xlu0 %1511
          %v1515 = vsel %vm911, %v1510, 0
          %1517 = vmatprep.subr.mxu0 0.0
          %1518 = vmatpush1.msra.mxu0 0.0
          %1519 = vmatprep.subr.mxu0 0.0
          %1520 = vmatpush1.msra.mxu0 0.0
          %1521 = vmatprep.subr.mxu0 0.0
          %1522 = vmatpush1.msra.mxu0 0.0
          %1523 = vmatprep.subr.mxu0 0.0
          %1524 = vmatpush1.msra.mxu0 0.0
          %1525 = vmatprep.subr.mxu0 0.0
          %1526 = vmatpush1.msra.mxu0 0.0
          %1527 = vmatprep.subr.mxu0 0.0
          %1528 = vmatpush1.msra.mxu0 0.0
          %1529 = vmatprep.subr.mxu0 0.0
          %1530 = vmatpush1.msra.mxu0 0.0
          %1531 = vmatprep.subr.mxu0 0.0
          %1532 = vmatpush1.msra.mxu0 0.0
          %1533 = vmatprep.subr.mxu0 0.0
          %1534 = vmatpush1.msra.mxu0 0.0
          %1535 = vmatprep.subr.mxu0 0.0
          %1536 = vmatpush1.msra.mxu0 0.0
          %1537 = vmatprep.subr.mxu0 0.0
          %1538 = vmatpush1.msra.mxu0 0.0
          %1539 = vmatprep.subr.mxu0 0.0
          %1540 = vmatpush1.msra.mxu0 0.0
          %1541 = vmatprep.subr.mxu0 0.0
          %1542 = vmatpush1.msra.mxu0 0.0
          %1543 = vmatprep.subr.mxu0 0.0
          %1544 = vmatpush1.msra.mxu0 0.0
          %1545 = vmatprep.subr.mxu0 0.0
          %1546 = vmatpush1.msra.mxu0 0.0
          %1547 = vmatprep.subr.mxu0 0.0
          %1548 = vmatpush1.msra.mxu0 %v1512
          %1549 = vmatprep.subr.mxu0 0.0
          %1550 = vmatpush2.msra.mxu0 0.0
          %1551 = vmatprep.subr.mxu0 0.0
          %1552 = vmatpush2.msra.mxu0 0.0
          %1553 = vmatprep.subr.mxu0 0.0
          %1554 = vmatpush2.msra.mxu0 0.0
          %1555 = vmatprep.subr.mxu0 0.0
          %1556 = vmatpush2.msra.mxu0 0.0
          %1557 = vmatprep.subr.mxu0 0.0
          %1558 = vmatpush2.msra.mxu0 0.0
          %1559 = vmatprep.subr.mxu0 0.0
          %1560 = vmatpush2.msra.mxu0 0.0
          %1561 = vmatprep.subr.mxu0 0.0
          %1562 = vmatpush2.msra.mxu0 0.0
          %1563 = vmatprep.subr.mxu0 0.0
          %1564 = vmatpush2.msra.mxu0 0.0
          %1565 = vmatprep.subr.mxu0 0.0
          %1566 = vmatpush2.msra.mxu0 0.0
          %1567 = vmatprep.subr.mxu0 0.0
          %1568 = vmatpush2.msra.mxu0 0.0
          %1569 = vmatprep.subr.mxu0 0.0
          %1570 = vmatpush2.msra.mxu0 0.0
          %1571 = vmatprep.subr.mxu0 0.0
          %1572 = vmatpush2.msra.mxu0 0.0
          %1573 = vmatprep.subr.mxu0 0.0
          %1574 = vmatpush2.msra.mxu0 0.0
          %1575 = vmatprep.subr.mxu0 0.0
          %1576 = vmatpush2.msra.mxu0 0.0
          %1577 = vmatprep.subr.mxu0 0.0
          %1578 = vmatpush2.msra.mxu0 0.0
          %1579 = vmatprep.subr.mxu0 0.0
          %1580 = vmatpush2.msra.mxu0 0.0
          %1581 = vmatprep.mubr.f32.mxu0 0.0
          %1582 = vmatmul.mubr.f32.gmra.mxu0 %v1515
          %v1583 = vpop.f32.mrf.mxu0
          %v1584 = vadd.f32 0.0, %v1583
          %v1585 = vpop.f32.mrf.mxu0
          %1586 = vdwg.mxu0
          %1588 = vrot.lane.b32.xlu0 %v1584, 24
          %v1589 = vpop.permute.xlu0 %1588
          %vm1591 = vcmask 261312
          %1592 = vst.msk [vmem:[#allocation4] sm:$0xff] %vm1591, %v1589
          %v1593 = vld [vmem:[#allocation4] sm:$0xff]
          %v1594 = vld [vmem:[%s693] sm:$0xff]
          %v1595 = vld [vmem:[%s693 + $0x8] sm:$0xff]
          %v1596 = vld [vmem:[%s693 + $0x10] sm:$0xff]
          %v1597 = vld [vmem:[%s693 + $0x18] sm:$0xff]
          %v1599 = vsel %vm755, %v1593, 0
          %1601 = vmatprep.subr.mxu0 0.0
          %1602 = vmatpush1.msra.mxu0 0.0
          %1603 = vmatprep.subr.mxu0 0.0
          %1604 = vmatpush1.msra.mxu0 0.0
          %1605 = vmatprep.subr.mxu0 0.0
          %1606 = vmatpush1.msra.mxu0 0.0
          %1607 = vmatprep.subr.mxu0 0.0
          %1608 = vmatpush1.msra.mxu0 0.0
          %1609 = vmatprep.subr.mxu0 0.0
          %1610 = vmatpush1.msra.mxu0 0.0
          %1611 = vmatprep.subr.mxu0 0.0
          %1612 = vmatpush1.msra.mxu0 0.0
          %1613 = vmatprep.subr.mxu0 0.0
          %1614 = vmatpush1.msra.mxu0 0.0
          %1615 = vmatprep.subr.mxu0 0.0
          %1616 = vmatpush1.msra.mxu0 0.0
          %1617 = vmatprep.subr.mxu0 0.0
          %1618 = vmatpush1.msra.mxu0 0.0
          %1619 = vmatprep.subr.mxu0 0.0
          %1620 = vmatpush1.msra.mxu0 0.0
          %1621 = vmatprep.subr.mxu0 0.0
          %1622 = vmatpush1.msra.mxu0 0.0
          %1623 = vmatprep.subr.mxu0 0.0
          %1624 = vmatpush1.msra.mxu0 0.0
          %1625 = vmatprep.subr.mxu0 0.0
          %1626 = vmatpush1.msra.mxu0 %v1597
          %1627 = vmatprep.subr.mxu0 0.0
          %1628 = vmatpush1.msra.mxu0 %v1596
          %1629 = vmatprep.subr.mxu0 0.0
          %1630 = vmatpush1.msra.mxu0 %v1595
          %1631 = vmatprep.subr.mxu0 0.0
          %1632 = vmatpush1.msra.mxu0 %v1594
          %1633 = vmatprep.subr.mxu0 0.0
          %1634 = vmatpush2.msra.mxu0 0.0
          %1635 = vmatprep.subr.mxu0 0.0
          %1636 = vmatpush2.msra.mxu0 0.0
          %1637 = vmatprep.subr.mxu0 0.0
          %1638 = vmatpush2.msra.mxu0 0.0
          %1639 = vmatprep.subr.mxu0 0.0
          %1640 = vmatpush2.msra.mxu0 0.0
          %1641 = vmatprep.subr.mxu0 0.0
          %1642 = vmatpush2.msra.mxu0 0.0
          %1643 = vmatprep.subr.mxu0 0.0
          %1644 = vmatpush2.msra.mxu0 0.0
          %1645 = vmatprep.subr.mxu0 0.0
          %1646 = vmatpush2.msra.mxu0 0.0
          %1647 = vmatprep.subr.mxu0 0.0
          %1648 = vmatpush2.msra.mxu0 0.0
          %1649 = vmatprep.subr.mxu0 0.0
          %1650 = vmatpush2.msra.mxu0 0.0
          %1651 = vmatprep.subr.mxu0 0.0
          %1652 = vmatpush2.msra.mxu0 0.0
          %1653 = vmatprep.subr.mxu0 0.0
          %1654 = vmatpush2.msra.mxu0 0.0
          %1655 = vmatprep.subr.mxu0 0.0
          %1656 = vmatpush2.msra.mxu0 0.0
          %1657 = vmatprep.subr.mxu0 0.0
          %1658 = vmatpush2.msra.mxu0 0.0
          %1659 = vmatprep.subr.mxu0 0.0
          %1660 = vmatpush2.msra.mxu0 0.0
          %1661 = vmatprep.subr.mxu0 0.0
          %1662 = vmatpush2.msra.mxu0 0.0
          %1663 = vmatprep.subr.mxu0 0.0
          %1664 = vmatpush2.msra.mxu0 0.0
          %1665 = vmatprep.mubr.f32.mxu0 0.0
          %1666 = vmatmul.mubr.f32.gmra.mxu0 %v1599
          %v1667 = vpop.f32.mrf.mxu0
          %v1668 = vadd.f32 0.0, %v1667
          %v1669 = vpop.f32.mrf.mxu0
          %1670 = vdwg.mxu0
          %v1671 = vld [vmem:[#allocation2] sm:$0xff]
          %v1672 = vadd.f32 %v1671, %v1668
          %v1673 = vld [vmem:[%s696] sm:$0x1]
          %v1675 = vlaneseq
          %v1676 = vshrl.u32 %v1675, 7
          %v1677 = vsub.s32 0, %v1676
          %v1678 = vrot.slane %v1673, %v1677
          %v1680 = vadd.f32 %v1672, %v1678
          %1681 = vst.msk [vmem:[#allocation2] sm:$0xff] %vm755, %v1680
          %s1682 = scalar_lea.vmem [#allocation10], 1
          %v1683 = vld [vmem:[%s1682] sm:$0x1]
          %v1684 = vld [vmem:[#allocation3 + $0x8] sm:$0xff]
          %v1686 = vlaneseq
          %v1687 = vshrl.u32 %v1686, 7
          %v1688 = vsub.s32 0, %v1687
          %v1689 = vrot.slane %v1683, %v1688
          %1692 = vrot.lane.b32.xlu0 %v1684, 96
          %v1693 = vpop.permute.xlu0 %1692
          %v1694 = vsel %vm911, %v1684, 0
          %v1696 = vsel %vm911, %v1693, 0
          %1698 = vmatprep.subr.mxu0 0.0
          %1699 = vmatpush1.xpose.msra.mxu0 0.0
          %1700 = vmatprep.subr.mxu0 0.0
          %1701 = vmatpush1.xpose.msra.mxu0 0.0
          %1702 = vmatprep.subr.mxu0 0.0
          %1703 = vmatpush1.xpose.msra.mxu0 0.0
          %1704 = vmatprep.subr.mxu0 0.0
          %1705 = vmatpush1.xpose.msra.mxu0 0.0
          %1706 = vmatprep.subr.mxu0 0.0
          %1707 = vmatpush1.xpose.msra.mxu0 0.0
          %1708 = vmatprep.subr.mxu0 0.0
          %1709 = vmatpush1.xpose.msra.mxu0 0.0
          %1710 = vmatprep.subr.mxu0 0.0
          %1711 = vmatpush1.xpose.msra.mxu0 0.0
          %1712 = vmatprep.subr.mxu0 0.0
          %1713 = vmatpush1.xpose.msra.mxu0 0.0
          %1714 = vmatprep.subr.mxu0 0.0
          %1715 = vmatpush1.xpose.msra.mxu0 0.0
          %1716 = vmatprep.subr.mxu0 0.0
          %1717 = vmatpush1.xpose.msra.mxu0 0.0
          %1718 = vmatprep.subr.mxu0 0.0
          %1719 = vmatpush1.xpose.msra.mxu0 0.0
          %1720 = vmatprep.subr.mxu0 0.0
          %1721 = vmatpush1.xpose.msra.mxu0 0.0
          %1722 = vmatprep.subr.mxu0 0.0
          %1723 = vmatpush1.xpose.msra.mxu0 0.0
          %1724 = vmatprep.subr.mxu0 0.0
          %1725 = vmatpush1.xpose.msra.mxu0 0.0
          %1726 = vmatprep.subr.mxu0 0.0
          %1727 = vmatpush1.xpose.msra.mxu0 0.0
          %1728 = vmatprep.subr.mxu0 0.0
          %1729 = vmatpush1.xpose.msra.mxu0 %v1696
          %1730 = vmatprep.subr.mxu0 0.0
          %1731 = vmatpush2.xpose.msra.mxu0 0.0
          %1732 = vmatprep.subr.mxu0 0.0
          %1733 = vmatpush2.xpose.msra.mxu0 0.0
          %1734 = vmatprep.subr.mxu0 0.0
          %1735 = vmatpush2.xpose.msra.mxu0 0.0
          %1736 = vmatprep.subr.mxu0 0.0
          %1737 = vmatpush2.xpose.msra.mxu0 0.0
          %1738 = vmatprep.subr.mxu0 0.0
          %1739 = vmatpush2.xpose.msra.mxu0 0.0
          %1740 = vmatprep.subr.mxu0 0.0
          %1741 = vmatpush2.xpose.msra.mxu0 0.0
          %1742 = vmatprep.subr.mxu0 0.0
          %1743 = vmatpush2.xpose.msra.mxu0 0.0
          %1744 = vmatprep.subr.mxu0 0.0
          %1745 = vmatpush2.xpose.msra.mxu0 0.0
          %1746 = vmatprep.subr.mxu0 0.0
          %1747 = vmatpush2.xpose.msra.mxu0 0.0
          %1748 = vmatprep.subr.mxu0 0.0
          %1749 = vmatpush2.xpose.msra.mxu0 0.0
          %1750 = vmatprep.subr.mxu0 0.0
          %1751 = vmatpush2.xpose.msra.mxu0 0.0
          %1752 = vmatprep.subr.mxu0 0.0
          %1753 = vmatpush2.xpose.msra.mxu0 0.0
          %1754 = vmatprep.subr.mxu0 0.0
          %1755 = vmatpush2.xpose.msra.mxu0 0.0
          %1756 = vmatprep.subr.mxu0 0.0
          %1757 = vmatpush2.xpose.msra.mxu0 0.0
          %1758 = vmatprep.subr.mxu0 0.0
          %1759 = vmatpush2.xpose.msra.mxu0 0.0
          %1760 = vmatprep.subr.mxu0 0.0
          %1761 = vmatpush2.xpose.msra.mxu0 0.0
          %1762 = vmatprep.mubr.f32.mxu0 0.0
          %1763 = vmatmul.mubr.f32.gmra.mxu0 %v1694
          %v1764 = vpop.f32.mrf.mxu0
          %v1765 = vadd.f32 %v1689, %v1764
          %v1766 = vpop.f32.mrf.mxu0
          %1767 = vdwg.mxu0
          %v1768 = vsel %vm911, %v1765, -inf
          %1769 = vmax.xlane.f32.xlu0 %v1768
          %v1770 = vpop.xlane.xlu0 %1769
          %v1771 = vsub.f32 %v1765, %v1770
          %v1772 = vmul.f32 %v1771, 1.442695
          %v1773 = vpow.pop %v1772
          %v1774 = vsel %vm911, %v1773, 0.0
          %1775 = vadd.xlane.f32.xlu0 %v1774
          %v1776 = vpop.xlane.xlu0 %1775
          %v1777 = vrcp.pop %v1776
          %v1778 = vmul.f32 %v1773, %v1777
          %1779 = vrot.lane.b32.xlu0 %v1684, 64
          %v1780 = vpop.permute.xlu0 %1779
          %v1783 = vsel %vm911, %v1778, 0
          %1785 = vmatprep.subr.mxu0 0.0
          %1786 = vmatpush1.msra.mxu0 0.0
          %1787 = vmatprep.subr.mxu0 0.0
          %1788 = vmatpush1.msra.mxu0 0.0
          %1789 = vmatprep.subr.mxu0 0.0
          %1790 = vmatpush1.msra.mxu0 0.0
          %1791 = vmatprep.subr.mxu0 0.0
          %1792 = vmatpush1.msra.mxu0 0.0
          %1793 = vmatprep.subr.mxu0 0.0
          %1794 = vmatpush1.msra.mxu0 0.0
          %1795 = vmatprep.subr.mxu0 0.0
          %1796 = vmatpush1.msra.mxu0 0.0
          %1797 = vmatprep.subr.mxu0 0.0
          %1798 = vmatpush1.msra.mxu0 0.0
          %1799 = vmatprep.subr.mxu0 0.0
          %1800 = vmatpush1.msra.mxu0 0.0
          %1801 = vmatprep.subr.mxu0 0.0
          %1802 = vmatpush1.msra.mxu0 0.0
          %1803 = vmatprep.subr.mxu0 0.0
          %1804 = vmatpush1.msra.mxu0 0.0
          %1805 = vmatprep.subr.mxu0 0.0
          %1806 = vmatpush1.msra.mxu0 0.0
          %1807 = vmatprep.subr.mxu0 0.0
          %1808 = vmatpush1.msra.mxu0 0.0
          %1809 = vmatprep.subr.mxu0 0.0
          %1810 = vmatpush1.msra.mxu0 0.0
          %1811 = vmatprep.subr.mxu0 0.0
          %1812 = vmatpush1.msra.mxu0 0.0
          %1813 = vmatprep.subr.mxu0 0.0
          %1814 = vmatpush1.msra.mxu0 0.0
          %1815 = vmatprep.subr.mxu0 0.0
          %1816 = vmatpush1.msra.mxu0 %v1780
          %1817 = vmatprep.subr.mxu0 0.0
          %1818 = vmatpush2.msra.mxu0 0.0
          %1819 = vmatprep.subr.mxu0 0.0
          %1820 = vmatpush2.msra.mxu0 0.0
          %1821 = vmatprep.subr.mxu0 0.0
          %1822 = vmatpush2.msra.mxu0 0.0
          %1823 = vmatprep.subr.mxu0 0.0
          %1824 = vmatpush2.msra.mxu0 0.0
          %1825 = vmatprep.subr.mxu0 0.0
          %1826 = vmatpush2.msra.mxu0 0.0
          %1827 = vmatprep.subr.mxu0 0.0
          %1828 = vmatpush2.msra.mxu0 0.0
          %1829 = vmatprep.subr.mxu0 0.0
          %1830 = vmatpush2.msra.mxu0 0.0
          %1831 = vmatprep.subr.mxu0 0.0
          %1832 = vmatpush2.msra.mxu0 0.0
          %1833 = vmatprep.subr.mxu0 0.0
          %1834 = vmatpush2.msra.mxu0 0.0
          %1835 = vmatprep.subr.mxu0 0.0
          %1836 = vmatpush2.msra.mxu0 0.0
          %1837 = vmatprep.subr.mxu0 0.0
          %1838 = vmatpush2.msra.mxu0 0.0
          %1839 = vmatprep.subr.mxu0 0.0
          %1840 = vmatpush2.msra.mxu0 0.0
          %1841 = vmatprep.subr.mxu0 0.0
          %1842 = vmatpush2.msra.mxu0 0.0
          %1843 = vmatprep.subr.mxu0 0.0
          %1844 = vmatpush2.msra.mxu0 0.0
          %1845 = vmatprep.subr.mxu0 0.0
          %1846 = vmatpush2.msra.mxu0 0.0
          %1847 = vmatprep.subr.mxu0 0.0
          %1848 = vmatpush2.msra.mxu0 0.0
          %1849 = vmatprep.mubr.f32.mxu0 0.0
          %1850 = vmatmul.mubr.f32.gmra.mxu0 %v1783
          %v1851 = vpop.f32.mrf.mxu0
          %v1852 = vadd.f32 0.0, %v1851
          %v1853 = vpop.f32.mrf.mxu0
          %1854 = vdwg.mxu0
          %1855 = vst.msk [vmem:[#allocation4] sm:$0xff] %vm911, %v1852
          %v1856 = vld [vmem:[#allocation3 + $0x8] sm:$0xff]
          %1858 = vrot.lane.b32.xlu0 %v1856, 120
          %v1859 = vpop.permute.xlu0 %1858
          %1860 = vrot.lane.b32.xlu0 %v1856, 88
          %v1861 = vpop.permute.xlu0 %1860
          %v1862 = vsel %vm911, %v1859, 0
          %v1864 = vsel %vm911, %v1861, 0
          %1866 = vmatprep.subr.mxu0 0.0
          %1867 = vmatpush1.xpose.msra.mxu0 0.0
          %1868 = vmatprep.subr.mxu0 0.0
          %1869 = vmatpush1.xpose.msra.mxu0 0.0
          %1870 = vmatprep.subr.mxu0 0.0
          %1871 = vmatpush1.xpose.msra.mxu0 0.0
          %1872 = vmatprep.subr.mxu0 0.0
          %1873 = vmatpush1.xpose.msra.mxu0 0.0
          %1874 = vmatprep.subr.mxu0 0.0
          %1875 = vmatpush1.xpose.msra.mxu0 0.0
          %1876 = vmatprep.subr.mxu0 0.0
          %1877 = vmatpush1.xpose.msra.mxu0 0.0
          %1878 = vmatprep.subr.mxu0 0.0
          %1879 = vmatpush1.xpose.msra.mxu0 0.0
          %1880 = vmatprep.subr.mxu0 0.0
          %1881 = vmatpush1.xpose.msra.mxu0 0.0
          %1882 = vmatprep.subr.mxu0 0.0
          %1883 = vmatpush1.xpose.msra.mxu0 0.0
          %1884 = vmatprep.subr.mxu0 0.0
          %1885 = vmatpush1.xpose.msra.mxu0 0.0
          %1886 = vmatprep.subr.mxu0 0.0
          %1887 = vmatpush1.xpose.msra.mxu0 0.0
          %1888 = vmatprep.subr.mxu0 0.0
          %1889 = vmatpush1.xpose.msra.mxu0 0.0
          %1890 = vmatprep.subr.mxu0 0.0
          %1891 = vmatpush1.xpose.msra.mxu0 0.0
          %1892 = vmatprep.subr.mxu0 0.0
          %1893 = vmatpush1.xpose.msra.mxu0 0.0
          %1894 = vmatprep.subr.mxu0 0.0
          %1895 = vmatpush1.xpose.msra.mxu0 0.0
          %1896 = vmatprep.subr.mxu0 0.0
          %1897 = vmatpush1.xpose.msra.mxu0 %v1864
          %1898 = vmatprep.subr.mxu0 0.0
          %1899 = vmatpush2.xpose.msra.mxu0 0.0
          %1900 = vmatprep.subr.mxu0 0.0
          %1901 = vmatpush2.xpose.msra.mxu0 0.0
          %1902 = vmatprep.subr.mxu0 0.0
          %1903 = vmatpush2.xpose.msra.mxu0 0.0
          %1904 = vmatprep.subr.mxu0 0.0
          %1905 = vmatpush2.xpose.msra.mxu0 0.0
          %1906 = vmatprep.subr.mxu0 0.0
          %1907 = vmatpush2.xpose.msra.mxu0 0.0
          %1908 = vmatprep.subr.mxu0 0.0
          %1909 = vmatpush2.xpose.msra.mxu0 0.0
          %1910 = vmatprep.subr.mxu0 0.0
          %1911 = vmatpush2.xpose.msra.mxu0 0.0
          %1912 = vmatprep.subr.mxu0 0.0
          %1913 = vmatpush2.xpose.msra.mxu0 0.0
          %1914 = vmatprep.subr.mxu0 0.0
          %1915 = vmatpush2.xpose.msra.mxu0 0.0
          %1916 = vmatprep.subr.mxu0 0.0
          %1917 = vmatpush2.xpose.msra.mxu0 0.0
          %1918 = vmatprep.subr.mxu0 0.0
          %1919 = vmatpush2.xpose.msra.mxu0 0.0
          %1920 = vmatprep.subr.mxu0 0.0
          %1921 = vmatpush2.xpose.msra.mxu0 0.0
          %1922 = vmatprep.subr.mxu0 0.0
          %1923 = vmatpush2.xpose.msra.mxu0 0.0
          %1924 = vmatprep.subr.mxu0 0.0
          %1925 = vmatpush2.xpose.msra.mxu0 0.0
          %1926 = vmatprep.subr.mxu0 0.0
          %1927 = vmatpush2.xpose.msra.mxu0 0.0
          %1928 = vmatprep.subr.mxu0 0.0
          %1929 = vmatpush2.xpose.msra.mxu0 0.0
          %1930 = vmatprep.mubr.f32.mxu0 0.0
          %1931 = vmatmul.mubr.f32.gmra.mxu0 %v1862
          %v1932 = vpop.f32.mrf.mxu0
          %v1933 = vadd.f32 %v1689, %v1932
          %v1934 = vpop.f32.mrf.mxu0
          %1935 = vdwg.mxu0
          %v1936 = vsel %vm911, %v1933, -inf
          %1937 = vmax.xlane.f32.xlu0 %v1936
          %v1938 = vpop.xlane.xlu0 %1937
          %v1939 = vsub.f32 %v1933, %v1938
          %v1940 = vmul.f32 %v1939, 1.442695
          %v1941 = vpow.pop %v1940
          %v1942 = vsel %vm911, %v1941, 0.0
          %1943 = vadd.xlane.f32.xlu0 %v1942
          %v1944 = vpop.xlane.xlu0 %1943
          %v1945 = vrcp.pop %v1944
          %v1946 = vmul.f32 %v1941, %v1945
          %1947 = vrot.lane.b32.xlu0 %v1856, 56
          %v1948 = vpop.permute.xlu0 %1947
          %v1951 = vsel %vm911, %v1946, 0
          %1953 = vmatprep.subr.mxu0 0.0
          %1954 = vmatpush1.msra.mxu0 0.0
          %1955 = vmatprep.subr.mxu0 0.0
          %1956 = vmatpush1.msra.mxu0 0.0
          %1957 = vmatprep.subr.mxu0 0.0
          %1958 = vmatpush1.msra.mxu0 0.0
          %1959 = vmatprep.subr.mxu0 0.0
          %1960 = vmatpush1.msra.mxu0 0.0
          %1961 = vmatprep.subr.mxu0 0.0
          %1962 = vmatpush1.msra.mxu0 0.0
          %1963 = vmatprep.subr.mxu0 0.0
          %1964 = vmatpush1.msra.mxu0 0.0
          %1965 = vmatprep.subr.mxu0 0.0
          %1966 = vmatpush1.msra.mxu0 0.0
          %1967 = vmatprep.subr.mxu0 0.0
          %1968 = vmatpush1.msra.mxu0 0.0
          %1969 = vmatprep.subr.mxu0 0.0
          %1970 = vmatpush1.msra.mxu0 0.0
          %1971 = vmatprep.subr.mxu0 0.0
          %1972 = vmatpush1.msra.mxu0 0.0
          %1973 = vmatprep.subr.mxu0 0.0
          %1974 = vmatpush1.msra.mxu0 0.0
          %1975 = vmatprep.subr.mxu0 0.0
          %1976 = vmatpush1.msra.mxu0 0.0
          %1977 = vmatprep.subr.mxu0 0.0
          %1978 = vmatpush1.msra.mxu0 0.0
          %1979 = vmatprep.subr.mxu0 0.0
          %1980 = vmatpush1.msra.mxu0 0.0
          %1981 = vmatprep.subr.mxu0 0.0
          %1982 = vmatpush1.msra.mxu0 0.0
          %1983 = vmatprep.subr.mxu0 0.0
          %1984 = vmatpush1.msra.mxu0 %v1948
          %1985 = vmatprep.subr.mxu0 0.0
          %1986 = vmatpush2.msra.mxu0 0.0
          %1987 = vmatprep.subr.mxu0 0.0
          %1988 = vmatpush2.msra.mxu0 0.0
          %1989 = vmatprep.subr.mxu0 0.0
          %1990 = vmatpush2.msra.mxu0 0.0
          %1991 = vmatprep.subr.mxu0 0.0
          %1992 = vmatpush2.msra.mxu0 0.0
          %1993 = vmatprep.subr.mxu0 0.0
          %1994 = vmatpush2.msra.mxu0 0.0
          %1995 = vmatprep.subr.mxu0 0.0
          %1996 = vmatpush2.msra.mxu0 0.0
          %1997 = vmatprep.subr.mxu0 0.0
          %1998 = vmatpush2.msra.mxu0 0.0
          %1999 = vmatprep.subr.mxu0 0.0
          %2000 = vmatpush2.msra.mxu0 0.0
          %2001 = vmatprep.subr.mxu0 0.0
          %2002 = vmatpush2.msra.mxu0 0.0
          %2003 = vmatprep.subr.mxu0 0.0
          %2004 = vmatpush2.msra.mxu0 0.0
          %2005 = vmatprep.subr.mxu0 0.0
          %2006 = vmatpush2.msra.mxu0 0.0
          %2007 = vmatprep.subr.mxu0 0.0
          %2008 = vmatpush2.msra.mxu0 0.0
          %2009 = vmatprep.subr.mxu0 0.0
          %2010 = vmatpush2.msra.mxu0 0.0
          %2011 = vmatprep.subr.mxu0 0.0
          %2012 = vmatpush2.msra.mxu0 0.0
          %2013 = vmatprep.subr.mxu0 0.0
          %2014 = vmatpush2.msra.mxu0 0.0
          %2015 = vmatprep.subr.mxu0 0.0
          %2016 = vmatpush2.msra.mxu0 0.0
          %2017 = vmatprep.mubr.f32.mxu0 0.0
          %2018 = vmatmul.mubr.f32.gmra.mxu0 %v1951
          %v2019 = vpop.f32.mrf.mxu0
          %v2020 = vadd.f32 0.0, %v2019
          %v2021 = vpop.f32.mrf.mxu0
          %2022 = vdwg.mxu0
          %2024 = vrot.lane.b32.xlu0 %v2020, 8
          %v2025 = vpop.permute.xlu0 %2024
          %2027 = vst.msk [vmem:[#allocation4] sm:$0xff] %vm1245, %v2025
          %v2028 = vld [vmem:[#allocation3 + $0x8] sm:$0xff]
          %2030 = vrot.lane.b32.xlu0 %v2028, 112
          %v2031 = vpop.permute.xlu0 %2030
          %2032 = vrot.lane.b32.xlu0 %v2028, 80
          %v2033 = vpop.permute.xlu0 %2032
          %v2034 = vsel %vm911, %v2031, 0
          %v2036 = vsel %vm911, %v2033, 0
          %2038 = vmatprep.subr.mxu0 0.0
          %2039 = vmatpush1.xpose.msra.mxu0 0.0
          %2040 = vmatprep.subr.mxu0 0.0
          %2041 = vmatpush1.xpose.msra.mxu0 0.0
          %2042 = vmatprep.subr.mxu0 0.0
          %2043 = vmatpush1.xpose.msra.mxu0 0.0
          %2044 = vmatprep.subr.mxu0 0.0
          %2045 = vmatpush1.xpose.msra.mxu0 0.0
          %2046 = vmatprep.subr.mxu0 0.0
          %2047 = vmatpush1.xpose.msra.mxu0 0.0
          %2048 = vmatprep.subr.mxu0 0.0
          %2049 = vmatpush1.xpose.msra.mxu0 0.0
          %2050 = vmatprep.subr.mxu0 0.0
          %2051 = vmatpush1.xpose.msra.mxu0 0.0
          %2052 = vmatprep.subr.mxu0 0.0
          %2053 = vmatpush1.xpose.msra.mxu0 0.0
          %2054 = vmatprep.subr.mxu0 0.0
          %2055 = vmatpush1.xpose.msra.mxu0 0.0
          %2056 = vmatprep.subr.mxu0 0.0
          %2057 = vmatpush1.xpose.msra.mxu0 0.0
          %2058 = vmatprep.subr.mxu0 0.0
          %2059 = vmatpush1.xpose.msra.mxu0 0.0
          %2060 = vmatprep.subr.mxu0 0.0
          %2061 = vmatpush1.xpose.msra.mxu0 0.0
          %2062 = vmatprep.subr.mxu0 0.0
          %2063 = vmatpush1.xpose.msra.mxu0 0.0
          %2064 = vmatprep.subr.mxu0 0.0
          %2065 = vmatpush1.xpose.msra.mxu0 0.0
          %2066 = vmatprep.subr.mxu0 0.0
          %2067 = vmatpush1.xpose.msra.mxu0 0.0
          %2068 = vmatprep.subr.mxu0 0.0
          %2069 = vmatpush1.xpose.msra.mxu0 %v2036
          %2070 = vmatprep.subr.mxu0 0.0
          %2071 = vmatpush2.xpose.msra.mxu0 0.0
          %2072 = vmatprep.subr.mxu0 0.0
          %2073 = vmatpush2.xpose.msra.mxu0 0.0
          %2074 = vmatprep.subr.mxu0 0.0
          %2075 = vmatpush2.xpose.msra.mxu0 0.0
          %2076 = vmatprep.subr.mxu0 0.0
          %2077 = vmatpush2.xpose.msra.mxu0 0.0
          %2078 = vmatprep.subr.mxu0 0.0
          %2079 = vmatpush2.xpose.msra.mxu0 0.0
          %2080 = vmatprep.subr.mxu0 0.0
          %2081 = vmatpush2.xpose.msra.mxu0 0.0
          %2082 = vmatprep.subr.mxu0 0.0
          %2083 = vmatpush2.xpose.msra.mxu0 0.0
          %2084 = vmatprep.subr.mxu0 0.0
          %2085 = vmatpush2.xpose.msra.mxu0 0.0
          %2086 = vmatprep.subr.mxu0 0.0
          %2087 = vmatpush2.xpose.msra.mxu0 0.0
          %2088 = vmatprep.subr.mxu0 0.0
          %2089 = vmatpush2.xpose.msra.mxu0 0.0
          %2090 = vmatprep.subr.mxu0 0.0
          %2091 = vmatpush2.xpose.msra.mxu0 0.0
          %2092 = vmatprep.subr.mxu0 0.0
          %2093 = vmatpush2.xpose.msra.mxu0 0.0
          %2094 = vmatprep.subr.mxu0 0.0
          %2095 = vmatpush2.xpose.msra.mxu0 0.0
          %2096 = vmatprep.subr.mxu0 0.0
          %2097 = vmatpush2.xpose.msra.mxu0 0.0
          %2098 = vmatprep.subr.mxu0 0.0
          %2099 = vmatpush2.xpose.msra.mxu0 0.0
          %2100 = vmatprep.subr.mxu0 0.0
          %2101 = vmatpush2.xpose.msra.mxu0 0.0
          %2102 = vmatprep.mubr.f32.mxu0 0.0
          %2103 = vmatmul.mubr.f32.gmra.mxu0 %v2034
          %v2104 = vpop.f32.mrf.mxu0
          %v2105 = vadd.f32 %v1689, %v2104
          %v2106 = vpop.f32.mrf.mxu0
          %2107 = vdwg.mxu0
          %v2108 = vsel %vm911, %v2105, -inf
          %2109 = vmax.xlane.f32.xlu0 %v2108
          %v2110 = vpop.xlane.xlu0 %2109
          %v2111 = vsub.f32 %v2105, %v2110
          %v2112 = vmul.f32 %v2111, 1.442695
          %v2113 = vpow.pop %v2112
          %v2114 = vsel %vm911, %v2113, 0.0
          %2115 = vadd.xlane.f32.xlu0 %v2114
          %v2116 = vpop.xlane.xlu0 %2115
          %v2117 = vrcp.pop %v2116
          %v2118 = vmul.f32 %v2113, %v2117
          %2119 = vrot.lane.b32.xlu0 %v2028, 48
          %v2120 = vpop.permute.xlu0 %2119
          %v2123 = vsel %vm911, %v2118, 0
          %2125 = vmatprep.subr.mxu0 0.0
          %2126 = vmatpush1.msra.mxu0 0.0
          %2127 = vmatprep.subr.mxu0 0.0
          %2128 = vmatpush1.msra.mxu0 0.0
          %2129 = vmatprep.subr.mxu0 0.0
          %2130 = vmatpush1.msra.mxu0 0.0
          %2131 = vmatprep.subr.mxu0 0.0
          %2132 = vmatpush1.msra.mxu0 0.0
          %2133 = vmatprep.subr.mxu0 0.0
          %2134 = vmatpush1.msra.mxu0 0.0
          %2135 = vmatprep.subr.mxu0 0.0
          %2136 = vmatpush1.msra.mxu0 0.0
          %2137 = vmatprep.subr.mxu0 0.0
          %2138 = vmatpush1.msra.mxu0 0.0
          %2139 = vmatprep.subr.mxu0 0.0
          %2140 = vmatpush1.msra.mxu0 0.0
          %2141 = vmatprep.subr.mxu0 0.0
          %2142 = vmatpush1.msra.mxu0 0.0
          %2143 = vmatprep.subr.mxu0 0.0
          %2144 = vmatpush1.msra.mxu0 0.0
          %2145 = vmatprep.subr.mxu0 0.0
          %2146 = vmatpush1.msra.mxu0 0.0
          %2147 = vmatprep.subr.mxu0 0.0
          %2148 = vmatpush1.msra.mxu0 0.0
          %2149 = vmatprep.subr.mxu0 0.0
          %2150 = vmatpush1.msra.mxu0 0.0
          %2151 = vmatprep.subr.mxu0 0.0
          %2152 = vmatpush1.msra.mxu0 0.0
          %2153 = vmatprep.subr.mxu0 0.0
          %2154 = vmatpush1.msra.mxu0 0.0
          %2155 = vmatprep.subr.mxu0 0.0
          %2156 = vmatpush1.msra.mxu0 %v2120
          %2157 = vmatprep.subr.mxu0 0.0
          %2158 = vmatpush2.msra.mxu0 0.0
          %2159 = vmatprep.subr.mxu0 0.0
          %2160 = vmatpush2.msra.mxu0 0.0
          %2161 = vmatprep.subr.mxu0 0.0
          %2162 = vmatpush2.msra.mxu0 0.0
          %2163 = vmatprep.subr.mxu0 0.0
          %2164 = vmatpush2.msra.mxu0 0.0
          %2165 = vmatprep.subr.mxu0 0.0
          %2166 = vmatpush2.msra.mxu0 0.0
          %2167 = vmatprep.subr.mxu0 0.0
          %2168 = vmatpush2.msra.mxu0 0.0
          %2169 = vmatprep.subr.mxu0 0.0
          %2170 = vmatpush2.msra.mxu0 0.0
          %2171 = vmatprep.subr.mxu0 0.0
          %2172 = vmatpush2.msra.mxu0 0.0
          %2173 = vmatprep.subr.mxu0 0.0
          %2174 = vmatpush2.msra.mxu0 0.0
          %2175 = vmatprep.subr.mxu0 0.0
          %2176 = vmatpush2.msra.mxu0 0.0
          %2177 = vmatprep.subr.mxu0 0.0
          %2178 = vmatpush2.msra.mxu0 0.0
          %2179 = vmatprep.subr.mxu0 0.0
          %2180 = vmatpush2.msra.mxu0 0.0
          %2181 = vmatprep.subr.mxu0 0.0
          %2182 = vmatpush2.msra.mxu0 0.0
          %2183 = vmatprep.subr.mxu0 0.0
          %2184 = vmatpush2.msra.mxu0 0.0
          %2185 = vmatprep.subr.mxu0 0.0
          %2186 = vmatpush2.msra.mxu0 0.0
          %2187 = vmatprep.subr.mxu0 0.0
          %2188 = vmatpush2.msra.mxu0 0.0
          %2189 = vmatprep.mubr.f32.mxu0 0.0
          %2190 = vmatmul.mubr.f32.gmra.mxu0 %v2123
          %v2191 = vpop.f32.mrf.mxu0
          %v2192 = vadd.f32 0.0, %v2191
          %v2193 = vpop.f32.mrf.mxu0
          %2194 = vdwg.mxu0
          %2196 = vrot.lane.b32.xlu0 %v2192, 16
          %v2197 = vpop.permute.xlu0 %2196
          %2199 = vst.msk [vmem:[#allocation4] sm:$0xff] %vm1418, %v2197
          %v2200 = vld [vmem:[#allocation3 + $0x8] sm:$0xff]
          %2202 = vrot.lane.b32.xlu0 %v2200, 104
          %v2203 = vpop.permute.xlu0 %2202
          %2204 = vrot.lane.b32.xlu0 %v2200, 72
          %v2205 = vpop.permute.xlu0 %2204
          %v2206 = vsel %vm911, %v2203, 0
          %v2208 = vsel %vm911, %v2205, 0
          %2210 = vmatprep.subr.mxu0 0.0
          %2211 = vmatpush1.xpose.msra.mxu0 0.0
          %2212 = vmatprep.subr.mxu0 0.0
          %2213 = vmatpush1.xpose.msra.mxu0 0.0
          %2214 = vmatprep.subr.mxu0 0.0
          %2215 = vmatpush1.xpose.msra.mxu0 0.0
          %2216 = vmatprep.subr.mxu0 0.0
          %2217 = vmatpush1.xpose.msra.mxu0 0.0
          %2218 = vmatprep.subr.mxu0 0.0
          %2219 = vmatpush1.xpose.msra.mxu0 0.0
          %2220 = vmatprep.subr.mxu0 0.0
          %2221 = vmatpush1.xpose.msra.mxu0 0.0
          %2222 = vmatprep.subr.mxu0 0.0
          %2223 = vmatpush1.xpose.msra.mxu0 0.0
          %2224 = vmatprep.subr.mxu0 0.0
          %2225 = vmatpush1.xpose.msra.mxu0 0.0
          %2226 = vmatprep.subr.mxu0 0.0
          %2227 = vmatpush1.xpose.msra.mxu0 0.0
          %2228 = vmatprep.subr.mxu0 0.0
          %2229 = vmatpush1.xpose.msra.mxu0 0.0
          %2230 = vmatprep.subr.mxu0 0.0
          %2231 = vmatpush1.xpose.msra.mxu0 0.0
          %2232 = vmatprep.subr.mxu0 0.0
          %2233 = vmatpush1.xpose.msra.mxu0 0.0
          %2234 = vmatprep.subr.mxu0 0.0
          %2235 = vmatpush1.xpose.msra.mxu0 0.0
          %2236 = vmatprep.subr.mxu0 0.0
          %2237 = vmatpush1.xpose.msra.mxu0 0.0
          %2238 = vmatprep.subr.mxu0 0.0
          %2239 = vmatpush1.xpose.msra.mxu0 0.0
          %2240 = vmatprep.subr.mxu0 0.0
          %2241 = vmatpush1.xpose.msra.mxu0 %v2208
          %2242 = vmatprep.subr.mxu0 0.0
          %2243 = vmatpush2.xpose.msra.mxu0 0.0
          %2244 = vmatprep.subr.mxu0 0.0
          %2245 = vmatpush2.xpose.msra.mxu0 0.0
          %2246 = vmatprep.subr.mxu0 0.0
          %2247 = vmatpush2.xpose.msra.mxu0 0.0
          %2248 = vmatprep.subr.mxu0 0.0
          %2249 = vmatpush2.xpose.msra.mxu0 0.0
          %2250 = vmatprep.subr.mxu0 0.0
          %2251 = vmatpush2.xpose.msra.mxu0 0.0
          %2252 = vmatprep.subr.mxu0 0.0
          %2253 = vmatpush2.xpose.msra.mxu0 0.0
          %2254 = vmatprep.subr.mxu0 0.0
          %2255 = vmatpush2.xpose.msra.mxu0 0.0
          %2256 = vmatprep.subr.mxu0 0.0
          %2257 = vmatpush2.xpose.msra.mxu0 0.0
          %2258 = vmatprep.subr.mxu0 0.0
          %2259 = vmatpush2.xpose.msra.mxu0 0.0
          %2260 = vmatprep.subr.mxu0 0.0
          %2261 = vmatpush2.xpose.msra.mxu0 0.0
          %2262 = vmatprep.subr.mxu0 0.0
          %2263 = vmatpush2.xpose.msra.mxu0 0.0
          %2264 = vmatprep.subr.mxu0 0.0
          %2265 = vmatpush2.xpose.msra.mxu0 0.0
          %2266 = vmatprep.subr.mxu0 0.0
          %2267 = vmatpush2.xpose.msra.mxu0 0.0
          %2268 = vmatprep.subr.mxu0 0.0
          %2269 = vmatpush2.xpose.msra.mxu0 0.0
          %2270 = vmatprep.subr.mxu0 0.0
          %2271 = vmatpush2.xpose.msra.mxu0 0.0
          %2272 = vmatprep.subr.mxu0 0.0
          %2273 = vmatpush2.xpose.msra.mxu0 0.0
          %2274 = vmatprep.mubr.f32.mxu0 0.0
          %2275 = vmatmul.mubr.f32.gmra.mxu0 %v2206
          %v2276 = vpop.f32.mrf.mxu0
          %v2277 = vadd.f32 %v1689, %v2276
          %v2278 = vpop.f32.mrf.mxu0
          %2279 = vdwg.mxu0
          %v2280 = vsel %vm911, %v2277, -inf
          %2281 = vmax.xlane.f32.xlu0 %v2280
          %v2282 = vpop.xlane.xlu0 %2281
          %v2283 = vsub.f32 %v2277, %v2282
          %v2284 = vmul.f32 %v2283, 1.442695
          %v2285 = vpow.pop %v2284
          %v2286 = vsel %vm911, %v2285, 0.0
          %2287 = vadd.xlane.f32.xlu0 %v2286
          %v2288 = vpop.xlane.xlu0 %2287
          %v2289 = vrcp.pop %v2288
          %v2290 = vmul.f32 %v2285, %v2289
          %2291 = vrot.lane.b32.xlu0 %v2200, 40
          %v2292 = vpop.permute.xlu0 %2291
          %v2295 = vsel %vm911, %v2290, 0
          %2297 = vmatprep.subr.mxu0 0.0
          %2298 = vmatpush1.msra.mxu0 0.0
          %2299 = vmatprep.subr.mxu0 0.0
          %2300 = vmatpush1.msra.mxu0 0.0
          %2301 = vmatprep.subr.mxu0 0.0
          %2302 = vmatpush1.msra.mxu0 0.0
          %2303 = vmatprep.subr.mxu0 0.0
          %2304 = vmatpush1.msra.mxu0 0.0
          %2305 = vmatprep.subr.mxu0 0.0
          %2306 = vmatpush1.msra.mxu0 0.0
          %2307 = vmatprep.subr.mxu0 0.0
          %2308 = vmatpush1.msra.mxu0 0.0
          %2309 = vmatprep.subr.mxu0 0.0
          %2310 = vmatpush1.msra.mxu0 0.0
          %2311 = vmatprep.subr.mxu0 0.0
          %2312 = vmatpush1.msra.mxu0 0.0
          %2313 = vmatprep.subr.mxu0 0.0
          %2314 = vmatpush1.msra.mxu0 0.0
          %2315 = vmatprep.subr.mxu0 0.0
          %2316 = vmatpush1.msra.mxu0 0.0
          %2317 = vmatprep.subr.mxu0 0.0
          %2318 = vmatpush1.msra.mxu0 0.0
          %2319 = vmatprep.subr.mxu0 0.0
          %2320 = vmatpush1.msra.mxu0 0.0
          %2321 = vmatprep.subr.mxu0 0.0
          %2322 = vmatpush1.msra.mxu0 0.0
          %2323 = vmatprep.subr.mxu0 0.0
          %2324 = vmatpush1.msra.mxu0 0.0
          %2325 = vmatprep.subr.mxu0 0.0
          %2326 = vmatpush1.msra.mxu0 0.0
          %2327 = vmatprep.subr.mxu0 0.0
          %2328 = vmatpush1.msra.mxu0 %v2292
          %2329 = vmatprep.subr.mxu0 0.0
          %2330 = vmatpush2.msra.mxu0 0.0
          %2331 = vmatprep.subr.mxu0 0.0
          %2332 = vmatpush2.msra.mxu0 0.0
          %2333 = vmatprep.subr.mxu0 0.0
          %2334 = vmatpush2.msra.mxu0 0.0
          %2335 = vmatprep.subr.mxu0 0.0
          %2336 = vmatpush2.msra.mxu0 0.0
          %2337 = vmatprep.subr.mxu0 0.0
          %2338 = vmatpush2.msra.mxu0 0.0
          %2339 = vmatprep.subr.mxu0 0.0
          %2340 = vmatpush2.msra.mxu0 0.0
          %2341 = vmatprep.subr.mxu0 0.0
          %2342 = vmatpush2.msra.mxu0 0.0
          %2343 = vmatprep.subr.mxu0 0.0
          %2344 = vmatpush2.msra.mxu0 0.0
          %2345 = vmatprep.subr.mxu0 0.0
          %2346 = vmatpush2.msra.mxu0 0.0
          %2347 = vmatprep.subr.mxu0 0.0
          %2348 = vmatpush2.msra.mxu0 0.0
          %2349 = vmatprep.subr.mxu0 0.0
          %2350 = vmatpush2.msra.mxu0 0.0
          %2351 = vmatprep.subr.mxu0 0.0
          %2352 = vmatpush2.msra.mxu0 0.0
          %2353 = vmatprep.subr.mxu0 0.0
          %2354 = vmatpush2.msra.mxu0 0.0
          %2355 = vmatprep.subr.mxu0 0.0
          %2356 = vmatpush2.msra.mxu0 0.0
          %2357 = vmatprep.subr.mxu0 0.0
          %2358 = vmatpush2.msra.mxu0 0.0
          %2359 = vmatprep.subr.mxu0 0.0
          %2360 = vmatpush2.msra.mxu0 0.0
          %2361 = vmatprep.mubr.f32.mxu0 0.0
          %2362 = vmatmul.mubr.f32.gmra.mxu0 %v2295
          %v2363 = vpop.f32.mrf.mxu0
          %v2364 = vadd.f32 0.0, %v2363
          %v2365 = vpop.f32.mrf.mxu0
          %2366 = vdwg.mxu0
          %2368 = vrot.lane.b32.xlu0 %v2364, 24
          %v2369 = vpop.permute.xlu0 %2368
          %2371 = vst.msk [vmem:[#allocation4] sm:$0xff] %vm1591, %v2369
          %v2372 = vld [vmem:[#allocation4] sm:$0xff]
          %v2373 = vld [vmem:[%s693] sm:$0xff]
          %v2374 = vld [vmem:[%s693 + $0x8] sm:$0xff]
          %v2375 = vld [vmem:[%s693 + $0x10] sm:$0xff]
          %v2376 = vld [vmem:[%s693 + $0x18] sm:$0xff]
          %v2378 = vsel %vm755, %v2372, 0
          %2380 = vmatprep.subr.mxu0 0.0
          %2381 = vmatpush1.msra.mxu0 0.0
          %2382 = vmatprep.subr.mxu0 0.0
          %2383 = vmatpush1.msra.mxu0 0.0
          %2384 = vmatprep.subr.mxu0 0.0
          %2385 = vmatpush1.msra.mxu0 0.0
          %2386 = vmatprep.subr.mxu0 0.0
          %2387 = vmatpush1.msra.mxu0 0.0
          %2388 = vmatprep.subr.mxu0 0.0
          %2389 = vmatpush1.msra.mxu0 0.0
          %2390 = vmatprep.subr.mxu0 0.0
          %2391 = vmatpush1.msra.mxu0 0.0
          %2392 = vmatprep.subr.mxu0 0.0
          %2393 = vmatpush1.msra.mxu0 0.0
          %2394 = vmatprep.subr.mxu0 0.0
          %2395 = vmatpush1.msra.mxu0 0.0
          %2396 = vmatprep.subr.mxu0 0.0
          %2397 = vmatpush1.msra.mxu0 0.0
          %2398 = vmatprep.subr.mxu0 0.0
          %2399 = vmatpush1.msra.mxu0 0.0
          %2400 = vmatprep.subr.mxu0 0.0
          %2401 = vmatpush1.msra.mxu0 0.0
          %2402 = vmatprep.subr.mxu0 0.0
          %2403 = vmatpush1.msra.mxu0 0.0
          %2404 = vmatprep.subr.mxu0 0.0
          %2405 = vmatpush1.msra.mxu0 %v2376
          %2406 = vmatprep.subr.mxu0 0.0
          %2407 = vmatpush1.msra.mxu0 %v2375
          %2408 = vmatprep.subr.mxu0 0.0
          %2409 = vmatpush1.msra.mxu0 %v2374
          %2410 = vmatprep.subr.mxu0 0.0
          %2411 = vmatpush1.msra.mxu0 %v2373
          %2412 = vmatprep.subr.mxu0 0.0
          %2413 = vmatpush2.msra.mxu0 0.0
          %2414 = vmatprep.subr.mxu0 0.0
          %2415 = vmatpush2.msra.mxu0 0.0
          %2416 = vmatprep.subr.mxu0 0.0
          %2417 = vmatpush2.msra.mxu0 0.0
          %2418 = vmatprep.subr.mxu0 0.0
          %2419 = vmatpush2.msra.mxu0 0.0
          %2420 = vmatprep.subr.mxu0 0.0
          %2421 = vmatpush2.msra.mxu0 0.0
          %2422 = vmatprep.subr.mxu0 0.0
          %2423 = vmatpush2.msra.mxu0 0.0
          %2424 = vmatprep.subr.mxu0 0.0
          %2425 = vmatpush2.msra.mxu0 0.0
          %2426 = vmatprep.subr.mxu0 0.0
          %2427 = vmatpush2.msra.mxu0 0.0
          %2428 = vmatprep.subr.mxu0 0.0
          %2429 = vmatpush2.msra.mxu0 0.0
          %2430 = vmatprep.subr.mxu0 0.0
          %2431 = vmatpush2.msra.mxu0 0.0
          %2432 = vmatprep.subr.mxu0 0.0
          %2433 = vmatpush2.msra.mxu0 0.0
          %2434 = vmatprep.subr.mxu0 0.0
          %2435 = vmatpush2.msra.mxu0 0.0
          %2436 = vmatprep.subr.mxu0 0.0
          %2437 = vmatpush2.msra.mxu0 0.0
          %2438 = vmatprep.subr.mxu0 0.0
          %2439 = vmatpush2.msra.mxu0 0.0
          %2440 = vmatprep.subr.mxu0 0.0
          %2441 = vmatpush2.msra.mxu0 0.0
          %2442 = vmatprep.subr.mxu0 0.0
          %2443 = vmatpush2.msra.mxu0 0.0
          %2444 = vmatprep.mubr.f32.mxu0 0.0
          %2445 = vmatmul.mubr.f32.gmra.mxu0 %v2378
          %v2446 = vpop.f32.mrf.mxu0
          %v2447 = vadd.f32 0.0, %v2446
          %v2448 = vpop.f32.mrf.mxu0
          %2449 = vdwg.mxu0
          %v2450 = vld [vmem:[#allocation2 + $0x8] sm:$0xff]
          %v2451 = vadd.f32 %v2450, %v2447
          %v2452 = vld [vmem:[%s696] sm:$0x1]
          %v2454 = vlaneseq
          %v2455 = vshrl.u32 %v2454, 7
          %v2456 = vsub.s32 0, %v2455
          %v2457 = vrot.slane %v2452, %v2456
          %v2459 = vadd.f32 %v2451, %v2457
          %2460 = vst.msk [vmem:[#allocation2 + $0x8] sm:$0xff] %vm755, %v2459
          %v2461 = vld [vmem:[#allocation2] sm:$0xff]
          %v2462 = vld [vmem:[#allocation2 + $0x8] sm:$0xff]
          %v2463 = vld [vmem:[%s705] sm:$0x1]
          %v2464 = vld [vmem:[%s708] sm:$0x1]
          %v2465 = vsel %vm755, %v2461, 0.0
          %2466 = vadd.xlane.f32.xlu0 %v2465
          %v2467 = vpop.xlane.xlu0 %2466
          %v2468 = vsel %vm755, %v2462, 0.0
          %2469 = vadd.xlane.f32.xlu0 %v2468
          %v2470 = vpop.xlane.xlu0 %2469
          %v2471 = vmul.f32 %v2467, %v762
          %v2472 = vmul.f32 %v2470, %v762
          %v2473 = vmul.f32 %v2461, %v2461
          %v2474 = vmul.f32 %v2462, %v2462
          %v2475 = vsel %vm755, %v2473, 0.0
          %2476 = vadd.xlane.f32.xlu0 %v2475
          %v2477 = vpop.xlane.xlu0 %2476
          %v2478 = vsel %vm755, %v2474, 0.0
          %2479 = vadd.xlane.f32.xlu0 %v2478
          %v2480 = vpop.xlane.xlu0 %2479
          %v2481 = vmul.f32 %v2477, %v762
          %v2482 = vmul.f32 %v2480, %v762
          %v2483 = vmul.f32 %v2471, %v2471
          %v2484 = vmul.f32 %v2472, %v2472
          %v2485 = vsub.f32 %v2481, %v2483
          %v2486 = vsub.f32 %v2482, %v2484
          %v2487 = vmax.f32 %v2485, 0.0
          %v2488 = vmax.f32 %v2486, 0.0
          %v2489 = vsub.f32 %v2461, %v2471
          %v2490 = vsub.f32 %v2462, %v2472
          %v2491 = vadd.f32 %v2487, 1e-05
          %v2492 = vadd.f32 %v2488, 1e-05
          %v2493 = vrsqrt.pop %v2491
          %v2494 = vrsqrt.pop %v2492
          %v2495 = vmul.f32 %v2489, %v2493
          %v2496 = vmul.f32 %v2490, %v2494
          %v2498 = vlaneseq
          %v2499 = vshrl.u32 %v2498, 7
          %v2500 = vsub.s32 0, %v2499
          %v2501 = vrot.slane %v2463, %v2500
          %v2503 = vmul.f32 %v2495, %v2501
          %v2504 = vmul.f32 %v2496, %v2501
          %v2506 = vlaneseq
          %v2507 = vshrl.u32 %v2506, 7
          %v2508 = vsub.s32 0, %v2507
          %v2509 = vrot.slane %v2464, %v2508
          %v2511 = vadd.f32 %v2503, %v2509
          %v2512 = vadd.f32 %v2504, %v2509
          %2513 = vst.msk [vmem:[#allocation5] sm:$0xff] %vm755, %v2511
          %2514 = vst.msk [vmem:[#allocation5 + $0x8] sm:$0xff] %vm755, %v2512
          %2515 = vst.msk [vmem:[#allocation6] sm:$0xff] %vm755, 0.0
          %2516 = vst.msk [vmem:[#allocation6 + $0x8] sm:$0xff] %vm755, 0.0
        $region92: #{tpu_custom_call.1} parent=75 // pred_fallthru
          _
        %v2517 = vld [vmem:[#allocation5] sm:$0xff]
        %v2518 = vld [vmem:[#allocation5 + $0x8] sm:$0xff]
        %v2519 = vld [vmem:[%s716] sm:$0xff]
        %v2520 = vld [vmem:[%s716 + $0x8] sm:$0xff]
        %v2521 = vld [vmem:[%s716 + $0x10] sm:$0xff]
        %v2522 = vld [vmem:[%s716 + $0x18] sm:$0xff]
        %v2523 = vld [vmem:[%s722] sm:$0x1]
        %v2525 = vlaneseq
        %v2526 = vshrl.u32 %v2525, 7
        %v2527 = vsub.s32 0, %v2526
        %v2528 = vrot.slane %v2523, %v2527
        %vm2530 = vcmask 261120
        %v2532 = vsel %vm2530, %v2517, 0
        %v2535 = vsel %vm2530, %v2518, 0
        %2537 = vmatprep.subr.mxu0 0.0
        %2538 = vmatpush1.msra.mxu0 0.0
        %2539 = vmatprep.subr.mxu0 0.0
        %2540 = vmatpush1.msra.mxu0 0.0
        %2541 = vmatprep.subr.mxu0 0.0
        %2542 = vmatpush1.msra.mxu0 0.0
        %2543 = vmatprep.subr.mxu0 0.0
        %2544 = vmatpush1.msra.mxu0 0.0
        %2545 = vmatprep.subr.mxu0 0.0
        %2546 = vmatpush1.msra.mxu0 0.0
        %2547 = vmatprep.subr.mxu0 0.0
        %2548 = vmatpush1.msra.mxu0 0.0
        %2549 = vmatprep.subr.mxu0 0.0
        %2550 = vmatpush1.msra.mxu0 0.0
        %2551 = vmatprep.subr.mxu0 0.0
        %2552 = vmatpush1.msra.mxu0 0.0
        %2553 = vmatprep.subr.mxu0 0.0
        %2554 = vmatpush1.msra.mxu0 0.0
        %2555 = vmatprep.subr.mxu0 0.0
        %2556 = vmatpush1.msra.mxu0 0.0
        %2557 = vmatprep.subr.mxu0 0.0
        %2558 = vmatpush1.msra.mxu0 0.0
        %2559 = vmatprep.subr.mxu0 0.0
        %2560 = vmatpush1.msra.mxu0 0.0
        %2561 = vmatprep.subr.mxu0 0.0
        %2562 = vmatpush1.msra.mxu0 %v2522
        %2563 = vmatprep.subr.mxu0 0.0
        %2564 = vmatpush1.msra.mxu0 %v2521
        %2565 = vmatprep.subr.mxu0 0.0
        %2566 = vmatpush1.msra.mxu0 %v2520
        %2567 = vmatprep.subr.mxu0 0.0
        %2568 = vmatpush1.msra.mxu0 %v2519
        %2569 = vmatprep.subr.mxu0 0.0
        %2570 = vmatpush2.msra.mxu0 0.0
        %2571 = vmatprep.subr.mxu0 0.0
        %2572 = vmatpush2.msra.mxu0 0.0
        %2573 = vmatprep.subr.mxu0 0.0
        %2574 = vmatpush2.msra.mxu0 0.0
        %2575 = vmatprep.subr.mxu0 0.0
        %2576 = vmatpush2.msra.mxu0 0.0
        %2577 = vmatprep.subr.mxu0 0.0
        %2578 = vmatpush2.msra.mxu0 0.0
        %2579 = vmatprep.subr.mxu0 0.0
        %2580 = vmatpush2.msra.mxu0 0.0
        %2581 = vmatprep.subr.mxu0 0.0
        %2582 = vmatpush2.msra.mxu0 0.0
        %2583 = vmatprep.subr.mxu0 0.0
        %2584 = vmatpush2.msra.mxu0 0.0
        %2585 = vmatprep.subr.mxu0 0.0
        %2586 = vmatpush2.msra.mxu0 0.0
        %2587 = vmatprep.subr.mxu0 0.0
        %2588 = vmatpush2.msra.mxu0 0.0
        %2589 = vmatprep.subr.mxu0 0.0
        %2590 = vmatpush2.msra.mxu0 0.0
        %2591 = vmatprep.subr.mxu0 0.0
        %2592 = vmatpush2.msra.mxu0 0.0
        %2593 = vmatprep.subr.mxu0 0.0
        %2594 = vmatpush2.msra.mxu0 0.0
        %2595 = vmatprep.subr.mxu0 0.0
        %2596 = vmatpush2.msra.mxu0 0.0
        %2597 = vmatprep.subr.mxu0 0.0
        %2598 = vmatpush2.msra.mxu0 0.0
        %2599 = vmatprep.subr.mxu0 0.0
        %2600 = vmatpush2.msra.mxu0 0.0
        %2601 = vmatprep.mubr.f32.mxu0 0.0
        %2602 = vmatmul.mubr.f32.gmra.mxu0 %v2532
        %v2603 = vpop.f32.mrf.mxu0
        %v2604 = vadd.f32 %v2528, %v2603
        %v2605 = vpop.f32.mrf.mxu0
        %2606 = vmatprep.mubr.f32.mxu0 0.0
        %2607 = vmatmul.mubr.f32.gmra.mxu0 %v2535
        %v2608 = vpop.f32.mrf.mxu0
        %v2609 = vadd.f32 %v2528, %v2608
        %v2610 = vpop.f32.mrf.mxu0
        %2611 = vdwg.mxu0
        %v2612 = vmax.f32 %v2604, 0.0
        %v2613 = vmax.f32 %v2609, 0.0
        %v2614 = vld [vmem:[#allocation6] sm:$0xff]
        %v2615 = vld [vmem:[#allocation6 + $0x8] sm:$0xff]
        %v2616 = vld [vmem:[%s731] sm:$0xff]
        %v2617 = vld [vmem:[%s731 + $0x8] sm:$0xff]
        %v2618 = vld [vmem:[%s731 + $0x10] sm:$0xff]
        %v2619 = vld [vmem:[%s731 + $0x18] sm:$0xff]
        %v2620 = vld [vmem:[%s731 + $0x20] sm:$0xff]
        %v2621 = vld [vmem:[%s731 + $0x28] sm:$0xff]
        %v2622 = vld [vmem:[%s731 + $0x30] sm:$0xff]
        %v2623 = vld [vmem:[%s731 + $0x38] sm:$0xff]
        %vm2624 = vcmask 523264
        %v2626 = vsel %vm2624, %v2612, 0
        %v2629 = vsel %vm2624, %v2613, 0
        %2631 = vmatprep.subr.mxu0 0.0
        %2632 = vmatpush1.msra.mxu0 0.0
        %2633 = vmatprep.subr.mxu0 0.0
        %2634 = vmatpush1.msra.mxu0 0.0
        %2635 = vmatprep.subr.mxu0 0.0
        %2636 = vmatpush1.msra.mxu0 0.0
        %2637 = vmatprep.subr.mxu0 0.0
        %2638 = vmatpush1.msra.mxu0 0.0
        %2639 = vmatprep.subr.mxu0 0.0
        %2640 = vmatpush1.msra.mxu0 0.0
        %2641 = vmatprep.subr.mxu0 0.0
        %2642 = vmatpush1.msra.mxu0 0.0
        %2643 = vmatprep.subr.mxu0 0.0
        %2644 = vmatpush1.msra.mxu0 0.0
        %2645 = vmatprep.subr.mxu0 0.0
        %2646 = vmatpush1.msra.mxu0 0.0
        %2647 = vmatprep.subr.mxu0 0.0
        %2648 = vmatpush1.msra.mxu0 %v2623
        %2649 = vmatprep.subr.mxu0 0.0
        %2650 = vmatpush1.msra.mxu0 %v2622
        %2651 = vmatprep.subr.mxu0 0.0
        %2652 = vmatpush1.msra.mxu0 %v2621
        %2653 = vmatprep.subr.mxu0 0.0
        %2654 = vmatpush1.msra.mxu0 %v2620
        %2655 = vmatprep.subr.mxu0 0.0
        %2656 = vmatpush1.msra.mxu0 %v2619
        %2657 = vmatprep.subr.mxu0 0.0
        %2658 = vmatpush1.msra.mxu0 %v2618
        %2659 = vmatprep.subr.mxu0 0.0
        %2660 = vmatpush1.msra.mxu0 %v2617
        %2661 = vmatprep.subr.mxu0 0.0
        %2662 = vmatpush1.msra.mxu0 %v2616
        %2663 = vmatprep.subr.mxu0 0.0
        %2664 = vmatpush2.msra.mxu0 0.0
        %2665 = vmatprep.subr.mxu0 0.0
        %2666 = vmatpush2.msra.mxu0 0.0
        %2667 = vmatprep.subr.mxu0 0.0
        %2668 = vmatpush2.msra.mxu0 0.0
        %2669 = vmatprep.subr.mxu0 0.0
        %2670 = vmatpush2.msra.mxu0 0.0
        %2671 = vmatprep.subr.mxu0 0.0
        %2672 = vmatpush2.msra.mxu0 0.0
        %2673 = vmatprep.subr.mxu0 0.0
        %2674 = vmatpush2.msra.mxu0 0.0
        %2675 = vmatprep.subr.mxu0 0.0
        %2676 = vmatpush2.msra.mxu0 0.0
        %2677 = vmatprep.subr.mxu0 0.0
        %2678 = vmatpush2.msra.mxu0 0.0
        %2679 = vmatprep.subr.mxu0 0.0
        %2680 = vmatpush2.msra.mxu0 0.0
        %2681 = vmatprep.subr.mxu0 0.0
        %2682 = vmatpush2.msra.mxu0 0.0
        %2683 = vmatprep.subr.mxu0 0.0
        %2684 = vmatpush2.msra.mxu0 0.0
        %2685 = vmatprep.subr.mxu0 0.0
        %2686 = vmatpush2.msra.mxu0 0.0
        %2687 = vmatprep.subr.mxu0 0.0
        %2688 = vmatpush2.msra.mxu0 0.0
        %2689 = vmatprep.subr.mxu0 0.0
        %2690 = vmatpush2.msra.mxu0 0.0
        %2691 = vmatprep.subr.mxu0 0.0
        %2692 = vmatpush2.msra.mxu0 0.0
        %2693 = vmatprep.subr.mxu0 0.0
        %2694 = vmatpush2.msra.mxu0 0.0
        %2695 = vmatprep.mubr.f32.mxu0 0.0
        %2696 = vmatmul.mubr.f32.gmra.mxu0 %v2626
        %v2697 = vpop.f32.mrf.mxu0
        %v2698 = vadd.f32 0.0, %v2697
        %v2699 = vpop.f32.mrf.mxu0
        %2700 = vmatprep.mubr.f32.mxu0 0.0
        %2701 = vmatmul.mubr.f32.gmra.mxu0 %v2629
        %v2702 = vpop.f32.mrf.mxu0
        %v2703 = vadd.f32 0.0, %v2702
        %v2704 = vpop.f32.mrf.mxu0
        %2705 = vdwg.mxu0
        %v2706 = vadd.f32 %v2614, %v2698
        %v2707 = vadd.f32 %v2615, %v2703
        %2708 = vst.msk [vmem:[#allocation6] sm:$0xff] %vm2530, %v2706
        %2709 = vst.msk [vmem:[#allocation6 + $0x8] sm:$0xff] %vm2530, %v2707
        // Predicated region
        $region93: #{tpu_custom_call.1} parent=75 // pred_check
          %p2710 = pneg %p738
        $region94: #{tpu_custom_call.1} parent=75 // pred_check_branch
          %2712 = sbr.rel (%p2710) target = $region96
        $region95: #{tpu_custom_call.1} parent=75 // pred_region
          %v2713 = vld [vmem:[#allocation2] sm:$0xff]
          %v2714 = vld [vmem:[#allocation2 + $0x8] sm:$0xff]
          %v2715 = vld [vmem:[#allocation6] sm:$0xff]
          %v2716 = vld [vmem:[#allocation6 + $0x8] sm:$0xff]
          %v2717 = vadd.f32 %v2713, %v2715
          %v2718 = vadd.f32 %v2714, %v2716
          %v2719 = vld [vmem:[%s735] sm:$0x1]
          %v2721 = vlaneseq
          %v2722 = vshrl.u32 %v2721, 7
          %v2723 = vsub.s32 0, %v2722
          %v2724 = vrot.slane %v2719, %v2723
          %v2726 = vadd.f32 %v2717, %v2724
          %v2727 = vadd.f32 %v2718, %v2724
          %2728 = vst.msk [vmem:[#allocation2] sm:$0xff] %vm2530, %v2726
          %2729 = vst.msk [vmem:[#allocation2 + $0x8] sm:$0xff] %vm2530, %v2727
        $region96: #{tpu_custom_call.1} parent=75 // pred_fallthru
          _
        %p2730 = scmp.eq.s32.totalorder %s34, 1
        %p2731 = pnand %p738, %p2730
        %p2732 = pneg %p2731
        // Predicated region
        $region97: #{tpu_custom_call.1} parent=75 // pred_check
          _
        $region98: #{tpu_custom_call.1} parent=75 // pred_check_branch
          %2734 = sbr.rel (%p2731) target = $region100
        $region99: #{tpu_custom_call.1} parent=75 // pred_region
          %v2735 = vld [vmem:[#allocation2] sm:$0xff]
          %v2736 = vld [vmem:[#allocation2 + $0x8] sm:$0xff]
          %2737 = vst.msk [vmem:[#allocation12] sm:$0xff] %vm2530, %v2735
          %2738 = vst.msk [vmem:[#allocation12 + $0x8] sm:$0xff] %vm2530, %v2736
        $region100: #{tpu_custom_call.1} parent=75 // pred_fallthru
          _
        // Predicated region
        $region101: #{tpu_custom_call.1} parent=75 // pred_check
          %p2739 = pneg %p435
        $region102: #{tpu_custom_call.1} parent=75 // pred_check_branch
          %2741 = sbr.rel (%p2739) target = $region104
        $region103: #{tpu_custom_call.1} parent=75 // pred_region
          %s2742 = smul.u32 2, %s33
          %s2744 = ssub.s32 256, 256
          %2745 = vsyncadd [#allocation9], %s2744
          %s2746 = smul.addr %s2742, 128
          %s2747 = scalar_lea.hbm %s14, %s2746
          %s2748 = sshll.u32 [#allocation12], 4
          %s2749 = int_to_ptr.vmem [resolvable:$true] %s2748
          %2754 = dma.vmem_to_hbm [thread:$0]  %s2749, 256, %s2747, [#allocation9], 128, 128, 8
        $region104: #{tpu_custom_call.1} parent=75 // pred_fallthru
          _
        // Predicated region
        $region105: #{tpu_custom_call.1} parent=75 // pred_check
          %p2755 = pneg %p435
        $region106: #{tpu_custom_call.1} parent=75 // pred_check_branch
          %2757 = sbr.rel (%p2755) target = $region108
        $region107: #{tpu_custom_call.1} parent=75 // pred_region
          %2758 = dma.done [#allocation9], 256
        $region108: #{tpu_custom_call.1} parent=75 // pred_fallthru
          _
      $region76: #{tpu_custom_call.1} parent=5 // pred_fallthru
        _
      %p2759 = scmp.le.s32.totalorder 2, %s23
      // Predicated region
      $region109: #{tpu_custom_call.1} parent=5 // pred_check
        %p2760 = pneg %p2759
      $region110: #{tpu_custom_call.1} parent=5 // pred_check_branch
        %2762 = sbr.rel (%p2760) target = $region112
      $region111: #{tpu_custom_call.1} parent=5 // pred_region
        %s2763 = ssub.s32 %s23, 2
      $region112: #{tpu_custom_call.1} parent=5 // pred_fallthru
        _
    $region6: #{tpu_custom_call.1} parent=1 // loop_footer
      %s27 = sadd.s32 1, %s23
    $region7: #{tpu_custom_call.1} parent=1 // loop_footer_branch
      %22 = sbr.rel target = $region3
    $region8: #{tpu_custom_call.1} parent=1 // loop_exit
      _
    %2764 = vsyncpa [#allocation8], 1
    %s2765 = scalar_lea.sflag [#allocation8], 1
    %2766 = vsyncpa %s2765, 1
    %2767 = vsyncpa [#allocation11], 1
    %2768 = vsyncpa [#allocation9], 1
    %s2769 = scalar_lea.sflag [#allocation9], 1
    %2770 = vsyncpa %s2769, 1

</llo_original>
